<compile_context>
chip_gen: v6e
topology: v6e:2x2x1
jax: 0.10.0
libtpu: 0.0.40
codegen_flags: <defaults>
</compile_context>

<pallas_src>
import functools

import jax
import jax.numpy as jnp
from jax.experimental import pallas as pl
from jax.experimental.pallas import tpu as pltpu

NEG_SLOPE = 0.01   # torch.nn.LeakyReLU default
EPS = 1e-5         # torch.nn.InstanceNorm2d default
CP = 128           # lane-dense padded channel count


def _leaky(x):
    # Exactly equivalent to where(x>=0, x, s*x) for 0 < s < 1; mul+max is one
    # fewer VALU op and avoids bf16-select quirks on v5e.
    return jnp.maximum(x, NEG_SLOPE * x)


def _round_up(v, m):
    return ((v + m - 1) // m) * m


def _block_resnet_pre_kernel(H, W, C, x_ref, w1_ref, w2_ref, b2_ref,
                             out_ref, work_ref):
    HW = H * W
    Cp = x_ref.shape[1]                      # 128
    halo = (work_ref.shape[0] - HW) // 2     # >= W, multiple of 16 (bf16 tile)
    inv_hw = 1.0 / float(HW)

    # {0,1} column-wrap masks for the dx = -1 / +1 taps, built once from an
    # iota (exact in bf16) and shared by both convs.
    col_idx = jax.lax.broadcasted_iota(jnp.int32, (HW, 1), 0) % W
    mask_l = (col_idx != 0).astype(jnp.bfloat16)         # dx = -1 valid
    mask_r = (col_idx != (W - 1)).astype(jnp.bfloat16)   # dx = +1 valid

    # Zero the halo rows once; they absorb the dy = +-1 and dx = +-1 borders.
    # The interior is fully rewritten by every conv, never re-zeroed.
    zeros_halo = jnp.zeros((halo, Cp), jnp.bfloat16)
    work_ref[0:halo, :] = zeros_halo
    work_ref[halo + HW:, :] = zeros_halo

    def instance_norm_leaky(x):
        # Two-pass centered (biased) instance norm, matching torch, + leaky.
        mu = jnp.sum(x, axis=0, keepdims=True) * inv_hw
        d = x - mu
        var = jnp.sum(d * d, axis=0, keepdims=True) * inv_hw
        return _leaky(d * jax.lax.rsqrt(var + EPS))

    def conv3x3(act, w_ref):
        # 1) Stage the bf16 activation (real data in lanes [0, C)).
        a_bf = act.astype(jnp.bfloat16)
        work_ref[halo:halo + HW, :] = a_bf

        # 2) Pack the three dx taps into a lane-dense (HW, Cp) slab in-place:
        #      lanes [0,  C): a[q-1]  (masked at column 0)
        #      lanes [C, 2C): a[q]
        #      lanes [2C,3C): a[q+1]  (masked at column W-1)
        #      lanes [3C,Cp): zero
        #    The dx shifts come from +-1-row reads against the zero halos;
        #    the column-wrap is handled by the {0,1} masks.
        p_left = work_ref[halo - 1:halo - 1 + HW, :] * mask_l
        p_right = work_ref[halo + 1:halo + 1 + HW, :] * mask_r
        work_ref[halo:halo + HW, :] = p_left            # also zeroes lanes >= C
        work_ref[halo:halo + HW, C:2 * C] = a_bf[:, :C]
        work_ref[halo:halo + HW, 2 * C:3 * C] = p_right[:, :C]

        # 3) Three aligned dy*W reads -> three accumulating MXU matmuls with
        #    K = Cp = 128 (3*C = 96 real rows each), f32 accumulation.
        acc = jnp.dot(work_ref[halo - W:halo - W + HW, :], w_ref[0],
                      preferred_element_type=jnp.float32)
        acc = acc + jnp.dot(work_ref[halo:halo + HW, :], w_ref[1],
                            preferred_element_type=jnp.float32)
        acc = acc + jnp.dot(work_ref[halo + W:halo + W + HW, :], w_ref[2],
                            preferred_element_type=jnp.float32)
        return acc

    x = x_ref[...]
    a1 = instance_norm_leaky(x)
    # conv1's bias is dropped: it feeds an affine-free InstanceNorm which
    # subtracts the per-channel spatial mean, so a per-channel constant bias
    # cancels exactly.
    c1 = conv3x3(a1, w1_ref)
    a2 = instance_norm_leaky(c1)
    c2 = conv3x3(a2, w2_ref) + b2_ref[...]
    out_ref[...] = _leaky(c2 + x)          # residual re-reads x at point of use


def block_resnet_pre(pair, w1, b1, w2, b2):
    """pair: (H, W, C) f32; w1/w2: (3, 3, C, C) HWIO; b1/b2: (C,).

    b1 is accepted for API parity but unused (mathematical no-op, see kernel).
    """
    del b1
    H, W, C = pair.shape
    HW = H * W
    if 3 * C > CP:
        raise NotImplementedError(
            "lane-packed im2col layout requires 3 * d_module <= 128")
    halo = _round_up(max(W, 1), 16)   # >= W (dy halo), bf16-tile aligned origin

    x = jnp.pad(pair.reshape(HW, C).astype(jnp.float32),
                ((0, 0), (0, CP - C)))

    def prep_w(w):
        # (3, 3, C, C) HWIO -> one (Cp, Cp) bf16 block per ky, with row layout
        # kx*C + cin matching the lane-packed slab; rows [3C,Cp) and columns
        # [C,Cp) are zero padding.
        wk = w.astype(jnp.float32).reshape(3, 3 * C, C)
        wk = jnp.pad(wk, ((0, 0), (0, CP - 3 * C), (0, CP - C)))
        return wk.astype(jnp.bfloat16)

    b2p = jnp.pad(b2.astype(jnp.float32), (0, CP - C)).reshape(1, CP)

    vmem = pl.BlockSpec(memory_space=pltpu.MemorySpace.VMEM)
    out = pl.pallas_call(
        functools.partial(_block_resnet_pre_kernel, H, W, C),
        out_shape=jax.ShapeDtypeStruct((HW, CP), jnp.float32),
        in_specs=[vmem] * 4,
        out_specs=vmem,
        scratch_shapes=[
            pltpu.VMEM((2 * halo + HW, CP), jnp.bfloat16),  # halo-padded slab
        ],
        compiler_params=pltpu.CompilerParams(
            vmem_limit_bytes=16 * 1024 * 1024),
    )(x, prep_w(w1), prep_w(w2), b2p)
    return out[:, :C].reshape(H, W, C)


def _reference(pair, w1, b1, w2, b2):
    # Pure-JAX reference mirroring the torch forward (bias b1 included here;
    # it cancels inside the following affine-free InstanceNorm).
    def inorm(y):
        mu = jnp.mean(y, axis=(0, 1), keepdims=True)
        var = jnp.mean((y - mu) ** 2, axis=(0, 1), keepdims=True)
        return (y - mu) * jax.lax.rsqrt(var + EPS)

    def conv(y, w, b):
        o = jax.lax.conv_general_dilated(
            y[None], w, window_strides=(1, 1), padding=((1, 1), (1, 1)),
            dimension_numbers=('NHWC', 'HWIO', 'NHWC'),
            precision=jax.lax.Precision.HIGHEST)
        return o[0] + b

    a1 = _leaky(inorm(pair))
    c1 = conv(a1, w1, b1)
    a2 = _leaky(inorm(c1))
    c2 = conv(a2, w2, b2)
    return _leaky(c2 + pair)


if __name__ == "__main__":
    H, W, C = 16, 16, 32  # d_module = 32, `pair` is (H, W, d_module)
    key = jax.random.PRNGKey(0)
    k1, k2, k3, k4, k5 = jax.random.split(key, 5)

    pair = jax.random.normal(k1, (H, W, C), jnp.float32)
    bound = 1.0 / jnp.sqrt(9.0 * C)  # torch Conv2d default-ish uniform bound
    w1 = jax.random.uniform(k2, (3, 3, C, C), jnp.float32, -bound, bound)
    b1 = jax.random.uniform(k3, (C,), jnp.float32, -bound, bound)
    w2 = jax.random.uniform(k4, (3, 3, C, C), jnp.float32, -bound, bound)
    b2 = jax.random.uniform(k5, (C,), jnp.float32, -bound, bound)

    out = jax.block_until_ready(block_resnet_pre(pair, w1, b1, w2, b2))
    ref = jax.block_until_ready(_reference(pair, w1, b1, w2, b2))

    assert out.shape == (H, W, C)
    err = float(jnp.max(jnp.abs(out - ref)))
    assert err < 5e-2, f"max abs error vs reference: {err}"
    print("KERNEL_OK")
</pallas_src>

<mosaic_0001>
module attributes {stable_mosaic.version = 11 : i64} {
  func.func @_block_resnet_pre_kernel(%arg0: memref<256x128xf32, #tpu.memory_space<vmem>>, %arg1: memref<3x128x128xbf16, #tpu.memory_space<vmem>>, %arg2: memref<3x128x128xbf16, #tpu.memory_space<vmem>>, %arg3: memref<1x128xf32, #tpu.memory_space<vmem>>, %arg4: memref<256x128xf32, #tpu.memory_space<vmem>>, %arg5: memref<288x128xbf16, #tpu.memory_space<vmem>>) attributes {dimension_semantics = [], scalar_prefetch = 0 : i64, scratch_operands = 1 : i64, tpu.core_type = #tpu.core_type<tc>} {
    %0 = tpu.iota {dimensions = array<i32: 0>} : vector<256x1xi32>
    %c16_i32 = arith.constant 16 : i32
    %c0_i32 = arith.constant 0 : i32
    %1 = arith.cmpi eq, %c16_i32, %c0_i32 : i32
    %c1_i32 = arith.constant 1 : i32
    %2 = arith.select %1, %c1_i32, %c16_i32 : i32
    %3 = vector.broadcast %2 : i32 to vector<256x1xi32>
    %4 = arith.remsi %0, %3 : vector<256x1xi32>
    %c0_i32_0 = arith.constant 0 : i32
    %5 = vector.broadcast %c0_i32_0 : i32 to vector<256x1xi32>
    %6 = arith.cmpi ne, %4, %5 : vector<256x1xi32>
    %c0_i32_1 = arith.constant 0 : i32
    %7 = vector.broadcast %c0_i32_1 : i32 to vector<256x1xi32>
    %8 = arith.cmpi slt, %4, %7 : vector<256x1xi32>
    %c0_i32_2 = arith.constant 0 : i32
    %9 = arith.cmpi slt, %2, %c0_i32_2 : i32
    %10 = vector.broadcast %9 : i1 to vector<256x1xi1>
    %11 = vector.broadcast %10 : vector<256x1xi1> to vector<256x1xi1>
    %12 = arith.xori %8, %11 : vector<256x1xi1>
    %13 = arith.andi %12, %6 : vector<256x1xi1>
    %14 = vector.broadcast %2 : i32 to vector<256x1xi32>
    %15 = arith.addi %4, %14 : vector<256x1xi32>
    %16 = arith.select %13, %15, %4 : vector<256x1xi1>, vector<256x1xi32>
    %c0_i32_3 = arith.constant 0 : i32
    %17 = vector.broadcast %c0_i32_3 : i32 to vector<256x1xi32>
    %18 = arith.cmpi ne, %16, %17 : vector<256x1xi32>
    %19 = arith.extui %18 : vector<256x1xi1> to vector<256x1xi32>
    %20 = arith.sitofp %19 : vector<256x1xi32> to vector<256x1xf32>
    %21 = arith.truncf %20 : vector<256x1xf32> to vector<256x1xbf16>
    %c15_i32 = arith.constant 15 : i32
    %22 = vector.broadcast %c15_i32 : i32 to vector<256x1xi32>
    %23 = arith.cmpi ne, %16, %22 : vector<256x1xi32>
    %24 = arith.extui %23 : vector<256x1xi1> to vector<256x1xi32>
    %25 = arith.sitofp %24 : vector<256x1xi32> to vector<256x1xf32>
    %26 = arith.truncf %25 : vector<256x1xf32> to vector<256x1xbf16>
    %cst = arith.constant 0.000000e+00 : bf16
    %27 = vector.broadcast %cst : bf16 to vector<16x128xbf16>
    %c0 = arith.constant 0 : index
    %c0_4 = arith.constant 0 : index
    %28 = vector.load %arg5[%c0, %c0_4] : memref<288x128xbf16, #tpu.memory_space<vmem>>, vector<16x128xbf16>
    tpu.vector_store %arg5[%c0, %c0_4], %27 {strides = array<i32>} : memref<288x128xbf16, #tpu.memory_space<vmem>>, vector<16x128xbf16>,
    %c272 = arith.constant 272 : index
    %c0_5 = arith.constant 0 : index
    %29 = vector.load %arg5[%c272, %c0_5] : memref<288x128xbf16, #tpu.memory_space<vmem>>, vector<16x128xbf16>
    tpu.vector_store %arg5[%c272, %c0_5], %27 {strides = array<i32>} : memref<288x128xbf16, #tpu.memory_space<vmem>>, vector<16x128xbf16>,
    %c0_6 = arith.constant 0 : index
    %c0_7 = arith.constant 0 : index
    %30 = vector.load %arg0[%c0_6, %c0_7] : memref<256x128xf32, #tpu.memory_space<vmem>>, vector<256x128xf32>
    %cst_8 = arith.constant dense<0.000000e+00> : vector<128xf32>
    %31 = vector.multi_reduction <add>, %30, %cst_8 [0] : vector<256x128xf32> to vector<128xf32>
    %32 = vector.shape_cast %31 : vector<128xf32> to vector<1x128xf32>
    %cst_9 = arith.constant 3.906250e-03 : f32
    %33 = vector.broadcast %cst_9 : f32 to vector<1x128xf32>
    %34 = arith.mulf %32, %33 : vector<1x128xf32>
    %35 = vector.broadcast %34 : vector<1x128xf32> to vector<256x128xf32>
    %36 = arith.subf %30, %35 : vector<256x128xf32>
    %37 = arith.mulf %36, %36 : vector<256x128xf32>
    %cst_10 = arith.constant dense<0.000000e+00> : vector<128xf32>
    %38 = vector.multi_reduction <add>, %37, %cst_10 [0] : vector<256x128xf32> to vector<128xf32>
    %39 = vector.shape_cast %38 : vector<128xf32> to vector<1x128xf32>
    %cst_11 = arith.constant 3.906250e-03 : f32
    %40 = vector.broadcast %cst_11 : f32 to vector<1x128xf32>
    %41 = arith.mulf %39, %40 : vector<1x128xf32>
    %cst_12 = arith.constant 9.99999974E-6 : f32
    %42 = vector.broadcast %cst_12 : f32 to vector<1x128xf32>
    %43 = arith.addf %41, %42 : vector<1x128xf32>
    %44 = math.rsqrt %43 : vector<1x128xf32>
    %45 = vector.broadcast %44 : vector<1x128xf32> to vector<256x128xf32>
    %46 = arith.mulf %36, %45 : vector<256x128xf32>
    %cst_13 = arith.constant 0.00999999977 : f32
    %47 = vector.broadcast %cst_13 : f32 to vector<256x128xf32>
    %48 = arith.mulf %47, %46 : vector<256x128xf32>
    %49 = arith.maximumf %46, %48 : vector<256x128xf32>
    %50 = arith.truncf %49 : vector<256x128xf32> to vector<256x128xbf16>
    %c16 = arith.constant 16 : index
    %c0_14 = arith.constant 0 : index
    %51 = vector.load %arg5[%c16, %c0_14] : memref<288x128xbf16, #tpu.memory_space<vmem>>, vector<256x128xbf16>
    tpu.vector_store %arg5[%c16, %c0_14], %50 {strides = array<i32>} : memref<288x128xbf16, #tpu.memory_space<vmem>>, vector<256x128xbf16>,
    %c15 = arith.constant 15 : index
    %c0_15 = arith.constant 0 : index
    %52 = vector.load %arg5[%c15, %c0_15] : memref<288x128xbf16, #tpu.memory_space<vmem>>, vector<256x128xbf16>
    %53 = vector.broadcast %21 : vector<256x1xbf16> to vector<256x128xbf16>
    %54 = arith.mulf %52, %53 : vector<256x128xbf16>
    %c17 = arith.constant 17 : index
    %c0_16 = arith.constant 0 : index
    %55 = vector.load %arg5[%c17, %c0_16] : memref<288x128xbf16, #tpu.memory_space<vmem>>, vector<256x128xbf16>
    %56 = vector.broadcast %26 : vector<256x1xbf16> to vector<256x128xbf16>
    %57 = arith.mulf %55, %56 : vector<256x128xbf16>
    %c16_17 = arith.constant 16 : index
    %c0_18 = arith.constant 0 : index
    %58 = vector.load %arg5[%c16_17, %c0_18] : memref<288x128xbf16, #tpu.memory_space<vmem>>, vector<256x128xbf16>
    tpu.vector_store %arg5[%c16_17, %c0_18], %54 {strides = array<i32>} : memref<288x128xbf16, #tpu.memory_space<vmem>>, vector<256x128xbf16>,
    %59 = vector.extract_strided_slice %50 {offsets = [0, 0], sizes = [256, 32], strides = [1, 1]} : vector<256x128xbf16> to vector<256x32xbf16>
    %c16_19 = arith.constant 16 : index
    %c32 = arith.constant 32 : index
    %60 = vector.load %arg5[%c16_19, %c32] : memref<288x128xbf16, #tpu.memory_space<vmem>>, vector<256x32xbf16>
    tpu.vector_store %arg5[%c16_19, %c32], %59 {strides = array<i32>} : memref<288x128xbf16, #tpu.memory_space<vmem>>, vector<256x32xbf16>,
    %61 = vector.extract_strided_slice %57 {offsets = [0, 0], sizes = [256, 32], strides = [1, 1]} : vector<256x128xbf16> to vector<256x32xbf16>
    %c16_20 = arith.constant 16 : index
    %c64 = arith.constant 64 : index
    %62 = vector.load %arg5[%c16_20, %c64] : memref<288x128xbf16, #tpu.memory_space<vmem>>, vector<256x32xbf16>
    tpu.vector_store %arg5[%c16_20, %c64], %61 {strides = array<i32>} : memref<288x128xbf16, #tpu.memory_space<vmem>>, vector<256x32xbf16>,
    %c0_21 = arith.constant 0 : index
    %c0_22 = arith.constant 0 : index
    %63 = vector.load %arg5[%c0_21, %c0_22] : memref<288x128xbf16, #tpu.memory_space<vmem>>, vector<256x128xbf16>
    %c0_23 = arith.constant 0 : index
    %c0_24 = arith.constant 0 : index
    %c0_25 = arith.constant 0 : index
    %64 = vector.load %arg1[%c0_23, %c0_24, %c0_25] : memref<3x128x128xbf16, #tpu.memory_space<vmem>>, vector<1x128x128xbf16>
    %65 = vector.shape_cast %64 : vector<1x128x128xbf16> to vector<128x128xbf16>
    %cst_26 = arith.constant dense<0.000000e+00> : vector<256x128xf32>
    %66 = tpu.matmul %63, %65, %cst_26 {dimension_numbers = #tpu.dot_dimension_numbers<[1], [0], [0], [1], [0, 0, 1, 1], [], []>} : vector<256x128xbf16>, vector<128x128xbf16>, vector<256x128xf32> -> vector<256x128xf32>
    %c16_27 = arith.constant 16 : index
    %c0_28 = arith.constant 0 : index
    %67 = vector.load %arg5[%c16_27, %c0_28] : memref<288x128xbf16, #tpu.memory_space<vmem>>, vector<256x128xbf16>
    %c1 = arith.constant 1 : index
    %c0_29 = arith.constant 0 : index
    %c0_30 = arith.constant 0 : index
    %68 = vector.load %arg1[%c1, %c0_29, %c0_30] : memref<3x128x128xbf16, #tpu.memory_space<vmem>>, vector<1x128x128xbf16>
    %69 = vector.shape_cast %68 : vector<1x128x128xbf16> to vector<128x128xbf16>
    %cst_31 = arith.constant dense<0.000000e+00> : vector<256x128xf32>
    %70 = tpu.matmul %67, %69, %cst_31 {dimension_numbers = #tpu.dot_dimension_numbers<[1], [0], [0], [1], [0, 0, 1, 1], [], []>} : vector<256x128xbf16>, vector<128x128xbf16>, vector<256x128xf32> -> vector<256x128xf32>
    %71 = arith.addf %66, %70 : vector<256x128xf32>
    %c32_32 = arith.constant 32 : index
    %c0_33 = arith.constant 0 : index
    %72 = vector.load %arg5[%c32_32, %c0_33] : memref<288x128xbf16, #tpu.memory_space<vmem>>, vector<256x128xbf16>
    %c2 = arith.constant 2 : index
    %c0_34 = arith.constant 0 : index
    %c0_35 = arith.constant 0 : index
    %73 = vector.load %arg1[%c2, %c0_34, %c0_35] : memref<3x128x128xbf16, #tpu.memory_space<vmem>>, vector<1x128x128xbf16>
    %74 = vector.shape_cast %73 : vector<1x128x128xbf16> to vector<128x128xbf16>
    %cst_36 = arith.constant dense<0.000000e+00> : vector<256x128xf32>
    %75 = tpu.matmul %72, %74, %cst_36 {dimension_numbers = #tpu.dot_dimension_numbers<[1], [0], [0], [1], [0, 0, 1, 1], [], []>} : vector<256x128xbf16>, vector<128x128xbf16>, vector<256x128xf32> -> vector<256x128xf32>
    %76 = arith.addf %71, %75 : vector<256x128xf32>
    %cst_37 = arith.constant dense<0.000000e+00> : vector<128xf32>
    %77 = vector.multi_reduction <add>, %76, %cst_37 [0] : vector<256x128xf32> to vector<128xf32>
    %78 = vector.shape_cast %77 : vector<128xf32> to vector<1x128xf32>
    %cst_38 = arith.constant 3.906250e-03 : f32
    %79 = vector.broadcast %cst_38 : f32 to vector<1x128xf32>
    %80 = arith.mulf %78, %79 : vector<1x128xf32>
    %81 = vector.broadcast %80 : vector<1x128xf32> to vector<256x128xf32>
    %82 = arith.subf %76, %81 : vector<256x128xf32>
    %83 = arith.mulf %82, %82 : vector<256x128xf32>
    %cst_39 = arith.constant dense<0.000000e+00> : vector<128xf32>
    %84 = vector.multi_reduction <add>, %83, %cst_39 [0] : vector<256x128xf32> to vector<128xf32>
    %85 = vector.shape_cast %84 : vector<128xf32> to vector<1x128xf32>
    %cst_40 = arith.constant 3.906250e-03 : f32
    %86 = vector.broadcast %cst_40 : f32 to vector<1x128xf32>
    %87 = arith.mulf %85, %86 : vector<1x128xf32>
    %cst_41 = arith.constant 9.99999974E-6 : f32
    %88 = vector.broadcast %cst_41 : f32 to vector<1x128xf32>
    %89 = arith.addf %87, %88 : vector<1x128xf32>
    %90 = math.rsqrt %89 : vector<1x128xf32>
    %91 = vector.broadcast %90 : vector<1x128xf32> to vector<256x128xf32>
    %92 = arith.mulf %82, %91 : vector<256x128xf32>
    %cst_42 = arith.constant 0.00999999977 : f32
    %93 = vector.broadcast %cst_42 : f32 to vector<256x128xf32>
    %94 = arith.mulf %93, %92 : vector<256x128xf32>
    %95 = arith.maximumf %92, %94 : vector<256x128xf32>
    %96 = arith.truncf %95 : vector<256x128xf32> to vector<256x128xbf16>
    %c16_43 = arith.constant 16 : index
    %c0_44 = arith.constant 0 : index
    %97 = vector.load %arg5[%c16_43, %c0_44] : memref<288x128xbf16, #tpu.memory_space<vmem>>, vector<256x128xbf16>
    tpu.vector_store %arg5[%c16_43, %c0_44], %96 {strides = array<i32>} : memref<288x128xbf16, #tpu.memory_space<vmem>>, vector<256x128xbf16>,
    %c15_45 = arith.constant 15 : index
    %c0_46 = arith.constant 0 : index
    %98 = vector.load %arg5[%c15_45, %c0_46] : memref<288x128xbf16, #tpu.memory_space<vmem>>, vector<256x128xbf16>
    %99 = vector.broadcast %21 : vector<256x1xbf16> to vector<256x128xbf16>
    %100 = arith.mulf %98, %99 : vector<256x128xbf16>
    %c17_47 = arith.constant 17 : index
    %c0_48 = arith.constant 0 : index
    %101 = vector.load %arg5[%c17_47, %c0_48] : memref<288x128xbf16, #tpu.memory_space<vmem>>, vector<256x128xbf16>
    %102 = vector.broadcast %26 : vector<256x1xbf16> to vector<256x128xbf16>
    %103 = arith.mulf %101, %102 : vector<256x128xbf16>
    %c16_49 = arith.constant 16 : index
    %c0_50 = arith.constant 0 : index
    %104 = vector.load %arg5[%c16_49, %c0_50] : memref<288x128xbf16, #tpu.memory_space<vmem>>, vector<256x128xbf16>
    tpu.vector_store %arg5[%c16_49, %c0_50], %100 {strides = array<i32>} : memref<288x128xbf16, #tpu.memory_space<vmem>>, vector<256x128xbf16>,
    %105 = vector.extract_strided_slice %96 {offsets = [0, 0], sizes = [256, 32], strides = [1, 1]} : vector<256x128xbf16> to vector<256x32xbf16>
    %c16_51 = arith.constant 16 : index
    %c32_52 = arith.constant 32 : index
    %106 = vector.load %arg5[%c16_51, %c32_52] : memref<288x128xbf16, #tpu.memory_space<vmem>>, vector<256x32xbf16>
    tpu.vector_store %arg5[%c16_51, %c32_52], %105 {strides = array<i32>} : memref<288x128xbf16, #tpu.memory_space<vmem>>, vector<256x32xbf16>,
    %107 = vector.extract_strided_slice %103 {offsets = [0, 0], sizes = [256, 32], strides = [1, 1]} : vector<256x128xbf16> to vector<256x32xbf16>
    %c16_53 = arith.constant 16 : index
    %c64_54 = arith.constant 64 : index
    %108 = vector.load %arg5[%c16_53, %c64_54] : memref<288x128xbf16, #tpu.memory_space<vmem>>, vector<256x32xbf16>
    tpu.vector_store %arg5[%c16_53, %c64_54], %107 {strides = array<i32>} : memref<288x128xbf16, #tpu.memory_space<vmem>>, vector<256x32xbf16>,
    %c0_55 = arith.constant 0 : index
    %c0_56 = arith.constant 0 : index
    %109 = vector.load %arg5[%c0_55, %c0_56] : memref<288x128xbf16, #tpu.memory_space<vmem>>, vector<256x128xbf16>
    %c0_57 = arith.constant 0 : index
    %c0_58 = arith.constant 0 : index
    %c0_59 = arith.constant 0 : index
    %110 = vector.load %arg2[%c0_57, %c0_58, %c0_59] : memref<3x128x128xbf16, #tpu.memory_space<vmem>>, vector<1x128x128xbf16>
    %111 = vector.shape_cast %110 : vector<1x128x128xbf16> to vector<128x128xbf16>
    %cst_60 = arith.constant dense<0.000000e+00> : vector<256x128xf32>
    %112 = tpu.matmul %109, %111, %cst_60 {dimension_numbers = #tpu.dot_dimension_numbers<[1], [0], [0], [1], [0, 0, 1, 1], [], []>} : vector<256x128xbf16>, vector<128x128xbf16>, vector<256x128xf32> -> vector<256x128xf32>
    %c16_61 = arith.constant 16 : index
    %c0_62 = arith.constant 0 : index
    %113 = vector.load %arg5[%c16_61, %c0_62] : memref<288x128xbf16, #tpu.memory_space<vmem>>, vector<256x128xbf16>
    %c1_63 = arith.constant 1 : index
    %c0_64 = arith.constant 0 : index
    %c0_65 = arith.constant 0 : index
    %114 = vector.load %arg2[%c1_63, %c0_64, %c0_65] : memref<3x128x128xbf16, #tpu.memory_space<vmem>>, vector<1x128x128xbf16>
    %115 = vector.shape_cast %114 : vector<1x128x128xbf16> to vector<128x128xbf16>
    %cst_66 = arith.constant dense<0.000000e+00> : vector<256x128xf32>
    %116 = tpu.matmul %113, %115, %cst_66 {dimension_numbers = #tpu.dot_dimension_numbers<[1], [0], [0], [1], [0, 0, 1, 1], [], []>} : vector<256x128xbf16>, vector<128x128xbf16>, vector<256x128xf32> -> vector<256x128xf32>
    %117 = arith.addf %112, %116 : vector<256x128xf32>
    %c32_67 = arith.constant 32 : index
    %c0_68 = arith.constant 0 : index
    %118 = vector.load %arg5[%c32_67, %c0_68] : memref<288x128xbf16, #tpu.memory_space<vmem>>, vector<256x128xbf16>
    %c2_69 = arith.constant 2 : index
    %c0_70 = arith.constant 0 : index
    %c0_71 = arith.constant 0 : index
    %119 = vector.load %arg2[%c2_69, %c0_70, %c0_71] : memref<3x128x128xbf16, #tpu.memory_space<vmem>>, vector<1x128x128xbf16>
    %120 = vector.shape_cast %119 : vector<1x128x128xbf16> to vector<128x128xbf16>
    %cst_72 = arith.constant dense<0.000000e+00> : vector<256x128xf32>
    %121 = tpu.matmul %118, %120, %cst_72 {dimension_numbers = #tpu.dot_dimension_numbers<[1], [0], [0], [1], [0, 0, 1, 1], [], []>} : vector<256x128xbf16>, vector<128x128xbf16>, vector<256x128xf32> -> vector<256x128xf32>
    %122 = arith.addf %117, %121 : vector<256x128xf32>
    %c0_73 = arith.constant 0 : index
    %c0_74 = arith.constant 0 : index
    %123 = vector.load %arg3[%c0_73, %c0_74] : memref<1x128xf32, #tpu.memory_space<vmem>>, vector<1x128xf32>
    %124 = vector.broadcast %123 : vector<1x128xf32> to vector<256x128xf32>
    %125 = arith.addf %122, %124 : vector<256x128xf32>
    %126 = arith.addf %125, %30 : vector<256x128xf32>
    %cst_75 = arith.constant 0.00999999977 : f32
    %127 = vector.broadcast %cst_75 : f32 to vector<256x128xf32>
    %128 = arith.mulf %127, %126 : vector<256x128xf32>
    %129 = arith.maximumf %126, %128 : vector<256x128xf32>
    %c0_76 = arith.constant 0 : index
    %c0_77 = arith.constant 0 : index
    %130 = vector.load %arg4[%c0_76, %c0_77] : memref<256x128xf32, #tpu.memory_space<vmem>>, vector<256x128xf32>
    tpu.vector_store %arg4[%c0_76, %c0_77], %129 {strides = array<i32>} : memref<256x128xf32, #tpu.memory_space<vmem>>, vector<256x128xf32>,
    return
  }
}

</mosaic_0001>

<llo_original>
// kernel: tpu_custom_call.1
$region0: #{tpu_custom_call.1}
  #allocation0 [shape = 'u32[]', space=smem, size = 0x4, offset = 0x4, fixed_abs, tag = 'smem constant byte address 0x4 - core index']
  #allocation1 [shape = 'u32[144,128]{1,0:T(1,128)}', space=vmem, size = 0x12000, scoped, tag = 'internal scratch']
  #allocation2 [shape = 'bf16[288,128]{1,0:T(8,128)(2,1)}', space=vmem, size = 0x12000, scoped, tag = 'scratch operand']
  %s0 = inlined_call_operand.hbm [shape: f32[256,128], index: 0, kind: input, shape index: {}]
  %s1 = inlined_call_operand.hbm [shape: bf16[3,128,128], index: 1, kind: input, shape index: {}]
  %s2 = inlined_call_operand.hbm [shape: bf16[3,128,128], index: 2, kind: input, shape index: {}]
  %s3 = inlined_call_operand.vmem [shape: f32[1,128], index: 3, kind: input, shape index: {}]
  %s4 = inlined_call_operand.hbm [shape: f32[256,128], index: 4, kind: output, shape index: {}]
  %s5 = sld [smem:[#allocation0]]
  $region38: #{tpu_custom_call.1} parent=0
    _
  %s7 = ssub.s32 1, %s5
  %s8 = scalar_select 0, %s7, %s5
  $region1: #{tpu_custom_call.1} parent=0
    #allocation3 [shape = 'u8[131072]{0}', space=vmem, size = 0x20000, scoped, tag = 'input window, operand 0, single buffered']
    #allocation4 [shape = 's32[1]{0}', space=sflag, size = 0x4, scoped, tag = 'scoped memory for tpu_custom_call.1']
    #allocation5 [shape = 's32[1]{0}', space=sflag, size = 0x4, scoped, tag = 'scoped memory for tpu_custom_call.1']
    #allocation6 [shape = 'u8[98304]{0}', space=vmem, size = 0x18000, scoped, tag = 'input window, operand 1, single buffered']
    #allocation7 [shape = 's32[1]{0}', space=sflag, size = 0x4, scoped, tag = 'scoped memory for tpu_custom_call.1']
    #allocation8 [shape = 'u8[98304]{0}', space=vmem, size = 0x18000, scoped, tag = 'input window, operand 2, single buffered']
    #allocation9 [shape = 'u8[131072]{0}', space=vmem, size = 0x20000, scoped, tag = 'output window, operand 0, single buffered']
    %9 = vsyncpa [#allocation4], 0
    %10 = vsyncpa [#allocation7], 0
    %11 = vsyncpa [#allocation5], 0
    // Predicated region
    $region2: #{tpu_custom_call.1} parent=1 // pred_check
      _
    $region3: #{tpu_custom_call.1} parent=1 // pred_check_branch
      %13 = sbr.rel (0) target = $region5
    $region4: #{tpu_custom_call.1} parent=1 // pred_region
      %s15 = ssub.s32 4096, 4096
      %16 = vsyncadd [#allocation4], %s15
      %s17 = sshll.u32 [#allocation3], 4
      %s18 = int_to_ptr.vmem [resolvable:$true] %s17
      %23 = dma.hbm_to_vmem [thread:$0]  %s0, 4096, %s18, [#allocation4], 128, 128, 8
    $region5: #{tpu_custom_call.1} parent=1 // pred_fallthru
      _
    // Predicated region
    $region6: #{tpu_custom_call.1} parent=1 // pred_check
      _
    $region7: #{tpu_custom_call.1} parent=1 // pred_check_branch
      %25 = sbr.rel (0) target = $region9
    $region8: #{tpu_custom_call.1} parent=1 // pred_region
      %s27 = ssub.s32 3072, 3072
      %28 = vsyncadd [#allocation7], %s27
      %s29 = sshll.u32 [#allocation6], 4
      %s30 = int_to_ptr.vmem [resolvable:$true] %s29
      %35 = dma.hbm_to_vmem [thread:$0]  %s1, 3072, %s30, [#allocation7], 64, 64, 4
    $region9: #{tpu_custom_call.1} parent=1 // pred_fallthru
      _
    // Predicated region
    $region10: #{tpu_custom_call.1} parent=1 // pred_check
      _
    $region11: #{tpu_custom_call.1} parent=1 // pred_check_branch
      %37 = sbr.rel (0) target = $region13
    $region12: #{tpu_custom_call.1} parent=1 // pred_region
      %s39 = ssub.s32 3072, 3072
      %40 = vsyncadd [#allocation7], %s39
      %s41 = sshll.u32 [#allocation8], 4
      %s42 = int_to_ptr.vmem [resolvable:$true] %s41
      %47 = dma.hbm_to_vmem [thread:$0]  %s2, 3072, %s42, [#allocation7], 64, 64, 4
    $region13: #{tpu_custom_call.1} parent=1 // pred_fallthru
      _
    // Predicated region
    $region14: #{tpu_custom_call.1} parent=1 // pred_check
      _
    $region15: #{tpu_custom_call.1} parent=1 // pred_check_branch
      %49 = sbr.rel (0) target = $region17
    $region16: #{tpu_custom_call.1} parent=1 // pred_region
      _
    $region17: #{tpu_custom_call.1} parent=1 // pred_fallthru
      _
    // Predicated region
    $region18: #{tpu_custom_call.1} parent=1 // pred_check
      _
    $region19: #{tpu_custom_call.1} parent=1 // pred_check_branch
      %51 = sbr.rel (0) target = $region21
    $region20: #{tpu_custom_call.1} parent=1 // pred_region
      %52 = dma.done [#allocation4], 4096
    $region21: #{tpu_custom_call.1} parent=1 // pred_fallthru
      _
    // Predicated region
    $region22: #{tpu_custom_call.1} parent=1 // pred_check
      _
    $region23: #{tpu_custom_call.1} parent=1 // pred_check_branch
      %54 = sbr.rel (0) target = $region25
    $region24: #{tpu_custom_call.1} parent=1 // pred_region
      %55 = dma.done [#allocation7], 3072
    $region25: #{tpu_custom_call.1} parent=1 // pred_fallthru
      _
    // Predicated region
    $region26: #{tpu_custom_call.1} parent=1 // pred_check
      _
    $region27: #{tpu_custom_call.1} parent=1 // pred_check_branch
      %57 = sbr.rel (0) target = $region29
    $region28: #{tpu_custom_call.1} parent=1 // pred_region
      %58 = dma.done [#allocation7], 3072
    $region29: #{tpu_custom_call.1} parent=1 // pred_fallthru
      _
    %v60 = vlaneseq
    %v61 = vshrl.u32 %v60, 7
    %v62 = vadd.s32 %v61, 8
    %v63 = vadd.s32 %v61, 16
    %v64 = vadd.s32 %v61, 24
    %v65 = vadd.s32 %v61, 32
    %v66 = vadd.s32 %v61, 40
    %v67 = vadd.s32 %v61, 48
    %v68 = vadd.s32 %v61, 56
    %v69 = vadd.s32 %v61, 64
    %v70 = vadd.s32 %v61, 72
    %v71 = vadd.s32 %v61, 80
    %v72 = vadd.s32 %v61, 88
    %v73 = vadd.s32 %v61, 96
    %v74 = vadd.s32 %v61, 104
    %v75 = vadd.s32 %v61, 112
    %v76 = vadd.s32 %v61, 120
    %v77 = vadd.s32 %v61, 128
    %v78 = vadd.s32 %v61, 136
    %v79 = vadd.s32 %v61, 144
    %v80 = vadd.s32 %v61, 152
    %v81 = vadd.s32 %v61, 160
    %v82 = vadd.s32 %v61, 168
    %v83 = vadd.s32 %v61, 176
    %v84 = vadd.s32 %v61, 184
    %v85 = vadd.s32 %v61, 192
    %v86 = vadd.s32 %v61, 200
    %v87 = vadd.s32 %v61, 208
    %v88 = vadd.s32 %v61, 216
    %v89 = vadd.s32 %v61, 224
    %v90 = vadd.s32 %v61, 232
    %v91 = vadd.s32 %v61, 240
    %v92 = vadd.s32 %v61, 248
    %vm93 = vcmp.lt.s32.totalorder %v61, 0
    %v94 = vsub.s32 0, %v61
    %v95 = vsel %vm93, %v94, %v61
    %v96 = vshrl.u32 %v95, 4
    %v97 = vand.u32 %v95, 15
    %v98 = vsub.s32 0, %v97
    %v99 = vsel %vm93, %v98, %v97
    %vm100 = vcmp.lt.s32.totalorder %v62, 0
    %v101 = vsub.s32 0, %v62
    %v102 = vsel %vm100, %v101, %v62
    %v103 = vshrl.u32 %v102, 4
    %v104 = vand.u32 %v102, 15
    %v105 = vsub.s32 0, %v104
    %v106 = vsel %vm100, %v105, %v104
    %vm107 = vcmp.lt.s32.totalorder %v63, 0
    %v108 = vsub.s32 0, %v63
    %v109 = vsel %vm107, %v108, %v63
    %v110 = vshrl.u32 %v109, 4
    %v111 = vand.u32 %v109, 15
    %v112 = vsub.s32 0, %v111
    %v113 = vsel %vm107, %v112, %v111
    %vm114 = vcmp.lt.s32.totalorder %v64, 0
    %v115 = vsub.s32 0, %v64
    %v116 = vsel %vm114, %v115, %v64
    %v117 = vshrl.u32 %v116, 4
    %v118 = vand.u32 %v116, 15
    %v119 = vsub.s32 0, %v118
    %v120 = vsel %vm114, %v119, %v118
    %vm121 = vcmp.lt.s32.totalorder %v65, 0
    %v122 = vsub.s32 0, %v65
    %v123 = vsel %vm121, %v122, %v65
    %v124 = vshrl.u32 %v123, 4
    %v125 = vand.u32 %v123, 15
    %v126 = vsub.s32 0, %v125
    %v127 = vsel %vm121, %v126, %v125
    %vm128 = vcmp.lt.s32.totalorder %v66, 0
    %v129 = vsub.s32 0, %v66
    %v130 = vsel %vm128, %v129, %v66
    %v131 = vshrl.u32 %v130, 4
    %v132 = vand.u32 %v130, 15
    %v133 = vsub.s32 0, %v132
    %v134 = vsel %vm128, %v133, %v132
    %vm135 = vcmp.lt.s32.totalorder %v67, 0
    %v136 = vsub.s32 0, %v67
    %v137 = vsel %vm135, %v136, %v67
    %v138 = vshrl.u32 %v137, 4
    %v139 = vand.u32 %v137, 15
    %v140 = vsub.s32 0, %v139
    %v141 = vsel %vm135, %v140, %v139
    %vm142 = vcmp.lt.s32.totalorder %v68, 0
    %v143 = vsub.s32 0, %v68
    %v144 = vsel %vm142, %v143, %v68
    %v145 = vshrl.u32 %v144, 4
    %v146 = vand.u32 %v144, 15
    %v147 = vsub.s32 0, %v146
    %v148 = vsel %vm142, %v147, %v146
    %vm149 = vcmp.lt.s32.totalorder %v69, 0
    %v150 = vsub.s32 0, %v69
    %v151 = vsel %vm149, %v150, %v69
    %v152 = vshrl.u32 %v151, 4
    %v153 = vand.u32 %v151, 15
    %v154 = vsub.s32 0, %v153
    %v155 = vsel %vm149, %v154, %v153
    %vm156 = vcmp.lt.s32.totalorder %v70, 0
    %v157 = vsub.s32 0, %v70
    %v158 = vsel %vm156, %v157, %v70
    %v159 = vshrl.u32 %v158, 4
    %v160 = vand.u32 %v158, 15
    %v161 = vsub.s32 0, %v160
    %v162 = vsel %vm156, %v161, %v160
    %vm163 = vcmp.lt.s32.totalorder %v71, 0
    %v164 = vsub.s32 0, %v71
    %v165 = vsel %vm163, %v164, %v71
    %v166 = vshrl.u32 %v165, 4
    %v167 = vand.u32 %v165, 15
    %v168 = vsub.s32 0, %v167
    %v169 = vsel %vm163, %v168, %v167
    %vm170 = vcmp.lt.s32.totalorder %v72, 0
    %v171 = vsub.s32 0, %v72
    %v172 = vsel %vm170, %v171, %v72
    %v173 = vshrl.u32 %v172, 4
    %v174 = vand.u32 %v172, 15
    %v175 = vsub.s32 0, %v174
    %v176 = vsel %vm170, %v175, %v174
    %vm177 = vcmp.lt.s32.totalorder %v73, 0
    %v178 = vsub.s32 0, %v73
    %v179 = vsel %vm177, %v178, %v73
    %v180 = vshrl.u32 %v179, 4
    %v181 = vand.u32 %v179, 15
    %v182 = vsub.s32 0, %v181
    %v183 = vsel %vm177, %v182, %v181
    %vm184 = vcmp.lt.s32.totalorder %v74, 0
    %v185 = vsub.s32 0, %v74
    %v186 = vsel %vm184, %v185, %v74
    %v187 = vshrl.u32 %v186, 4
    %v188 = vand.u32 %v186, 15
    %v189 = vsub.s32 0, %v188
    %v190 = vsel %vm184, %v189, %v188
    %vm191 = vcmp.lt.s32.totalorder %v75, 0
    %v192 = vsub.s32 0, %v75
    %v193 = vsel %vm191, %v192, %v75
    %v194 = vshrl.u32 %v193, 4
    %v195 = vand.u32 %v193, 15
    %v196 = vsub.s32 0, %v195
    %v197 = vsel %vm191, %v196, %v195
    %vm198 = vcmp.lt.s32.totalorder %v76, 0
    %v199 = vsub.s32 0, %v76
    %v200 = vsel %vm198, %v199, %v76
    %v201 = vshrl.u32 %v200, 4
    %v202 = vand.u32 %v200, 15
    %v203 = vsub.s32 0, %v202
    %v204 = vsel %vm198, %v203, %v202
    %vm205 = vcmp.lt.s32.totalorder %v77, 0
    %v206 = vsub.s32 0, %v77
    %v207 = vsel %vm205, %v206, %v77
    %v208 = vshrl.u32 %v207, 4
    %v209 = vand.u32 %v207, 15
    %v210 = vsub.s32 0, %v209
    %v211 = vsel %vm205, %v210, %v209
    %vm212 = vcmp.lt.s32.totalorder %v78, 0
    %v213 = vsub.s32 0, %v78
    %v214 = vsel %vm212, %v213, %v78
    %v215 = vshrl.u32 %v214, 4
    %v216 = vand.u32 %v214, 15
    %v217 = vsub.s32 0, %v216
    %v218 = vsel %vm212, %v217, %v216
    %vm219 = vcmp.lt.s32.totalorder %v79, 0
    %v220 = vsub.s32 0, %v79
    %v221 = vsel %vm219, %v220, %v79
    %v222 = vshrl.u32 %v221, 4
    %v223 = vand.u32 %v221, 15
    %v224 = vsub.s32 0, %v223
    %v225 = vsel %vm219, %v224, %v223
    %vm226 = vcmp.lt.s32.totalorder %v80, 0
    %v227 = vsub.s32 0, %v80
    %v228 = vsel %vm226, %v227, %v80
    %v229 = vshrl.u32 %v228, 4
    %v230 = vand.u32 %v228, 15
    %v231 = vsub.s32 0, %v230
    %v232 = vsel %vm226, %v231, %v230
    %vm233 = vcmp.lt.s32.totalorder %v81, 0
    %v234 = vsub.s32 0, %v81
    %v235 = vsel %vm233, %v234, %v81
    %v236 = vshrl.u32 %v235, 4
    %v237 = vand.u32 %v235, 15
    %v238 = vsub.s32 0, %v237
    %v239 = vsel %vm233, %v238, %v237
    %vm240 = vcmp.lt.s32.totalorder %v82, 0
    %v241 = vsub.s32 0, %v82
    %v242 = vsel %vm240, %v241, %v82
    %v243 = vshrl.u32 %v242, 4
    %v244 = vand.u32 %v242, 15
    %v245 = vsub.s32 0, %v244
    %v246 = vsel %vm240, %v245, %v244
    %vm247 = vcmp.lt.s32.totalorder %v83, 0
    %v248 = vsub.s32 0, %v83
    %v249 = vsel %vm247, %v248, %v83
    %v250 = vshrl.u32 %v249, 4
    %v251 = vand.u32 %v249, 15
    %v252 = vsub.s32 0, %v251
    %v253 = vsel %vm247, %v252, %v251
    %vm254 = vcmp.lt.s32.totalorder %v84, 0
    %v255 = vsub.s32 0, %v84
    %v256 = vsel %vm254, %v255, %v84
    %v257 = vshrl.u32 %v256, 4
    %v258 = vand.u32 %v256, 15
    %v259 = vsub.s32 0, %v258
    %v260 = vsel %vm254, %v259, %v258
    %vm261 = vcmp.lt.s32.totalorder %v85, 0
    %v262 = vsub.s32 0, %v85
    %v263 = vsel %vm261, %v262, %v85
    %v264 = vshrl.u32 %v263, 4
    %v265 = vand.u32 %v263, 15
    %v266 = vsub.s32 0, %v265
    %v267 = vsel %vm261, %v266, %v265
    %vm268 = vcmp.lt.s32.totalorder %v86, 0
    %v269 = vsub.s32 0, %v86
    %v270 = vsel %vm268, %v269, %v86
    %v271 = vshrl.u32 %v270, 4
    %v272 = vand.u32 %v270, 15
    %v273 = vsub.s32 0, %v272
    %v274 = vsel %vm268, %v273, %v272
    %vm275 = vcmp.lt.s32.totalorder %v87, 0
    %v276 = vsub.s32 0, %v87
    %v277 = vsel %vm275, %v276, %v87
    %v278 = vshrl.u32 %v277, 4
    %v279 = vand.u32 %v277, 15
    %v280 = vsub.s32 0, %v279
    %v281 = vsel %vm275, %v280, %v279
    %vm282 = vcmp.lt.s32.totalorder %v88, 0
    %v283 = vsub.s32 0, %v88
    %v284 = vsel %vm282, %v283, %v88
    %v285 = vshrl.u32 %v284, 4
    %v286 = vand.u32 %v284, 15
    %v287 = vsub.s32 0, %v286
    %v288 = vsel %vm282, %v287, %v286
    %vm289 = vcmp.lt.s32.totalorder %v89, 0
    %v290 = vsub.s32 0, %v89
    %v291 = vsel %vm289, %v290, %v89
    %v292 = vshrl.u32 %v291, 4
    %v293 = vand.u32 %v291, 15
    %v294 = vsub.s32 0, %v293
    %v295 = vsel %vm289, %v294, %v293
    %vm296 = vcmp.lt.s32.totalorder %v90, 0
    %v297 = vsub.s32 0, %v90
    %v298 = vsel %vm296, %v297, %v90
    %v299 = vshrl.u32 %v298, 4
    %v300 = vand.u32 %v298, 15
    %v301 = vsub.s32 0, %v300
    %v302 = vsel %vm296, %v301, %v300
    %vm303 = vcmp.lt.s32.totalorder %v91, 0
    %v304 = vsub.s32 0, %v91
    %v305 = vsel %vm303, %v304, %v91
    %v306 = vshrl.u32 %v305, 4
    %v307 = vand.u32 %v305, 15
    %v308 = vsub.s32 0, %v307
    %v309 = vsel %vm303, %v308, %v307
    %vm310 = vcmp.lt.s32.totalorder %v92, 0
    %v311 = vsub.s32 0, %v92
    %v312 = vsel %vm310, %v311, %v92
    %v313 = vshrl.u32 %v312, 4
    %v314 = vand.u32 %v312, 15
    %v315 = vsub.s32 0, %v314
    %v316 = vsel %vm310, %v315, %v314
    %vm317 = vcmp.ne.s32.totalorder %v99, 0
    %vm318 = vcmp.ne.s32.totalorder %v106, 0
    %vm319 = vcmp.ne.s32.totalorder %v113, 0
    %vm320 = vcmp.ne.s32.totalorder %v120, 0
    %vm321 = vcmp.ne.s32.totalorder %v127, 0
    %vm322 = vcmp.ne.s32.totalorder %v134, 0
    %vm323 = vcmp.ne.s32.totalorder %v141, 0
    %vm324 = vcmp.ne.s32.totalorder %v148, 0
    %vm325 = vcmp.ne.s32.totalorder %v155, 0
    %vm326 = vcmp.ne.s32.totalorder %v162, 0
    %vm327 = vcmp.ne.s32.totalorder %v169, 0
    %vm328 = vcmp.ne.s32.totalorder %v176, 0
    %vm329 = vcmp.ne.s32.totalorder %v183, 0
    %vm330 = vcmp.ne.s32.totalorder %v190, 0
    %vm331 = vcmp.ne.s32.totalorder %v197, 0
    %vm332 = vcmp.ne.s32.totalorder %v204, 0
    %vm333 = vcmp.ne.s32.totalorder %v211, 0
    %vm334 = vcmp.ne.s32.totalorder %v218, 0
    %vm335 = vcmp.ne.s32.totalorder %v225, 0
    %vm336 = vcmp.ne.s32.totalorder %v232, 0
    %vm337 = vcmp.ne.s32.totalorder %v239, 0
    %vm338 = vcmp.ne.s32.totalorder %v246, 0
    %vm339 = vcmp.ne.s32.totalorder %v253, 0
    %vm340 = vcmp.ne.s32.totalorder %v260, 0
    %vm341 = vcmp.ne.s32.totalorder %v267, 0
    %vm342 = vcmp.ne.s32.totalorder %v274, 0
    %vm343 = vcmp.ne.s32.totalorder %v281, 0
    %vm344 = vcmp.ne.s32.totalorder %v288, 0
    %vm345 = vcmp.ne.s32.totalorder %v295, 0
    %vm346 = vcmp.ne.s32.totalorder %v302, 0
    %vm347 = vcmp.ne.s32.totalorder %v309, 0
    %vm348 = vcmp.ne.s32.totalorder %v316, 0
    %vm349 = vcmp.lt.s32.totalorder %v99, 0
    %vm350 = vcmp.lt.s32.totalorder %v106, 0
    %vm351 = vcmp.lt.s32.totalorder %v113, 0
    %vm352 = vcmp.lt.s32.totalorder %v120, 0
    %vm353 = vcmp.lt.s32.totalorder %v127, 0
    %vm354 = vcmp.lt.s32.totalorder %v134, 0
    %vm355 = vcmp.lt.s32.totalorder %v141, 0
    %vm356 = vcmp.lt.s32.totalorder %v148, 0
    %vm357 = vcmp.lt.s32.totalorder %v155, 0
    %vm358 = vcmp.lt.s32.totalorder %v162, 0
    %vm359 = vcmp.lt.s32.totalorder %v169, 0
    %vm360 = vcmp.lt.s32.totalorder %v176, 0
    %vm361 = vcmp.lt.s32.totalorder %v183, 0
    %vm362 = vcmp.lt.s32.totalorder %v190, 0
    %vm363 = vcmp.lt.s32.totalorder %v197, 0
    %vm364 = vcmp.lt.s32.totalorder %v204, 0
    %vm365 = vcmp.lt.s32.totalorder %v211, 0
    %vm366 = vcmp.lt.s32.totalorder %v218, 0
    %vm367 = vcmp.lt.s32.totalorder %v225, 0
    %vm368 = vcmp.lt.s32.totalorder %v232, 0
    %vm369 = vcmp.lt.s32.totalorder %v239, 0
    %vm370 = vcmp.lt.s32.totalorder %v246, 0
    %vm371 = vcmp.lt.s32.totalorder %v253, 0
    %vm372 = vcmp.lt.s32.totalorder %v260, 0
    %vm373 = vcmp.lt.s32.totalorder %v267, 0
    %vm374 = vcmp.lt.s32.totalorder %v274, 0
    %vm375 = vcmp.lt.s32.totalorder %v281, 0
    %vm376 = vcmp.lt.s32.totalorder %v288, 0
    %vm377 = vcmp.lt.s32.totalorder %v295, 0
    %vm378 = vcmp.lt.s32.totalorder %v302, 0
    %vm379 = vcmp.lt.s32.totalorder %v309, 0
    %vm380 = vcmp.lt.s32.totalorder %v316, 0
    %vm381 = vmand %vm349, %vm317
    %vm382 = vmand %vm350, %vm318
    %vm383 = vmand %vm351, %vm319
    %vm384 = vmand %vm352, %vm320
    %vm385 = vmand %vm353, %vm321
    %vm386 = vmand %vm354, %vm322
    %vm387 = vmand %vm355, %vm323
    %vm388 = vmand %vm356, %vm324
    %vm389 = vmand %vm357, %vm325
    %vm390 = vmand %vm358, %vm326
    %vm391 = vmand %vm359, %vm327
    %vm392 = vmand %vm360, %vm328
    %vm393 = vmand %vm361, %vm329
    %vm394 = vmand %vm362, %vm330
    %vm395 = vmand %vm363, %vm331
    %vm396 = vmand %vm364, %vm332
    %vm397 = vmand %vm365, %vm333
    %vm398 = vmand %vm366, %vm334
    %vm399 = vmand %vm367, %vm335
    %vm400 = vmand %vm368, %vm336
    %vm401 = vmand %vm369, %vm337
    %vm402 = vmand %vm370, %vm338
    %vm403 = vmand %vm371, %vm339
    %vm404 = vmand %vm372, %vm340
    %vm405 = vmand %vm373, %vm341
    %vm406 = vmand %vm374, %vm342
    %vm407 = vmand %vm375, %vm343
    %vm408 = vmand %vm376, %vm344
    %vm409 = vmand %vm377, %vm345
    %vm410 = vmand %vm378, %vm346
    %vm411 = vmand %vm379, %vm347
    %vm412 = vmand %vm380, %vm348
    %v413 = vadd.s32 %v99, 16
    %v414 = vadd.s32 %v106, 16
    %v415 = vadd.s32 %v113, 16
    %v416 = vadd.s32 %v120, 16
    %v417 = vadd.s32 %v127, 16
    %v418 = vadd.s32 %v134, 16
    %v419 = vadd.s32 %v141, 16
    %v420 = vadd.s32 %v148, 16
    %v421 = vadd.s32 %v155, 16
    %v422 = vadd.s32 %v162, 16
    %v423 = vadd.s32 %v169, 16
    %v424 = vadd.s32 %v176, 16
    %v425 = vadd.s32 %v183, 16
    %v426 = vadd.s32 %v190, 16
    %v427 = vadd.s32 %v197, 16
    %v428 = vadd.s32 %v204, 16
    %v429 = vadd.s32 %v211, 16
    %v430 = vadd.s32 %v218, 16
    %v431 = vadd.s32 %v225, 16
    %v432 = vadd.s32 %v232, 16
    %v433 = vadd.s32 %v239, 16
    %v434 = vadd.s32 %v246, 16
    %v435 = vadd.s32 %v253, 16
    %v436 = vadd.s32 %v260, 16
    %v437 = vadd.s32 %v267, 16
    %v438 = vadd.s32 %v274, 16
    %v439 = vadd.s32 %v281, 16
    %v440 = vadd.s32 %v288, 16
    %v441 = vadd.s32 %v295, 16
    %v442 = vadd.s32 %v302, 16
    %v443 = vadd.s32 %v309, 16
    %v444 = vadd.s32 %v316, 16
    %v445 = vsel %vm381, %v413, %v99
    %v446 = vsel %vm382, %v414, %v106
    %v447 = vsel %vm383, %v415, %v113
    %v448 = vsel %vm384, %v416, %v120
    %v449 = vsel %vm385, %v417, %v127
    %v450 = vsel %vm386, %v418, %v134
    %v451 = vsel %vm387, %v419, %v141
    %v452 = vsel %vm388, %v420, %v148
    %v453 = vsel %vm389, %v421, %v155
    %v454 = vsel %vm390, %v422, %v162
    %v455 = vsel %vm391, %v423, %v169
    %v456 = vsel %vm392, %v424, %v176
    %v457 = vsel %vm393, %v425, %v183
    %v458 = vsel %vm394, %v426, %v190
    %v459 = vsel %vm395, %v427, %v197
    %v460 = vsel %vm396, %v428, %v204
    %v461 = vsel %vm397, %v429, %v211
    %v462 = vsel %vm398, %v430, %v218
    %v463 = vsel %vm399, %v431, %v225
    %v464 = vsel %vm400, %v432, %v232
    %v465 = vsel %vm401, %v433, %v239
    %v466 = vsel %vm402, %v434, %v246
    %v467 = vsel %vm403, %v435, %v253
    %v468 = vsel %vm404, %v436, %v260
    %v469 = vsel %vm405, %v437, %v267
    %v470 = vsel %vm406, %v438, %v274
    %v471 = vsel %vm407, %v439, %v281
    %v472 = vsel %vm408, %v440, %v288
    %v473 = vsel %vm409, %v441, %v295
    %v474 = vsel %vm410, %v442, %v302
    %v475 = vsel %vm411, %v443, %v309
    %v476 = vsel %vm412, %v444, %v316
    %vm477 = vcmp.ne.s32.totalorder %v445, 0
    %vm478 = vcmp.ne.s32.totalorder %v446, 0
    %vm479 = vcmp.ne.s32.totalorder %v447, 0
    %vm480 = vcmp.ne.s32.totalorder %v448, 0
    %vm481 = vcmp.ne.s32.totalorder %v449, 0
    %vm482 = vcmp.ne.s32.totalorder %v450, 0
    %vm483 = vcmp.ne.s32.totalorder %v451, 0
    %vm484 = vcmp.ne.s32.totalorder %v452, 0
    %vm485 = vcmp.ne.s32.totalorder %v453, 0
    %vm486 = vcmp.ne.s32.totalorder %v454, 0
    %vm487 = vcmp.ne.s32.totalorder %v455, 0
    %vm488 = vcmp.ne.s32.totalorder %v456, 0
    %vm489 = vcmp.ne.s32.totalorder %v457, 0
    %vm490 = vcmp.ne.s32.totalorder %v458, 0
    %vm491 = vcmp.ne.s32.totalorder %v459, 0
    %vm492 = vcmp.ne.s32.totalorder %v460, 0
    %vm493 = vcmp.ne.s32.totalorder %v461, 0
    %vm494 = vcmp.ne.s32.totalorder %v462, 0
    %vm495 = vcmp.ne.s32.totalorder %v463, 0
    %vm496 = vcmp.ne.s32.totalorder %v464, 0
    %vm497 = vcmp.ne.s32.totalorder %v465, 0
    %vm498 = vcmp.ne.s32.totalorder %v466, 0
    %vm499 = vcmp.ne.s32.totalorder %v467, 0
    %vm500 = vcmp.ne.s32.totalorder %v468, 0
    %vm501 = vcmp.ne.s32.totalorder %v469, 0
    %vm502 = vcmp.ne.s32.totalorder %v470, 0
    %vm503 = vcmp.ne.s32.totalorder %v471, 0
    %vm504 = vcmp.ne.s32.totalorder %v472, 0
    %vm505 = vcmp.ne.s32.totalorder %v473, 0
    %vm506 = vcmp.ne.s32.totalorder %v474, 0
    %vm507 = vcmp.ne.s32.totalorder %v475, 0
    %vm508 = vcmp.ne.s32.totalorder %v476, 0
    %v509 = vsel %vm477, 1, 0
    %v510 = vsel %vm478, 1, 0
    %v511 = vsel %vm479, 1, 0
    %v512 = vsel %vm480, 1, 0
    %v513 = vsel %vm481, 1, 0
    %v514 = vsel %vm482, 1, 0
    %v515 = vsel %vm483, 1, 0
    %v516 = vsel %vm484, 1, 0
    %v517 = vsel %vm485, 1, 0
    %v518 = vsel %vm486, 1, 0
    %v519 = vsel %vm487, 1, 0
    %v520 = vsel %vm488, 1, 0
    %v521 = vsel %vm489, 1, 0
    %v522 = vsel %vm490, 1, 0
    %v523 = vsel %vm491, 1, 0
    %v524 = vsel %vm492, 1, 0
    %v525 = vsel %vm493, 1, 0
    %v526 = vsel %vm494, 1, 0
    %v527 = vsel %vm495, 1, 0
    %v528 = vsel %vm496, 1, 0
    %v529 = vsel %vm497, 1, 0
    %v530 = vsel %vm498, 1, 0
    %v531 = vsel %vm499, 1, 0
    %v532 = vsel %vm500, 1, 0
    %v533 = vsel %vm501, 1, 0
    %v534 = vsel %vm502, 1, 0
    %v535 = vsel %vm503, 1, 0
    %v536 = vsel %vm504, 1, 0
    %v537 = vsel %vm505, 1, 0
    %v538 = vsel %vm506, 1, 0
    %v539 = vsel %vm507, 1, 0
    %v540 = vsel %vm508, 1, 0
    %v541 = vcvt.s32.f32 %v509
    %v542 = vcvt.s32.f32 %v510
    %v543 = vcvt.s32.f32 %v511
    %v544 = vcvt.s32.f32 %v512
    %v545 = vcvt.s32.f32 %v513
    %v546 = vcvt.s32.f32 %v514
    %v547 = vcvt.s32.f32 %v515
    %v548 = vcvt.s32.f32 %v516
    %v549 = vcvt.s32.f32 %v517
    %v550 = vcvt.s32.f32 %v518
    %v551 = vcvt.s32.f32 %v519
    %v552 = vcvt.s32.f32 %v520
    %v553 = vcvt.s32.f32 %v521
    %v554 = vcvt.s32.f32 %v522
    %v555 = vcvt.s32.f32 %v523
    %v556 = vcvt.s32.f32 %v524
    %v557 = vcvt.s32.f32 %v525
    %v558 = vcvt.s32.f32 %v526
    %v559 = vcvt.s32.f32 %v527
    %v560 = vcvt.s32.f32 %v528
    %v561 = vcvt.s32.f32 %v529
    %v562 = vcvt.s32.f32 %v530
    %v563 = vcvt.s32.f32 %v531
    %v564 = vcvt.s32.f32 %v532
    %v565 = vcvt.s32.f32 %v533
    %v566 = vcvt.s32.f32 %v534
    %v567 = vcvt.s32.f32 %v535
    %v568 = vcvt.s32.f32 %v536
    %v569 = vcvt.s32.f32 %v537
    %v570 = vcvt.s32.f32 %v538
    %v571 = vcvt.s32.f32 %v539
    %v572 = vcvt.s32.f32 %v540
    %v573 = vpack.c.bf16 %v542, %v541
    %v574 = vpack.c.bf16 %v544, %v543
    %v575 = vpack.c.bf16 %v546, %v545
    %v576 = vpack.c.bf16 %v548, %v547
    %v577 = vpack.c.bf16 %v550, %v549
    %v578 = vpack.c.bf16 %v552, %v551
    %v579 = vpack.c.bf16 %v554, %v553
    %v580 = vpack.c.bf16 %v556, %v555
    %v581 = vpack.c.bf16 %v558, %v557
    %v582 = vpack.c.bf16 %v560, %v559
    %v583 = vpack.c.bf16 %v562, %v561
    %v584 = vpack.c.bf16 %v564, %v563
    %v585 = vpack.c.bf16 %v566, %v565
    %v586 = vpack.c.bf16 %v568, %v567
    %v587 = vpack.c.bf16 %v570, %v569
    %v588 = vpack.c.bf16 %v572, %v571
    %vm589 = vcmp.ne.s32.totalorder %v445, 15
    %vm590 = vcmp.ne.s32.totalorder %v446, 15
    %vm591 = vcmp.ne.s32.totalorder %v447, 15
    %vm592 = vcmp.ne.s32.totalorder %v448, 15
    %vm593 = vcmp.ne.s32.totalorder %v449, 15
    %vm594 = vcmp.ne.s32.totalorder %v450, 15
    %vm595 = vcmp.ne.s32.totalorder %v451, 15
    %vm596 = vcmp.ne.s32.totalorder %v452, 15
    %vm597 = vcmp.ne.s32.totalorder %v453, 15
    %vm598 = vcmp.ne.s32.totalorder %v454, 15
    %vm599 = vcmp.ne.s32.totalorder %v455, 15
    %vm600 = vcmp.ne.s32.totalorder %v456, 15
    %vm601 = vcmp.ne.s32.totalorder %v457, 15
    %vm602 = vcmp.ne.s32.totalorder %v458, 15
    %vm603 = vcmp.ne.s32.totalorder %v459, 15
    %vm604 = vcmp.ne.s32.totalorder %v460, 15
    %vm605 = vcmp.ne.s32.totalorder %v461, 15
    %vm606 = vcmp.ne.s32.totalorder %v462, 15
    %vm607 = vcmp.ne.s32.totalorder %v463, 15
    %vm608 = vcmp.ne.s32.totalorder %v464, 15
    %vm609 = vcmp.ne.s32.totalorder %v465, 15
    %vm610 = vcmp.ne.s32.totalorder %v466, 15
    %vm611 = vcmp.ne.s32.totalorder %v467, 15
    %vm612 = vcmp.ne.s32.totalorder %v468, 15
    %vm613 = vcmp.ne.s32.totalorder %v469, 15
    %vm614 = vcmp.ne.s32.totalorder %v470, 15
    %vm615 = vcmp.ne.s32.totalorder %v471, 15
    %vm616 = vcmp.ne.s32.totalorder %v472, 15
    %vm617 = vcmp.ne.s32.totalorder %v473, 15
    %vm618 = vcmp.ne.s32.totalorder %v474, 15
    %vm619 = vcmp.ne.s32.totalorder %v475, 15
    %vm620 = vcmp.ne.s32.totalorder %v476, 15
    %v621 = vsel %vm589, 1, 0
    %v622 = vsel %vm590, 1, 0
    %v623 = vsel %vm591, 1, 0
    %v624 = vsel %vm592, 1, 0
    %v625 = vsel %vm593, 1, 0
    %v626 = vsel %vm594, 1, 0
    %v627 = vsel %vm595, 1, 0
    %v628 = vsel %vm596, 1, 0
    %v629 = vsel %vm597, 1, 0
    %v630 = vsel %vm598, 1, 0
    %v631 = vsel %vm599, 1, 0
    %v632 = vsel %vm600, 1, 0
    %v633 = vsel %vm601, 1, 0
    %v634 = vsel %vm602, 1, 0
    %v635 = vsel %vm603, 1, 0
    %v636 = vsel %vm604, 1, 0
    %v637 = vsel %vm605, 1, 0
    %v638 = vsel %vm606, 1, 0
    %v639 = vsel %vm607, 1, 0
    %v640 = vsel %vm608, 1, 0
    %v641 = vsel %vm609, 1, 0
    %v642 = vsel %vm610, 1, 0
    %v643 = vsel %vm611, 1, 0
    %v644 = vsel %vm612, 1, 0
    %v645 = vsel %vm613, 1, 0
    %v646 = vsel %vm614, 1, 0
    %v647 = vsel %vm615, 1, 0
    %v648 = vsel %vm616, 1, 0
    %v649 = vsel %vm617, 1, 0
    %v650 = vsel %vm618, 1, 0
    %v651 = vsel %vm619, 1, 0
    %v652 = vsel %vm620, 1, 0
    %v653 = vcvt.s32.f32 %v621
    %v654 = vcvt.s32.f32 %v622
    %v655 = vcvt.s32.f32 %v623
    %v656 = vcvt.s32.f32 %v624
    %v657 = vcvt.s32.f32 %v625
    %v658 = vcvt.s32.f32 %v626
    %v659 = vcvt.s32.f32 %v627
    %v660 = vcvt.s32.f32 %v628
    %v661 = vcvt.s32.f32 %v629
    %v662 = vcvt.s32.f32 %v630
    %v663 = vcvt.s32.f32 %v631
    %v664 = vcvt.s32.f32 %v632
    %v665 = vcvt.s32.f32 %v633
    %v666 = vcvt.s32.f32 %v634
    %v667 = vcvt.s32.f32 %v635
    %v668 = vcvt.s32.f32 %v636
    %v669 = vcvt.s32.f32 %v637
    %v670 = vcvt.s32.f32 %v638
    %v671 = vcvt.s32.f32 %v639
    %v672 = vcvt.s32.f32 %v640
    %v673 = vcvt.s32.f32 %v641
    %v674 = vcvt.s32.f32 %v642
    %v675 = vcvt.s32.f32 %v643
    %v676 = vcvt.s32.f32 %v644
    %v677 = vcvt.s32.f32 %v645
    %v678 = vcvt.s32.f32 %v646
    %v679 = vcvt.s32.f32 %v647
    %v680 = vcvt.s32.f32 %v648
    %v681 = vcvt.s32.f32 %v649
    %v682 = vcvt.s32.f32 %v650
    %v683 = vcvt.s32.f32 %v651
    %v684 = vcvt.s32.f32 %v652
    %v685 = vpack.c.bf16 %v654, %v653
    %v686 = vpack.c.bf16 %v656, %v655
    %v687 = vpack.c.bf16 %v658, %v657
    %v688 = vpack.c.bf16 %v660, %v659
    %v689 = vpack.c.bf16 %v662, %v661
    %v690 = vpack.c.bf16 %v664, %v663
    %v691 = vpack.c.bf16 %v666, %v665
    %v692 = vpack.c.bf16 %v668, %v667
    %v693 = vpack.c.bf16 %v670, %v669
    %v694 = vpack.c.bf16 %v672, %v671
    %v695 = vpack.c.bf16 %v674, %v673
    %v696 = vpack.c.bf16 %v676, %v675
    %v697 = vpack.c.bf16 %v678, %v677
    %v698 = vpack.c.bf16 %v680, %v679
    %v699 = vpack.c.bf16 %v682, %v681
    %v700 = vpack.c.bf16 %v684, %v683
    %701 = vst [vmem:[#allocation2] sm:$0xf] 0
    %702 = vst [vmem:[#allocation2 + $0x4] sm:$0xf] 0
    %703 = vst [vmem:[#allocation2 + $0x88] sm:$0xf] 0
    %704 = vst [vmem:[#allocation2 + $0x8c] sm:$0xf] 0
    %v705 = vld [vmem:[#allocation3] sm:$0xff]
    %v706 = vld [vmem:[#allocation3 + $0x8] sm:$0xff]
    %v707 = vld [vmem:[#allocation3 + $0x10] sm:$0xff]
    %v708 = vld [vmem:[#allocation3 + $0x18] sm:$0xff]
    %v709 = vld [vmem:[#allocation3 + $0x20] sm:$0xff]
    %v710 = vld [vmem:[#allocation3 + $0x28] sm:$0xff]
    %v711 = vld [vmem:[#allocation3 + $0x30] sm:$0xff]
    %v712 = vld [vmem:[#allocation3 + $0x38] sm:$0xff]
    %v713 = vld [vmem:[#allocation3 + $0x40] sm:$0xff]
    %v714 = vld [vmem:[#allocation3 + $0x48] sm:$0xff]
    %v715 = vld [vmem:[#allocation3 + $0x50] sm:$0xff]
    %v716 = vld [vmem:[#allocation3 + $0x58] sm:$0xff]
    %v717 = vld [vmem:[#allocation3 + $0x60] sm:$0xff]
    %v718 = vld [vmem:[#allocation3 + $0x68] sm:$0xff]
    %v719 = vld [vmem:[#allocation3 + $0x70] sm:$0xff]
    %v720 = vld [vmem:[#allocation3 + $0x78] sm:$0xff]
    %v721 = vld [vmem:[#allocation3 + $0x80] sm:$0xff]
    %v722 = vld [vmem:[#allocation3 + $0x88] sm:$0xff]
    %v723 = vld [vmem:[#allocation3 + $0x90] sm:$0xff]
    %v724 = vld [vmem:[#allocation3 + $0x98] sm:$0xff]
    %v725 = vld [vmem:[#allocation3 + $0xa0] sm:$0xff]
    %v726 = vld [vmem:[#allocation3 + $0xa8] sm:$0xff]
    %v727 = vld [vmem:[#allocation3 + $0xb0] sm:$0xff]
    %v728 = vld [vmem:[#allocation3 + $0xb8] sm:$0xff]
    %v729 = vld [vmem:[#allocation3 + $0xc0] sm:$0xff]
    %v730 = vld [vmem:[#allocation3 + $0xc8] sm:$0xff]
    %v731 = vld [vmem:[#allocation3 + $0xd0] sm:$0xff]
    %v732 = vld [vmem:[#allocation3 + $0xd8] sm:$0xff]
    %v733 = vld [vmem:[#allocation3 + $0xe0] sm:$0xff]
    %v734 = vld [vmem:[#allocation3 + $0xe8] sm:$0xff]
    %v735 = vld [vmem:[#allocation3 + $0xf0] sm:$0xff]
    %v736 = vld [vmem:[#allocation3 + $0xf8] sm:$0xff]
    %v737 = vadd.f32 %v705, %v706
    %v738 = vadd.f32 %v737, %v707
    %v739 = vadd.f32 %v738, %v708
    %v740 = vadd.f32 %v739, %v709
    %v741 = vadd.f32 %v740, %v710
    %v742 = vadd.f32 %v741, %v711
    %v743 = vadd.f32 %v742, %v712
    %v744 = vadd.f32 %v743, %v713
    %v745 = vadd.f32 %v744, %v714
    %v746 = vadd.f32 %v745, %v715
    %v747 = vadd.f32 %v746, %v716
    %v748 = vadd.f32 %v747, %v717
    %v749 = vadd.f32 %v748, %v718
    %v750 = vadd.f32 %v749, %v719
    %v751 = vadd.f32 %v750, %v720
    %v752 = vadd.f32 %v751, %v721
    %v753 = vadd.f32 %v752, %v722
    %v754 = vadd.f32 %v753, %v723
    %v755 = vadd.f32 %v754, %v724
    %v756 = vadd.f32 %v755, %v725
    %v757 = vadd.f32 %v756, %v726
    %v758 = vadd.f32 %v757, %v727
    %v759 = vadd.f32 %v758, %v728
    %v760 = vadd.f32 %v759, %v729
    %v761 = vadd.f32 %v760, %v730
    %v762 = vadd.f32 %v761, %v731
    %v763 = vadd.f32 %v762, %v732
    %v764 = vadd.f32 %v763, %v733
    %v765 = vadd.f32 %v764, %v734
    %v766 = vadd.f32 %v765, %v735
    %v767 = vadd.f32 %v766, %v736
    %v768 = vrot.slane %v767, 4
    %v769 = vadd.f32 %v767, %v768
    %v770 = vrot.slane %v769, 2
    %v771 = vadd.f32 %v769, %v770
    %v772 = vrot.slane %v771, 1
    %v773 = vadd.f32 %v771, %v772
    %v774 = vmul.f32 %v773, 0.00390625
    %v775 = vsub.f32 %v705, %v774
    %v776 = vsub.f32 %v706, %v774
    %v777 = vsub.f32 %v707, %v774
    %v778 = vsub.f32 %v708, %v774
    %v779 = vsub.f32 %v709, %v774
    %v780 = vsub.f32 %v710, %v774
    %v781 = vsub.f32 %v711, %v774
    %v782 = vsub.f32 %v712, %v774
    %v783 = vsub.f32 %v713, %v774
    %v784 = vsub.f32 %v714, %v774
    %v785 = vsub.f32 %v715, %v774
    %v786 = vsub.f32 %v716, %v774
    %v787 = vsub.f32 %v717, %v774
    %v788 = vsub.f32 %v718, %v774
    %v789 = vsub.f32 %v719, %v774
    %v790 = vsub.f32 %v720, %v774
    %v791 = vsub.f32 %v721, %v774
    %v792 = vsub.f32 %v722, %v774
    %v793 = vsub.f32 %v723, %v774
    %v794 = vsub.f32 %v724, %v774
    %v795 = vsub.f32 %v725, %v774
    %v796 = vsub.f32 %v726, %v774
    %v797 = vsub.f32 %v727, %v774
    %v798 = vsub.f32 %v728, %v774
    %v799 = vsub.f32 %v729, %v774
    %v800 = vsub.f32 %v730, %v774
    %v801 = vsub.f32 %v731, %v774
    %v802 = vsub.f32 %v732, %v774
    %v803 = vsub.f32 %v733, %v774
    %v804 = vsub.f32 %v734, %v774
    %v805 = vsub.f32 %v735, %v774
    %v806 = vsub.f32 %v736, %v774
    %v807 = vmul.f32 %v775, %v775
    %v808 = vmul.f32 %v776, %v776
    %v809 = vmul.f32 %v777, %v777
    %v810 = vmul.f32 %v778, %v778
    %v811 = vmul.f32 %v779, %v779
    %v812 = vmul.f32 %v780, %v780
    %v813 = vmul.f32 %v781, %v781
    %v814 = vmul.f32 %v782, %v782
    %v815 = vmul.f32 %v783, %v783
    %v816 = vmul.f32 %v784, %v784
    %v817 = vmul.f32 %v785, %v785
    %v818 = vmul.f32 %v786, %v786
    %v819 = vmul.f32 %v787, %v787
    %v820 = vmul.f32 %v788, %v788
    %v821 = vmul.f32 %v789, %v789
    %v822 = vmul.f32 %v790, %v790
    %v823 = vmul.f32 %v791, %v791
    %v824 = vmul.f32 %v792, %v792
    %v825 = vmul.f32 %v793, %v793
    %v826 = vmul.f32 %v794, %v794
    %v827 = vmul.f32 %v795, %v795
    %v828 = vmul.f32 %v796, %v796
    %v829 = vmul.f32 %v797, %v797
    %v830 = vmul.f32 %v798, %v798
    %v831 = vmul.f32 %v799, %v799
    %v832 = vmul.f32 %v800, %v800
    %v833 = vmul.f32 %v801, %v801
    %v834 = vmul.f32 %v802, %v802
    %v835 = vmul.f32 %v803, %v803
    %v836 = vmul.f32 %v804, %v804
    %v837 = vmul.f32 %v805, %v805
    %v838 = vmul.f32 %v806, %v806
    %v839 = vadd.f32 %v807, %v808
    %v840 = vadd.f32 %v839, %v809
    %v841 = vadd.f32 %v840, %v810
    %v842 = vadd.f32 %v841, %v811
    %v843 = vadd.f32 %v842, %v812
    %v844 = vadd.f32 %v843, %v813
    %v845 = vadd.f32 %v844, %v814
    %v846 = vadd.f32 %v845, %v815
    %v847 = vadd.f32 %v846, %v816
    %v848 = vadd.f32 %v847, %v817
    %v849 = vadd.f32 %v848, %v818
    %v850 = vadd.f32 %v849, %v819
    %v851 = vadd.f32 %v850, %v820
    %v852 = vadd.f32 %v851, %v821
    %v853 = vadd.f32 %v852, %v822
    %v854 = vadd.f32 %v853, %v823
    %v855 = vadd.f32 %v854, %v824
    %v856 = vadd.f32 %v855, %v825
    %v857 = vadd.f32 %v856, %v826
    %v858 = vadd.f32 %v857, %v827
    %v859 = vadd.f32 %v858, %v828
    %v860 = vadd.f32 %v859, %v829
    %v861 = vadd.f32 %v860, %v830
    %v862 = vadd.f32 %v861, %v831
    %v863 = vadd.f32 %v862, %v832
    %v864 = vadd.f32 %v863, %v833
    %v865 = vadd.f32 %v864, %v834
    %v866 = vadd.f32 %v865, %v835
    %v867 = vadd.f32 %v866, %v836
    %v868 = vadd.f32 %v867, %v837
    %v869 = vadd.f32 %v868, %v838
    %v870 = vrot.slane %v869, 4
    %v871 = vadd.f32 %v869, %v870
    %v872 = vrot.slane %v871, 2
    %v873 = vadd.f32 %v871, %v872
    %v874 = vrot.slane %v873, 1
    %v875 = vadd.f32 %v873, %v874
    %v876 = vmul.f32 %v875, 0.00390625
    %v877 = vadd.f32 %v876, 1e-05
    %v878 = vrsqrt.pop %v877
    %v879 = vmul.f32 %v775, %v878
    %v880 = vmul.f32 %v776, %v878
    %v881 = vmul.f32 %v777, %v878
    %v882 = vmul.f32 %v778, %v878
    %v883 = vmul.f32 %v779, %v878
    %v884 = vmul.f32 %v780, %v878
    %v885 = vmul.f32 %v781, %v878
    %v886 = vmul.f32 %v782, %v878
    %v887 = vmul.f32 %v783, %v878
    %v888 = vmul.f32 %v784, %v878
    %v889 = vmul.f32 %v785, %v878
    %v890 = vmul.f32 %v786, %v878
    %v891 = vmul.f32 %v787, %v878
    %v892 = vmul.f32 %v788, %v878
    %v893 = vmul.f32 %v789, %v878
    %v894 = vmul.f32 %v790, %v878
    %v895 = vmul.f32 %v791, %v878
    %v896 = vmul.f32 %v792, %v878
    %v897 = vmul.f32 %v793, %v878
    %v898 = vmul.f32 %v794, %v878
    %v899 = vmul.f32 %v795, %v878
    %v900 = vmul.f32 %v796, %v878
    %v901 = vmul.f32 %v797, %v878
    %v902 = vmul.f32 %v798, %v878
    %v903 = vmul.f32 %v799, %v878
    %v904 = vmul.f32 %v800, %v878
    %v905 = vmul.f32 %v801, %v878
    %v906 = vmul.f32 %v802, %v878
    %v907 = vmul.f32 %v803, %v878
    %v908 = vmul.f32 %v804, %v878
    %v909 = vmul.f32 %v805, %v878
    %v910 = vmul.f32 %v806, %v878
    %v911 = vmul.f32 %v879, 0.01
    %v912 = vmul.f32 %v880, 0.01
    %v913 = vmul.f32 %v881, 0.01
    %v914 = vmul.f32 %v882, 0.01
    %v915 = vmul.f32 %v883, 0.01
    %v916 = vmul.f32 %v884, 0.01
    %v917 = vmul.f32 %v885, 0.01
    %v918 = vmul.f32 %v886, 0.01
    %v919 = vmul.f32 %v887, 0.01
    %v920 = vmul.f32 %v888, 0.01
    %v921 = vmul.f32 %v889, 0.01
    %v922 = vmul.f32 %v890, 0.01
    %v923 = vmul.f32 %v891, 0.01
    %v924 = vmul.f32 %v892, 0.01
    %v925 = vmul.f32 %v893, 0.01
    %v926 = vmul.f32 %v894, 0.01
    %v927 = vmul.f32 %v895, 0.01
    %v928 = vmul.f32 %v896, 0.01
    %v929 = vmul.f32 %v897, 0.01
    %v930 = vmul.f32 %v898, 0.01
    %v931 = vmul.f32 %v899, 0.01
    %v932 = vmul.f32 %v900, 0.01
    %v933 = vmul.f32 %v901, 0.01
    %v934 = vmul.f32 %v902, 0.01
    %v935 = vmul.f32 %v903, 0.01
    %v936 = vmul.f32 %v904, 0.01
    %v937 = vmul.f32 %v905, 0.01
    %v938 = vmul.f32 %v906, 0.01
    %v939 = vmul.f32 %v907, 0.01
    %v940 = vmul.f32 %v908, 0.01
    %v941 = vmul.f32 %v909, 0.01
    %v942 = vmul.f32 %v910, 0.01
    %v943 = vmax.f32 %v879, %v911
    %v944 = vmax.f32 %v880, %v912
    %v945 = vmax.f32 %v881, %v913
    %v946 = vmax.f32 %v882, %v914
    %v947 = vmax.f32 %v883, %v915
    %v948 = vmax.f32 %v884, %v916
    %v949 = vmax.f32 %v885, %v917
    %v950 = vmax.f32 %v886, %v918
    %v951 = vmax.f32 %v887, %v919
    %v952 = vmax.f32 %v888, %v920
    %v953 = vmax.f32 %v889, %v921
    %v954 = vmax.f32 %v890, %v922
    %v955 = vmax.f32 %v891, %v923
    %v956 = vmax.f32 %v892, %v924
    %v957 = vmax.f32 %v893, %v925
    %v958 = vmax.f32 %v894, %v926
    %v959 = vmax.f32 %v895, %v927
    %v960 = vmax.f32 %v896, %v928
    %v961 = vmax.f32 %v897, %v929
    %v962 = vmax.f32 %v898, %v930
    %v963 = vmax.f32 %v899, %v931
    %v964 = vmax.f32 %v900, %v932
    %v965 = vmax.f32 %v901, %v933
    %v966 = vmax.f32 %v902, %v934
    %v967 = vmax.f32 %v903, %v935
    %v968 = vmax.f32 %v904, %v936
    %v969 = vmax.f32 %v905, %v937
    %v970 = vmax.f32 %v906, %v938
    %v971 = vmax.f32 %v907, %v939
    %v972 = vmax.f32 %v908, %v940
    %v973 = vmax.f32 %v909, %v941
    %v974 = vmax.f32 %v910, %v942
    %v975 = vpack.c.bf16 %v944, %v943
    %v976 = vpack.c.bf16 %v946, %v945
    %v977 = vpack.c.bf16 %v948, %v947
    %v978 = vpack.c.bf16 %v950, %v949
    %v979 = vpack.c.bf16 %v952, %v951
    %v980 = vpack.c.bf16 %v954, %v953
    %v981 = vpack.c.bf16 %v956, %v955
    %v982 = vpack.c.bf16 %v958, %v957
    %v983 = vpack.c.bf16 %v960, %v959
    %v984 = vpack.c.bf16 %v962, %v961
    %v985 = vpack.c.bf16 %v964, %v963
    %v986 = vpack.c.bf16 %v966, %v965
    %v987 = vpack.c.bf16 %v968, %v967
    %v988 = vpack.c.bf16 %v970, %v969
    %v989 = vpack.c.bf16 %v972, %v971
    %v990 = vpack.c.bf16 %v974, %v973
    %v1007 = vunpack.c.l.b16 %v975
    %v1008 = vunpack.c.h.b16 %v975
    %v1009 = vunpack.c.l.b16 %v976
    %v1010 = vunpack.c.h.b16 %v976
    %v1011 = vunpack.c.l.b16 %v977
    %v1012 = vunpack.c.h.b16 %v977
    %v1013 = vunpack.c.l.b16 %v978
    %v1014 = vunpack.c.h.b16 %v978
    %v1015 = vunpack.c.l.b16 %v979
    %v1016 = vunpack.c.h.b16 %v979
    %v1017 = vunpack.c.l.b16 %v980
    %v1018 = vunpack.c.h.b16 %v980
    %v1019 = vunpack.c.l.b16 %v981
    %v1020 = vunpack.c.h.b16 %v981
    %v1021 = vunpack.c.l.b16 %v982
    %v1022 = vunpack.c.h.b16 %v982
    %v1023 = vunpack.c.l.b16 %v983
    %v1024 = vunpack.c.h.b16 %v983
    %v1025 = vunpack.c.l.b16 %v984
    %v1026 = vunpack.c.h.b16 %v984
    %v1027 = vunpack.c.l.b16 %v985
    %v1028 = vunpack.c.h.b16 %v985
    %v1029 = vunpack.c.l.b16 %v986
    %v1030 = vunpack.c.h.b16 %v986
    %v1031 = vunpack.c.l.b16 %v987
    %v1032 = vunpack.c.h.b16 %v987
    %v1033 = vunpack.c.l.b16 %v988
    %v1034 = vunpack.c.h.b16 %v988
    %v1035 = vunpack.c.l.b16 %v989
    %v1036 = vunpack.c.h.b16 %v989
    %v1037 = vunpack.c.l.b16 %v990
    %v1038 = vunpack.c.h.b16 %v990
    %v1039 = vpack.c.b16 %v1007, %v1007
    %v1040 = vpack.c.b16 %v1008, %v1008
    %v1041 = vpack.c.b16 %v1009, %v1009
    %v1042 = vpack.c.b16 %v1010, %v1010
    %v1043 = vpack.c.b16 %v1011, %v1011
    %v1044 = vpack.c.b16 %v1012, %v1012
    %v1045 = vpack.c.b16 %v1013, %v1013
    %v1046 = vpack.c.b16 %v1014, %v1014
    %v1047 = vpack.c.b16 %v1015, %v1015
    %v1048 = vpack.c.b16 %v1016, %v1016
    %v1049 = vpack.c.b16 %v1017, %v1017
    %v1050 = vpack.c.b16 %v1018, %v1018
    %v1051 = vpack.c.b16 %v1019, %v1019
    %v1052 = vpack.c.b16 %v1020, %v1020
    %v1053 = vpack.c.b16 %v1021, %v1021
    %v1054 = vpack.c.b16 %v1022, %v1022
    %v1055 = vpack.c.b16 %v1023, %v1023
    %v1056 = vpack.c.b16 %v1024, %v1024
    %v1057 = vpack.c.b16 %v1025, %v1025
    %v1058 = vpack.c.b16 %v1026, %v1026
    %v1059 = vpack.c.b16 %v1027, %v1027
    %v1060 = vpack.c.b16 %v1028, %v1028
    %v1061 = vpack.c.b16 %v1029, %v1029
    %v1062 = vpack.c.b16 %v1030, %v1030
    %v1063 = vpack.c.b16 %v1031, %v1031
    %v1064 = vpack.c.b16 %v1032, %v1032
    %v1065 = vpack.c.b16 %v1033, %v1033
    %v1066 = vpack.c.b16 %v1034, %v1034
    %v1067 = vpack.c.b16 %v1035, %v1035
    %v1068 = vpack.c.b16 %v1036, %v1036
    %v1069 = vpack.c.b16 %v1037, %v1037
    %v1070 = vpack.c.b16 %v1038, %v1038
    %1103 = vst [vmem:[#allocation2 + $0x8] sm:$0xf] %v1039
    %1104 = vst [vmem:[#allocation2 + $0xc] sm:$0xf] %v1040
    %1105 = vst [vmem:[#allocation2 + $0x10] sm:$0xf] %v1041
    %1106 = vst [vmem:[#allocation2 + $0x14] sm:$0xf] %v1042
    %1107 = vst [vmem:[#allocation2 + $0x18] sm:$0xf] %v1043
    %1108 = vst [vmem:[#allocation2 + $0x1c] sm:$0xf] %v1044
    %1109 = vst [vmem:[#allocation2 + $0x20] sm:$0xf] %v1045
    %1110 = vst [vmem:[#allocation2 + $0x24] sm:$0xf] %v1046
    %1111 = vst [vmem:[#allocation2 + $0x28] sm:$0xf] %v1047
    %1112 = vst [vmem:[#allocation2 + $0x2c] sm:$0xf] %v1048
    %1113 = vst [vmem:[#allocation2 + $0x30] sm:$0xf] %v1049
    %1114 = vst [vmem:[#allocation2 + $0x34] sm:$0xf] %v1050
    %1115 = vst [vmem:[#allocation2 + $0x38] sm:$0xf] %v1051
    %1116 = vst [vmem:[#allocation2 + $0x3c] sm:$0xf] %v1052
    %1117 = vst [vmem:[#allocation2 + $0x40] sm:$0xf] %v1053
    %1118 = vst [vmem:[#allocation2 + $0x44] sm:$0xf] %v1054
    %1119 = vst [vmem:[#allocation2 + $0x48] sm:$0xf] %v1055
    %1120 = vst [vmem:[#allocation2 + $0x4c] sm:$0xf] %v1056
    %1121 = vst [vmem:[#allocation2 + $0x50] sm:$0xf] %v1057
    %1122 = vst [vmem:[#allocation2 + $0x54] sm:$0xf] %v1058
    %1123 = vst [vmem:[#allocation2 + $0x58] sm:$0xf] %v1059
    %1124 = vst [vmem:[#allocation2 + $0x5c] sm:$0xf] %v1060
    %1125 = vst [vmem:[#allocation2 + $0x60] sm:$0xf] %v1061
    %1126 = vst [vmem:[#allocation2 + $0x64] sm:$0xf] %v1062
    %1127 = vst [vmem:[#allocation2 + $0x68] sm:$0xf] %v1063
    %1128 = vst [vmem:[#allocation2 + $0x6c] sm:$0xf] %v1064
    %1129 = vst [vmem:[#allocation2 + $0x70] sm:$0xf] %v1065
    %1130 = vst [vmem:[#allocation2 + $0x74] sm:$0xf] %v1066
    %1131 = vst [vmem:[#allocation2 + $0x78] sm:$0xf] %v1067
    %1132 = vst [vmem:[#allocation2 + $0x7c] sm:$0xf] %v1068
    %1133 = vst [vmem:[#allocation2 + $0x80] sm:$0xf] %v1069
    %1134 = vst [vmem:[#allocation2 + $0x84] sm:$0xf] %v1070
    %v1135 = vld [vmem:[#allocation2 + $0x4] sm:$0x8]
    %v1136 = vld [vmem:[#allocation2 + $0x8] sm:$0xf]
    %v1137 = vld [vmem:[#allocation2 + $0xc] sm:$0xf]
    %v1138 = vld [vmem:[#allocation2 + $0x10] sm:$0xf]
    %v1139 = vld [vmem:[#allocation2 + $0x14] sm:$0xf]
    %v1140 = vld [vmem:[#allocation2 + $0x18] sm:$0xf]
    %v1141 = vld [vmem:[#allocation2 + $0x1c] sm:$0xf]
    %v1142 = vld [vmem:[#allocation2 + $0x20] sm:$0xf]
    %v1143 = vld [vmem:[#allocation2 + $0x24] sm:$0xf]
    %v1144 = vld [vmem:[#allocation2 + $0x28] sm:$0xf]
    %v1145 = vld [vmem:[#allocation2 + $0x2c] sm:$0xf]
    %v1146 = vld [vmem:[#allocation2 + $0x30] sm:$0xf]
    %v1147 = vld [vmem:[#allocation2 + $0x34] sm:$0xf]
    %v1148 = vld [vmem:[#allocation2 + $0x38] sm:$0xf]
    %v1149 = vld [vmem:[#allocation2 + $0x3c] sm:$0xf]
    %v1150 = vld [vmem:[#allocation2 + $0x40] sm:$0xf]
    %v1151 = vld [vmem:[#allocation2 + $0x44] sm:$0xf]
    %v1152 = vld [vmem:[#allocation2 + $0x48] sm:$0xf]
    %v1153 = vld [vmem:[#allocation2 + $0x4c] sm:$0xf]
    %v1154 = vld [vmem:[#allocation2 + $0x50] sm:$0xf]
    %v1155 = vld [vmem:[#allocation2 + $0x54] sm:$0xf]
    %v1156 = vld [vmem:[#allocation2 + $0x58] sm:$0xf]
    %v1157 = vld [vmem:[#allocation2 + $0x5c] sm:$0xf]
    %v1158 = vld [vmem:[#allocation2 + $0x60] sm:$0xf]
    %v1159 = vld [vmem:[#allocation2 + $0x64] sm:$0xf]
    %v1160 = vld [vmem:[#allocation2 + $0x68] sm:$0xf]
    %v1161 = vld [vmem:[#allocation2 + $0x6c] sm:$0xf]
    %v1162 = vld [vmem:[#allocation2 + $0x70] sm:$0xf]
    %v1163 = vld [vmem:[#allocation2 + $0x74] sm:$0xf]
    %v1164 = vld [vmem:[#allocation2 + $0x78] sm:$0xf]
    %v1165 = vld [vmem:[#allocation2 + $0x7c] sm:$0xf]
    %v1166 = vld [vmem:[#allocation2 + $0x80] sm:$0xf]
    %v1167 = vld [vmem:[#allocation2 + $0x84] sm:$0xf]
    %v1185 = vunpack.c.l.s4 839922192
    %v1186 = vunpack.c.0.s8 %v1185
    %v1187 = vlaneseq
    %v1188 = vshrl.u32 %v1187, 7
    %v1189 = vsub.s32 %v1186, %v1188
    %v1190 = vrot.slane %v573, %v1189
    %v1192 = vunpack.c.l.s4 1985246804
    %v1193 = vunpack.c.0.s8 %v1192
    %v1194 = vlaneseq
    %v1195 = vshrl.u32 %v1194, 7
    %v1196 = vsub.s32 %v1193, %v1195
    %v1197 = vrot.slane %v573, %v1196
    %v1199 = vunpack.c.l.s4 839922192
    %v1200 = vunpack.c.0.s8 %v1199
    %v1201 = vlaneseq
    %v1202 = vshrl.u32 %v1201, 7
    %v1203 = vsub.s32 %v1200, %v1202
    %v1204 = vrot.slane %v574, %v1203
    %v1206 = vunpack.c.l.s4 1985246804
    %v1207 = vunpack.c.0.s8 %v1206
    %v1208 = vlaneseq
    %v1209 = vshrl.u32 %v1208, 7
    %v1210 = vsub.s32 %v1207, %v1209
    %v1211 = vrot.slane %v574, %v1210
    %v1213 = vunpack.c.l.s4 839922192
    %v1214 = vunpack.c.0.s8 %v1213
    %v1215 = vlaneseq
    %v1216 = vshrl.u32 %v1215, 7
    %v1217 = vsub.s32 %v1214, %v1216
    %v1218 = vrot.slane %v575, %v1217
    %v1220 = vunpack.c.l.s4 1985246804
    %v1221 = vunpack.c.0.s8 %v1220
    %v1222 = vlaneseq
    %v1223 = vshrl.u32 %v1222, 7
    %v1224 = vsub.s32 %v1221, %v1223
    %v1225 = vrot.slane %v575, %v1224
    %v1227 = vunpack.c.l.s4 839922192
    %v1228 = vunpack.c.0.s8 %v1227
    %v1229 = vlaneseq
    %v1230 = vshrl.u32 %v1229, 7
    %v1231 = vsub.s32 %v1228, %v1230
    %v1232 = vrot.slane %v576, %v1231
    %v1234 = vunpack.c.l.s4 1985246804
    %v1235 = vunpack.c.0.s8 %v1234
    %v1236 = vlaneseq
    %v1237 = vshrl.u32 %v1236, 7
    %v1238 = vsub.s32 %v1235, %v1237
    %v1239 = vrot.slane %v576, %v1238
    %v1241 = vunpack.c.l.s4 839922192
    %v1242 = vunpack.c.0.s8 %v1241
    %v1243 = vlaneseq
    %v1244 = vshrl.u32 %v1243, 7
    %v1245 = vsub.s32 %v1242, %v1244
    %v1246 = vrot.slane %v577, %v1245
    %v1248 = vunpack.c.l.s4 1985246804
    %v1249 = vunpack.c.0.s8 %v1248
    %v1250 = vlaneseq
    %v1251 = vshrl.u32 %v1250, 7
    %v1252 = vsub.s32 %v1249, %v1251
    %v1253 = vrot.slane %v577, %v1252
    %v1255 = vunpack.c.l.s4 839922192
    %v1256 = vunpack.c.0.s8 %v1255
    %v1257 = vlaneseq
    %v1258 = vshrl.u32 %v1257, 7
    %v1259 = vsub.s32 %v1256, %v1258
    %v1260 = vrot.slane %v578, %v1259
    %v1262 = vunpack.c.l.s4 1985246804
    %v1263 = vunpack.c.0.s8 %v1262
    %v1264 = vlaneseq
    %v1265 = vshrl.u32 %v1264, 7
    %v1266 = vsub.s32 %v1263, %v1265
    %v1267 = vrot.slane %v578, %v1266
    %v1269 = vunpack.c.l.s4 839922192
    %v1270 = vunpack.c.0.s8 %v1269
    %v1271 = vlaneseq
    %v1272 = vshrl.u32 %v1271, 7
    %v1273 = vsub.s32 %v1270, %v1272
    %v1274 = vrot.slane %v579, %v1273
    %v1276 = vunpack.c.l.s4 1985246804
    %v1277 = vunpack.c.0.s8 %v1276
    %v1278 = vlaneseq
    %v1279 = vshrl.u32 %v1278, 7
    %v1280 = vsub.s32 %v1277, %v1279
    %v1281 = vrot.slane %v579, %v1280
    %v1283 = vunpack.c.l.s4 839922192
    %v1284 = vunpack.c.0.s8 %v1283
    %v1285 = vlaneseq
    %v1286 = vshrl.u32 %v1285, 7
    %v1287 = vsub.s32 %v1284, %v1286
    %v1288 = vrot.slane %v580, %v1287
    %v1290 = vunpack.c.l.s4 1985246804
    %v1291 = vunpack.c.0.s8 %v1290
    %v1292 = vlaneseq
    %v1293 = vshrl.u32 %v1292, 7
    %v1294 = vsub.s32 %v1291, %v1293
    %v1295 = vrot.slane %v580, %v1294
    %v1297 = vunpack.c.l.s4 839922192
    %v1298 = vunpack.c.0.s8 %v1297
    %v1299 = vlaneseq
    %v1300 = vshrl.u32 %v1299, 7
    %v1301 = vsub.s32 %v1298, %v1300
    %v1302 = vrot.slane %v581, %v1301
    %v1304 = vunpack.c.l.s4 1985246804
    %v1305 = vunpack.c.0.s8 %v1304
    %v1306 = vlaneseq
    %v1307 = vshrl.u32 %v1306, 7
    %v1308 = vsub.s32 %v1305, %v1307
    %v1309 = vrot.slane %v581, %v1308
    %v1311 = vunpack.c.l.s4 839922192
    %v1312 = vunpack.c.0.s8 %v1311
    %v1313 = vlaneseq
    %v1314 = vshrl.u32 %v1313, 7
    %v1315 = vsub.s32 %v1312, %v1314
    %v1316 = vrot.slane %v582, %v1315
    %v1318 = vunpack.c.l.s4 1985246804
    %v1319 = vunpack.c.0.s8 %v1318
    %v1320 = vlaneseq
    %v1321 = vshrl.u32 %v1320, 7
    %v1322 = vsub.s32 %v1319, %v1321
    %v1323 = vrot.slane %v582, %v1322
    %v1325 = vunpack.c.l.s4 839922192
    %v1326 = vunpack.c.0.s8 %v1325
    %v1327 = vlaneseq
    %v1328 = vshrl.u32 %v1327, 7
    %v1329 = vsub.s32 %v1326, %v1328
    %v1330 = vrot.slane %v583, %v1329
    %v1332 = vunpack.c.l.s4 1985246804
    %v1333 = vunpack.c.0.s8 %v1332
    %v1334 = vlaneseq
    %v1335 = vshrl.u32 %v1334, 7
    %v1336 = vsub.s32 %v1333, %v1335
    %v1337 = vrot.slane %v583, %v1336
    %v1339 = vunpack.c.l.s4 839922192
    %v1340 = vunpack.c.0.s8 %v1339
    %v1341 = vlaneseq
    %v1342 = vshrl.u32 %v1341, 7
    %v1343 = vsub.s32 %v1340, %v1342
    %v1344 = vrot.slane %v584, %v1343
    %v1346 = vunpack.c.l.s4 1985246804
    %v1347 = vunpack.c.0.s8 %v1346
    %v1348 = vlaneseq
    %v1349 = vshrl.u32 %v1348, 7
    %v1350 = vsub.s32 %v1347, %v1349
    %v1351 = vrot.slane %v584, %v1350
    %v1353 = vunpack.c.l.s4 839922192
    %v1354 = vunpack.c.0.s8 %v1353
    %v1355 = vlaneseq
    %v1356 = vshrl.u32 %v1355, 7
    %v1357 = vsub.s32 %v1354, %v1356
    %v1358 = vrot.slane %v585, %v1357
    %v1360 = vunpack.c.l.s4 1985246804
    %v1361 = vunpack.c.0.s8 %v1360
    %v1362 = vlaneseq
    %v1363 = vshrl.u32 %v1362, 7
    %v1364 = vsub.s32 %v1361, %v1363
    %v1365 = vrot.slane %v585, %v1364
    %v1367 = vunpack.c.l.s4 839922192
    %v1368 = vunpack.c.0.s8 %v1367
    %v1369 = vlaneseq
    %v1370 = vshrl.u32 %v1369, 7
    %v1371 = vsub.s32 %v1368, %v1370
    %v1372 = vrot.slane %v586, %v1371
    %v1374 = vunpack.c.l.s4 1985246804
    %v1375 = vunpack.c.0.s8 %v1374
    %v1376 = vlaneseq
    %v1377 = vshrl.u32 %v1376, 7
    %v1378 = vsub.s32 %v1375, %v1377
    %v1379 = vrot.slane %v586, %v1378
    %v1381 = vunpack.c.l.s4 839922192
    %v1382 = vunpack.c.0.s8 %v1381
    %v1383 = vlaneseq
    %v1384 = vshrl.u32 %v1383, 7
    %v1385 = vsub.s32 %v1382, %v1384
    %v1386 = vrot.slane %v587, %v1385
    %v1388 = vunpack.c.l.s4 1985246804
    %v1389 = vunpack.c.0.s8 %v1388
    %v1390 = vlaneseq
    %v1391 = vshrl.u32 %v1390, 7
    %v1392 = vsub.s32 %v1389, %v1391
    %v1393 = vrot.slane %v587, %v1392
    %v1395 = vunpack.c.l.s4 839922192
    %v1396 = vunpack.c.0.s8 %v1395
    %v1397 = vlaneseq
    %v1398 = vshrl.u32 %v1397, 7
    %v1399 = vsub.s32 %v1396, %v1398
    %v1400 = vrot.slane %v588, %v1399
    %v1402 = vunpack.c.l.s4 1985246804
    %v1403 = vunpack.c.0.s8 %v1402
    %v1404 = vlaneseq
    %v1405 = vshrl.u32 %v1404, 7
    %v1406 = vsub.s32 %v1403, %v1405
    %v1407 = vrot.slane %v588, %v1406
    %vm1408 = vsmask.f32 3328
    %vm1409 = vsmask.f32 7440
    %vm1410 = vmor %vm1408, %vm1409
    %v1412 = vshll.u32 %v1190, 16
    %v1414 = vrot.slane %v1412, 5
    %v1415 = vshrl.u32 %v1190, 16
    %v1417 = vrot.slane %v1415, 4
    %v1418 = vor.u32 %v1417, %v1414
    %v1419 = vrot.slane %v1418, 4
    %v1421 = vshll.u32 %v1197, 16
    %v1423 = vrot.slane %v1421, 5
    %v1424 = vsel %vm1410, %v1419, %v1423
    %v1425 = vshrl.u32 %v1197, 16
    %v1427 = vrot.slane %v1425, 4
    %v1428 = vor.u32 %v1427, %v1423
    %v1429 = vrot.slane %v1428, 4
    %v1431 = vshll.u32 %v1204, 16
    %v1433 = vrot.slane %v1431, 5
    %v1434 = vsel %vm1410, %v1429, %v1433
    %v1435 = vshrl.u32 %v1204, 16
    %v1437 = vrot.slane %v1435, 4
    %v1438 = vor.u32 %v1437, %v1433
    %v1439 = vrot.slane %v1438, 4
    %v1441 = vshll.u32 %v1211, 16
    %v1443 = vrot.slane %v1441, 5
    %v1444 = vsel %vm1410, %v1439, %v1443
    %v1445 = vshrl.u32 %v1211, 16
    %v1447 = vrot.slane %v1445, 4
    %v1448 = vor.u32 %v1447, %v1443
    %v1449 = vrot.slane %v1448, 4
    %v1451 = vshll.u32 %v1218, 16
    %v1453 = vrot.slane %v1451, 5
    %v1454 = vsel %vm1410, %v1449, %v1453
    %v1455 = vshrl.u32 %v1218, 16
    %v1457 = vrot.slane %v1455, 4
    %v1458 = vor.u32 %v1457, %v1453
    %v1459 = vrot.slane %v1458, 4
    %v1461 = vshll.u32 %v1225, 16
    %v1463 = vrot.slane %v1461, 5
    %v1464 = vsel %vm1410, %v1459, %v1463
    %v1465 = vshrl.u32 %v1225, 16
    %v1467 = vrot.slane %v1465, 4
    %v1468 = vor.u32 %v1467, %v1463
    %v1469 = vrot.slane %v1468, 4
    %v1471 = vshll.u32 %v1232, 16
    %v1473 = vrot.slane %v1471, 5
    %v1474 = vsel %vm1410, %v1469, %v1473
    %v1475 = vshrl.u32 %v1232, 16
    %v1477 = vrot.slane %v1475, 4
    %v1478 = vor.u32 %v1477, %v1473
    %v1479 = vrot.slane %v1478, 4
    %v1481 = vshll.u32 %v1239, 16
    %v1483 = vrot.slane %v1481, 5
    %v1484 = vsel %vm1410, %v1479, %v1483
    %v1485 = vshrl.u32 %v1239, 16
    %v1487 = vrot.slane %v1485, 4
    %v1488 = vor.u32 %v1487, %v1483
    %v1489 = vrot.slane %v1488, 4
    %v1491 = vshll.u32 %v1246, 16
    %v1493 = vrot.slane %v1491, 5
    %v1494 = vsel %vm1410, %v1489, %v1493
    %v1495 = vshrl.u32 %v1246, 16
    %v1497 = vrot.slane %v1495, 4
    %v1498 = vor.u32 %v1497, %v1493
    %v1499 = vrot.slane %v1498, 4
    %v1501 = vshll.u32 %v1253, 16
    %v1503 = vrot.slane %v1501, 5
    %v1504 = vsel %vm1410, %v1499, %v1503
    %v1505 = vshrl.u32 %v1253, 16
    %v1507 = vrot.slane %v1505, 4
    %v1508 = vor.u32 %v1507, %v1503
    %v1509 = vrot.slane %v1508, 4
    %v1511 = vshll.u32 %v1260, 16
    %v1513 = vrot.slane %v1511, 5
    %v1514 = vsel %vm1410, %v1509, %v1513
    %v1515 = vshrl.u32 %v1260, 16
    %v1517 = vrot.slane %v1515, 4
    %v1518 = vor.u32 %v1517, %v1513
    %v1519 = vrot.slane %v1518, 4
    %v1521 = vshll.u32 %v1267, 16
    %v1523 = vrot.slane %v1521, 5
    %v1524 = vsel %vm1410, %v1519, %v1523
    %v1525 = vshrl.u32 %v1267, 16
    %v1527 = vrot.slane %v1525, 4
    %v1528 = vor.u32 %v1527, %v1523
    %v1529 = vrot.slane %v1528, 4
    %v1531 = vshll.u32 %v1274, 16
    %v1533 = vrot.slane %v1531, 5
    %v1534 = vsel %vm1410, %v1529, %v1533
    %v1535 = vshrl.u32 %v1274, 16
    %v1537 = vrot.slane %v1535, 4
    %v1538 = vor.u32 %v1537, %v1533
    %v1539 = vrot.slane %v1538, 4
    %v1541 = vshll.u32 %v1281, 16
    %v1543 = vrot.slane %v1541, 5
    %v1544 = vsel %vm1410, %v1539, %v1543
    %v1545 = vshrl.u32 %v1281, 16
    %v1547 = vrot.slane %v1545, 4
    %v1548 = vor.u32 %v1547, %v1543
    %v1549 = vrot.slane %v1548, 4
    %v1551 = vshll.u32 %v1288, 16
    %v1553 = vrot.slane %v1551, 5
    %v1554 = vsel %vm1410, %v1549, %v1553
    %v1555 = vshrl.u32 %v1288, 16
    %v1557 = vrot.slane %v1555, 4
    %v1558 = vor.u32 %v1557, %v1553
    %v1559 = vrot.slane %v1558, 4
    %v1561 = vshll.u32 %v1295, 16
    %v1563 = vrot.slane %v1561, 5
    %v1564 = vsel %vm1410, %v1559, %v1563
    %v1565 = vshrl.u32 %v1295, 16
    %v1567 = vrot.slane %v1565, 4
    %v1568 = vor.u32 %v1567, %v1563
    %v1569 = vrot.slane %v1568, 4
    %v1571 = vshll.u32 %v1302, 16
    %v1573 = vrot.slane %v1571, 5
    %v1574 = vsel %vm1410, %v1569, %v1573
    %v1575 = vshrl.u32 %v1302, 16
    %v1577 = vrot.slane %v1575, 4
    %v1578 = vor.u32 %v1577, %v1573
    %v1579 = vrot.slane %v1578, 4
    %v1581 = vshll.u32 %v1309, 16
    %v1583 = vrot.slane %v1581, 5
    %v1584 = vsel %vm1410, %v1579, %v1583
    %v1585 = vshrl.u32 %v1309, 16
    %v1587 = vrot.slane %v1585, 4
    %v1588 = vor.u32 %v1587, %v1583
    %v1589 = vrot.slane %v1588, 4
    %v1591 = vshll.u32 %v1316, 16
    %v1593 = vrot.slane %v1591, 5
    %v1594 = vsel %vm1410, %v1589, %v1593
    %v1595 = vshrl.u32 %v1316, 16
    %v1597 = vrot.slane %v1595, 4
    %v1598 = vor.u32 %v1597, %v1593
    %v1599 = vrot.slane %v1598, 4
    %v1601 = vshll.u32 %v1323, 16
    %v1603 = vrot.slane %v1601, 5
    %v1604 = vsel %vm1410, %v1599, %v1603
    %v1605 = vshrl.u32 %v1323, 16
    %v1607 = vrot.slane %v1605, 4
    %v1608 = vor.u32 %v1607, %v1603
    %v1609 = vrot.slane %v1608, 4
    %v1611 = vshll.u32 %v1330, 16
    %v1613 = vrot.slane %v1611, 5
    %v1614 = vsel %vm1410, %v1609, %v1613
    %v1615 = vshrl.u32 %v1330, 16
    %v1617 = vrot.slane %v1615, 4
    %v1618 = vor.u32 %v1617, %v1613
    %v1619 = vrot.slane %v1618, 4
    %v1621 = vshll.u32 %v1337, 16
    %v1623 = vrot.slane %v1621, 5
    %v1624 = vsel %vm1410, %v1619, %v1623
    %v1625 = vshrl.u32 %v1337, 16
    %v1627 = vrot.slane %v1625, 4
    %v1628 = vor.u32 %v1627, %v1623
    %v1629 = vrot.slane %v1628, 4
    %v1631 = vshll.u32 %v1344, 16
    %v1633 = vrot.slane %v1631, 5
    %v1634 = vsel %vm1410, %v1629, %v1633
    %v1635 = vshrl.u32 %v1344, 16
    %v1637 = vrot.slane %v1635, 4
    %v1638 = vor.u32 %v1637, %v1633
    %v1639 = vrot.slane %v1638, 4
    %v1641 = vshll.u32 %v1351, 16
    %v1643 = vrot.slane %v1641, 5
    %v1644 = vsel %vm1410, %v1639, %v1643
    %v1645 = vshrl.u32 %v1351, 16
    %v1647 = vrot.slane %v1645, 4
    %v1648 = vor.u32 %v1647, %v1643
    %v1649 = vrot.slane %v1648, 4
    %v1651 = vshll.u32 %v1358, 16
    %v1653 = vrot.slane %v1651, 5
    %v1654 = vsel %vm1410, %v1649, %v1653
    %v1655 = vshrl.u32 %v1358, 16
    %v1657 = vrot.slane %v1655, 4
    %v1658 = vor.u32 %v1657, %v1653
    %v1659 = vrot.slane %v1658, 4
    %v1661 = vshll.u32 %v1365, 16
    %v1663 = vrot.slane %v1661, 5
    %v1664 = vsel %vm1410, %v1659, %v1663
    %v1665 = vshrl.u32 %v1365, 16
    %v1667 = vrot.slane %v1665, 4
    %v1668 = vor.u32 %v1667, %v1663
    %v1669 = vrot.slane %v1668, 4
    %v1671 = vshll.u32 %v1372, 16
    %v1673 = vrot.slane %v1671, 5
    %v1674 = vsel %vm1410, %v1669, %v1673
    %v1675 = vshrl.u32 %v1372, 16
    %v1677 = vrot.slane %v1675, 4
    %v1678 = vor.u32 %v1677, %v1673
    %v1679 = vrot.slane %v1678, 4
    %v1681 = vshll.u32 %v1379, 16
    %v1683 = vrot.slane %v1681, 5
    %v1684 = vsel %vm1410, %v1679, %v1683
    %v1685 = vshrl.u32 %v1379, 16
    %v1687 = vrot.slane %v1685, 4
    %v1688 = vor.u32 %v1687, %v1683
    %v1689 = vrot.slane %v1688, 4
    %v1691 = vshll.u32 %v1386, 16
    %v1693 = vrot.slane %v1691, 5
    %v1694 = vsel %vm1410, %v1689, %v1693
    %v1695 = vshrl.u32 %v1386, 16
    %v1697 = vrot.slane %v1695, 4
    %v1698 = vor.u32 %v1697, %v1693
    %v1699 = vrot.slane %v1698, 4
    %v1701 = vshll.u32 %v1393, 16
    %v1703 = vrot.slane %v1701, 5
    %v1704 = vsel %vm1410, %v1699, %v1703
    %v1705 = vshrl.u32 %v1393, 16
    %v1707 = vrot.slane %v1705, 4
    %v1708 = vor.u32 %v1707, %v1703
    %v1709 = vrot.slane %v1708, 4
    %v1711 = vshll.u32 %v1400, 16
    %v1713 = vrot.slane %v1711, 5
    %v1714 = vsel %vm1410, %v1709, %v1713
    %v1715 = vshrl.u32 %v1400, 16
    %v1717 = vrot.slane %v1715, 4
    %v1718 = vor.u32 %v1717, %v1713
    %v1719 = vrot.slane %v1718, 4
    %v1721 = vshll.u32 %v1407, 16
    %v1723 = vrot.slane %v1721, 5
    %v1724 = vsel %vm1410, %v1719, %v1723
    %v1725 = vshrl.u32 %v1407, 16
    %v1727 = vrot.slane %v1725, 4
    %v1728 = vor.u32 %v1727, %v1723
    %v1729 = vrot.slane %v1728, 4
    %v1763 = vmul.bf16 %v1135, %v1414
    %v1764 = vmul.bf16 %v1136, %v1424
    %v1765 = vmul.bf16 %v1137, %v1434
    %v1766 = vmul.bf16 %v1138, %v1444
    %v1767 = vmul.bf16 %v1139, %v1454
    %v1768 = vmul.bf16 %v1140, %v1464
    %v1769 = vmul.bf16 %v1141, %v1474
    %v1770 = vmul.bf16 %v1142, %v1484
    %v1771 = vmul.bf16 %v1143, %v1494
    %v1772 = vmul.bf16 %v1144, %v1504
    %v1773 = vmul.bf16 %v1145, %v1514
    %v1774 = vmul.bf16 %v1146, %v1524
    %v1775 = vmul.bf16 %v1147, %v1534
    %v1776 = vmul.bf16 %v1148, %v1544
    %v1777 = vmul.bf16 %v1149, %v1554
    %v1778 = vmul.bf16 %v1150, %v1564
    %v1779 = vmul.bf16 %v1151, %v1574
    %v1780 = vmul.bf16 %v1152, %v1584
    %v1781 = vmul.bf16 %v1153, %v1594
    %v1782 = vmul.bf16 %v1154, %v1604
    %v1783 = vmul.bf16 %v1155, %v1614
    %v1784 = vmul.bf16 %v1156, %v1624
    %v1785 = vmul.bf16 %v1157, %v1634
    %v1786 = vmul.bf16 %v1158, %v1644
    %v1787 = vmul.bf16 %v1159, %v1654
    %v1788 = vmul.bf16 %v1160, %v1664
    %v1789 = vmul.bf16 %v1161, %v1674
    %v1790 = vmul.bf16 %v1162, %v1684
    %v1791 = vmul.bf16 %v1163, %v1694
    %v1792 = vmul.bf16 %v1164, %v1704
    %v1793 = vmul.bf16 %v1165, %v1714
    %v1794 = vmul.bf16 %v1166, %v1724
    %v1795 = vmul.bf16 %v1167, %v1729
    %v1796 = vld [vmem:[#allocation2 + $0x88] sm:$0x1]
    %v1814 = vunpack.c.l.s4 839922192
    %v1815 = vunpack.c.0.s8 %v1814
    %v1816 = vlaneseq
    %v1817 = vshrl.u32 %v1816, 7
    %v1818 = vsub.s32 %v1815, %v1817
    %v1819 = vrot.slane %v685, %v1818
    %v1821 = vunpack.c.l.s4 1985246804
    %v1822 = vunpack.c.0.s8 %v1821
    %v1823 = vlaneseq
    %v1824 = vshrl.u32 %v1823, 7
    %v1825 = vsub.s32 %v1822, %v1824
    %v1826 = vrot.slane %v685, %v1825
    %v1828 = vunpack.c.l.s4 839922192
    %v1829 = vunpack.c.0.s8 %v1828
    %v1830 = vlaneseq
    %v1831 = vshrl.u32 %v1830, 7
    %v1832 = vsub.s32 %v1829, %v1831
    %v1833 = vrot.slane %v686, %v1832
    %v1835 = vunpack.c.l.s4 1985246804
    %v1836 = vunpack.c.0.s8 %v1835
    %v1837 = vlaneseq
    %v1838 = vshrl.u32 %v1837, 7
    %v1839 = vsub.s32 %v1836, %v1838
    %v1840 = vrot.slane %v686, %v1839
    %v1842 = vunpack.c.l.s4 839922192
    %v1843 = vunpack.c.0.s8 %v1842
    %v1844 = vlaneseq
    %v1845 = vshrl.u32 %v1844, 7
    %v1846 = vsub.s32 %v1843, %v1845
    %v1847 = vrot.slane %v687, %v1846
    %v1849 = vunpack.c.l.s4 1985246804
    %v1850 = vunpack.c.0.s8 %v1849
    %v1851 = vlaneseq
    %v1852 = vshrl.u32 %v1851, 7
    %v1853 = vsub.s32 %v1850, %v1852
    %v1854 = vrot.slane %v687, %v1853
    %v1856 = vunpack.c.l.s4 839922192
    %v1857 = vunpack.c.0.s8 %v1856
    %v1858 = vlaneseq
    %v1859 = vshrl.u32 %v1858, 7
    %v1860 = vsub.s32 %v1857, %v1859
    %v1861 = vrot.slane %v688, %v1860
    %v1863 = vunpack.c.l.s4 1985246804
    %v1864 = vunpack.c.0.s8 %v1863
    %v1865 = vlaneseq
    %v1866 = vshrl.u32 %v1865, 7
    %v1867 = vsub.s32 %v1864, %v1866
    %v1868 = vrot.slane %v688, %v1867
    %v1870 = vunpack.c.l.s4 839922192
    %v1871 = vunpack.c.0.s8 %v1870
    %v1872 = vlaneseq
    %v1873 = vshrl.u32 %v1872, 7
    %v1874 = vsub.s32 %v1871, %v1873
    %v1875 = vrot.slane %v689, %v1874
    %v1877 = vunpack.c.l.s4 1985246804
    %v1878 = vunpack.c.0.s8 %v1877
    %v1879 = vlaneseq
    %v1880 = vshrl.u32 %v1879, 7
    %v1881 = vsub.s32 %v1878, %v1880
    %v1882 = vrot.slane %v689, %v1881
    %v1884 = vunpack.c.l.s4 839922192
    %v1885 = vunpack.c.0.s8 %v1884
    %v1886 = vlaneseq
    %v1887 = vshrl.u32 %v1886, 7
    %v1888 = vsub.s32 %v1885, %v1887
    %v1889 = vrot.slane %v690, %v1888
    %v1891 = vunpack.c.l.s4 1985246804
    %v1892 = vunpack.c.0.s8 %v1891
    %v1893 = vlaneseq
    %v1894 = vshrl.u32 %v1893, 7
    %v1895 = vsub.s32 %v1892, %v1894
    %v1896 = vrot.slane %v690, %v1895
    %v1898 = vunpack.c.l.s4 839922192
    %v1899 = vunpack.c.0.s8 %v1898
    %v1900 = vlaneseq
    %v1901 = vshrl.u32 %v1900, 7
    %v1902 = vsub.s32 %v1899, %v1901
    %v1903 = vrot.slane %v691, %v1902
    %v1905 = vunpack.c.l.s4 1985246804
    %v1906 = vunpack.c.0.s8 %v1905
    %v1907 = vlaneseq
    %v1908 = vshrl.u32 %v1907, 7
    %v1909 = vsub.s32 %v1906, %v1908
    %v1910 = vrot.slane %v691, %v1909
    %v1912 = vunpack.c.l.s4 839922192
    %v1913 = vunpack.c.0.s8 %v1912
    %v1914 = vlaneseq
    %v1915 = vshrl.u32 %v1914, 7
    %v1916 = vsub.s32 %v1913, %v1915
    %v1917 = vrot.slane %v692, %v1916
    %v1919 = vunpack.c.l.s4 1985246804
    %v1920 = vunpack.c.0.s8 %v1919
    %v1921 = vlaneseq
    %v1922 = vshrl.u32 %v1921, 7
    %v1923 = vsub.s32 %v1920, %v1922
    %v1924 = vrot.slane %v692, %v1923
    %v1926 = vunpack.c.l.s4 839922192
    %v1927 = vunpack.c.0.s8 %v1926
    %v1928 = vlaneseq
    %v1929 = vshrl.u32 %v1928, 7
    %v1930 = vsub.s32 %v1927, %v1929
    %v1931 = vrot.slane %v693, %v1930
    %v1933 = vunpack.c.l.s4 1985246804
    %v1934 = vunpack.c.0.s8 %v1933
    %v1935 = vlaneseq
    %v1936 = vshrl.u32 %v1935, 7
    %v1937 = vsub.s32 %v1934, %v1936
    %v1938 = vrot.slane %v693, %v1937
    %v1940 = vunpack.c.l.s4 839922192
    %v1941 = vunpack.c.0.s8 %v1940
    %v1942 = vlaneseq
    %v1943 = vshrl.u32 %v1942, 7
    %v1944 = vsub.s32 %v1941, %v1943
    %v1945 = vrot.slane %v694, %v1944
    %v1947 = vunpack.c.l.s4 1985246804
    %v1948 = vunpack.c.0.s8 %v1947
    %v1949 = vlaneseq
    %v1950 = vshrl.u32 %v1949, 7
    %v1951 = vsub.s32 %v1948, %v1950
    %v1952 = vrot.slane %v694, %v1951
    %v1954 = vunpack.c.l.s4 839922192
    %v1955 = vunpack.c.0.s8 %v1954
    %v1956 = vlaneseq
    %v1957 = vshrl.u32 %v1956, 7
    %v1958 = vsub.s32 %v1955, %v1957
    %v1959 = vrot.slane %v695, %v1958
    %v1961 = vunpack.c.l.s4 1985246804
    %v1962 = vunpack.c.0.s8 %v1961
    %v1963 = vlaneseq
    %v1964 = vshrl.u32 %v1963, 7
    %v1965 = vsub.s32 %v1962, %v1964
    %v1966 = vrot.slane %v695, %v1965
    %v1968 = vunpack.c.l.s4 839922192
    %v1969 = vunpack.c.0.s8 %v1968
    %v1970 = vlaneseq
    %v1971 = vshrl.u32 %v1970, 7
    %v1972 = vsub.s32 %v1969, %v1971
    %v1973 = vrot.slane %v696, %v1972
    %v1975 = vunpack.c.l.s4 1985246804
    %v1976 = vunpack.c.0.s8 %v1975
    %v1977 = vlaneseq
    %v1978 = vshrl.u32 %v1977, 7
    %v1979 = vsub.s32 %v1976, %v1978
    %v1980 = vrot.slane %v696, %v1979
    %v1982 = vunpack.c.l.s4 839922192
    %v1983 = vunpack.c.0.s8 %v1982
    %v1984 = vlaneseq
    %v1985 = vshrl.u32 %v1984, 7
    %v1986 = vsub.s32 %v1983, %v1985
    %v1987 = vrot.slane %v697, %v1986
    %v1989 = vunpack.c.l.s4 1985246804
    %v1990 = vunpack.c.0.s8 %v1989
    %v1991 = vlaneseq
    %v1992 = vshrl.u32 %v1991, 7
    %v1993 = vsub.s32 %v1990, %v1992
    %v1994 = vrot.slane %v697, %v1993
    %v1996 = vunpack.c.l.s4 839922192
    %v1997 = vunpack.c.0.s8 %v1996
    %v1998 = vlaneseq
    %v1999 = vshrl.u32 %v1998, 7
    %v2000 = vsub.s32 %v1997, %v1999
    %v2001 = vrot.slane %v698, %v2000
    %v2003 = vunpack.c.l.s4 1985246804
    %v2004 = vunpack.c.0.s8 %v2003
    %v2005 = vlaneseq
    %v2006 = vshrl.u32 %v2005, 7
    %v2007 = vsub.s32 %v2004, %v2006
    %v2008 = vrot.slane %v698, %v2007
    %v2010 = vunpack.c.l.s4 839922192
    %v2011 = vunpack.c.0.s8 %v2010
    %v2012 = vlaneseq
    %v2013 = vshrl.u32 %v2012, 7
    %v2014 = vsub.s32 %v2011, %v2013
    %v2015 = vrot.slane %v699, %v2014
    %v2017 = vunpack.c.l.s4 1985246804
    %v2018 = vunpack.c.0.s8 %v2017
    %v2019 = vlaneseq
    %v2020 = vshrl.u32 %v2019, 7
    %v2021 = vsub.s32 %v2018, %v2020
    %v2022 = vrot.slane %v699, %v2021
    %v2024 = vunpack.c.l.s4 839922192
    %v2025 = vunpack.c.0.s8 %v2024
    %v2026 = vlaneseq
    %v2027 = vshrl.u32 %v2026, 7
    %v2028 = vsub.s32 %v2025, %v2027
    %v2029 = vrot.slane %v700, %v2028
    %v2031 = vunpack.c.l.s4 1985246804
    %v2032 = vunpack.c.0.s8 %v2031
    %v2033 = vlaneseq
    %v2034 = vshrl.u32 %v2033, 7
    %v2035 = vsub.s32 %v2032, %v2034
    %v2036 = vrot.slane %v700, %v2035
    %vm2037 = vsmask.f32 256
    %vm2038 = vsmask.f32 4368
    %vm2039 = vmor %vm2037, %vm2038
    %v2041 = vshrl.u32 %v1819, 16
    %v2043 = vrot.slane %v2041, 7
    %v2044 = vshll.u32 %v1819, 16
    %v2046 = vor.u32 %v2043, %v2044
    %v2047 = vrot.slane %v2043, 4
    %v2049 = vshrl.u32 %v1826, 16
    %v2051 = vrot.slane %v2049, 7
    %v2052 = vshll.u32 %v1826, 16
    %v2054 = vor.u32 %v2051, %v2052
    %v2055 = vsel %vm2039, %v2047, %v2054
    %v2056 = vrot.slane %v2051, 4
    %v2058 = vshrl.u32 %v1833, 16
    %v2060 = vrot.slane %v2058, 7
    %v2061 = vshll.u32 %v1833, 16
    %v2063 = vor.u32 %v2060, %v2061
    %v2064 = vsel %vm2039, %v2056, %v2063
    %v2065 = vrot.slane %v2060, 4
    %v2067 = vshrl.u32 %v1840, 16
    %v2069 = vrot.slane %v2067, 7
    %v2070 = vshll.u32 %v1840, 16
    %v2072 = vor.u32 %v2069, %v2070
    %v2073 = vsel %vm2039, %v2065, %v2072
    %v2074 = vrot.slane %v2069, 4
    %v2076 = vshrl.u32 %v1847, 16
    %v2078 = vrot.slane %v2076, 7
    %v2079 = vshll.u32 %v1847, 16
    %v2081 = vor.u32 %v2078, %v2079
    %v2082 = vsel %vm2039, %v2074, %v2081
    %v2083 = vrot.slane %v2078, 4
    %v2085 = vshrl.u32 %v1854, 16
    %v2087 = vrot.slane %v2085, 7
    %v2088 = vshll.u32 %v1854, 16
    %v2090 = vor.u32 %v2087, %v2088
    %v2091 = vsel %vm2039, %v2083, %v2090
    %v2092 = vrot.slane %v2087, 4
    %v2094 = vshrl.u32 %v1861, 16
    %v2096 = vrot.slane %v2094, 7
    %v2097 = vshll.u32 %v1861, 16
    %v2099 = vor.u32 %v2096, %v2097
    %v2100 = vsel %vm2039, %v2092, %v2099
    %v2101 = vrot.slane %v2096, 4
    %v2103 = vshrl.u32 %v1868, 16
    %v2105 = vrot.slane %v2103, 7
    %v2106 = vshll.u32 %v1868, 16
    %v2108 = vor.u32 %v2105, %v2106
    %v2109 = vsel %vm2039, %v2101, %v2108
    %v2110 = vrot.slane %v2105, 4
    %v2112 = vshrl.u32 %v1875, 16
    %v2114 = vrot.slane %v2112, 7
    %v2115 = vshll.u32 %v1875, 16
    %v2117 = vor.u32 %v2114, %v2115
    %v2118 = vsel %vm2039, %v2110, %v2117
    %v2119 = vrot.slane %v2114, 4
    %v2121 = vshrl.u32 %v1882, 16
    %v2123 = vrot.slane %v2121, 7
    %v2124 = vshll.u32 %v1882, 16
    %v2126 = vor.u32 %v2123, %v2124
    %v2127 = vsel %vm2039, %v2119, %v2126
    %v2128 = vrot.slane %v2123, 4
    %v2130 = vshrl.u32 %v1889, 16
    %v2132 = vrot.slane %v2130, 7
    %v2133 = vshll.u32 %v1889, 16
    %v2135 = vor.u32 %v2132, %v2133
    %v2136 = vsel %vm2039, %v2128, %v2135
    %v2137 = vrot.slane %v2132, 4
    %v2139 = vshrl.u32 %v1896, 16
    %v2141 = vrot.slane %v2139, 7
    %v2142 = vshll.u32 %v1896, 16
    %v2144 = vor.u32 %v2141, %v2142
    %v2145 = vsel %vm2039, %v2137, %v2144
    %v2146 = vrot.slane %v2141, 4
    %v2148 = vshrl.u32 %v1903, 16
    %v2150 = vrot.slane %v2148, 7
    %v2151 = vshll.u32 %v1903, 16
    %v2153 = vor.u32 %v2150, %v2151
    %v2154 = vsel %vm2039, %v2146, %v2153
    %v2155 = vrot.slane %v2150, 4
    %v2157 = vshrl.u32 %v1910, 16
    %v2159 = vrot.slane %v2157, 7
    %v2160 = vshll.u32 %v1910, 16
    %v2162 = vor.u32 %v2159, %v2160
    %v2163 = vsel %vm2039, %v2155, %v2162
    %v2164 = vrot.slane %v2159, 4
    %v2166 = vshrl.u32 %v1917, 16
    %v2168 = vrot.slane %v2166, 7
    %v2169 = vshll.u32 %v1917, 16
    %v2171 = vor.u32 %v2168, %v2169
    %v2172 = vsel %vm2039, %v2164, %v2171
    %v2173 = vrot.slane %v2168, 4
    %v2175 = vshrl.u32 %v1924, 16
    %v2177 = vrot.slane %v2175, 7
    %v2178 = vshll.u32 %v1924, 16
    %v2180 = vor.u32 %v2177, %v2178
    %v2181 = vsel %vm2039, %v2173, %v2180
    %v2182 = vrot.slane %v2177, 4
    %v2184 = vshrl.u32 %v1931, 16
    %v2186 = vrot.slane %v2184, 7
    %v2187 = vshll.u32 %v1931, 16
    %v2189 = vor.u32 %v2186, %v2187
    %v2190 = vsel %vm2039, %v2182, %v2189
    %v2191 = vrot.slane %v2186, 4
    %v2193 = vshrl.u32 %v1938, 16
    %v2195 = vrot.slane %v2193, 7
    %v2196 = vshll.u32 %v1938, 16
    %v2198 = vor.u32 %v2195, %v2196
    %v2199 = vsel %vm2039, %v2191, %v2198
    %v2200 = vrot.slane %v2195, 4
    %v2202 = vshrl.u32 %v1945, 16
    %v2204 = vrot.slane %v2202, 7
    %v2205 = vshll.u32 %v1945, 16
    %v2207 = vor.u32 %v2204, %v2205
    %v2208 = vsel %vm2039, %v2200, %v2207
    %v2209 = vrot.slane %v2204, 4
    %v2211 = vshrl.u32 %v1952, 16
    %v2213 = vrot.slane %v2211, 7
    %v2214 = vshll.u32 %v1952, 16
    %v2216 = vor.u32 %v2213, %v2214
    %v2217 = vsel %vm2039, %v2209, %v2216
    %v2218 = vrot.slane %v2213, 4
    %v2220 = vshrl.u32 %v1959, 16
    %v2222 = vrot.slane %v2220, 7
    %v2223 = vshll.u32 %v1959, 16
    %v2225 = vor.u32 %v2222, %v2223
    %v2226 = vsel %vm2039, %v2218, %v2225
    %v2227 = vrot.slane %v2222, 4
    %v2229 = vshrl.u32 %v1966, 16
    %v2231 = vrot.slane %v2229, 7
    %v2232 = vshll.u32 %v1966, 16
    %v2234 = vor.u32 %v2231, %v2232
    %v2235 = vsel %vm2039, %v2227, %v2234
    %v2236 = vrot.slane %v2231, 4
    %v2238 = vshrl.u32 %v1973, 16
    %v2240 = vrot.slane %v2238, 7
    %v2241 = vshll.u32 %v1973, 16
    %v2243 = vor.u32 %v2240, %v2241
    %v2244 = vsel %vm2039, %v2236, %v2243
    %v2245 = vrot.slane %v2240, 4
    %v2247 = vshrl.u32 %v1980, 16
    %v2249 = vrot.slane %v2247, 7
    %v2250 = vshll.u32 %v1980, 16
    %v2252 = vor.u32 %v2249, %v2250
    %v2253 = vsel %vm2039, %v2245, %v2252
    %v2254 = vrot.slane %v2249, 4
    %v2256 = vshrl.u32 %v1987, 16
    %v2258 = vrot.slane %v2256, 7
    %v2259 = vshll.u32 %v1987, 16
    %v2261 = vor.u32 %v2258, %v2259
    %v2262 = vsel %vm2039, %v2254, %v2261
    %v2263 = vrot.slane %v2258, 4
    %v2265 = vshrl.u32 %v1994, 16
    %v2267 = vrot.slane %v2265, 7
    %v2268 = vshll.u32 %v1994, 16
    %v2270 = vor.u32 %v2267, %v2268
    %v2271 = vsel %vm2039, %v2263, %v2270
    %v2272 = vrot.slane %v2267, 4
    %v2274 = vshrl.u32 %v2001, 16
    %v2276 = vrot.slane %v2274, 7
    %v2277 = vshll.u32 %v2001, 16
    %v2279 = vor.u32 %v2276, %v2277
    %v2280 = vsel %vm2039, %v2272, %v2279
    %v2281 = vrot.slane %v2276, 4
    %v2283 = vshrl.u32 %v2008, 16
    %v2285 = vrot.slane %v2283, 7
    %v2286 = vshll.u32 %v2008, 16
    %v2288 = vor.u32 %v2285, %v2286
    %v2289 = vsel %vm2039, %v2281, %v2288
    %v2290 = vrot.slane %v2285, 4
    %v2292 = vshrl.u32 %v2015, 16
    %v2294 = vrot.slane %v2292, 7
    %v2295 = vshll.u32 %v2015, 16
    %v2297 = vor.u32 %v2294, %v2295
    %v2298 = vsel %vm2039, %v2290, %v2297
    %v2299 = vrot.slane %v2294, 4
    %v2301 = vshrl.u32 %v2022, 16
    %v2303 = vrot.slane %v2301, 7
    %v2304 = vshll.u32 %v2022, 16
    %v2306 = vor.u32 %v2303, %v2304
    %v2307 = vsel %vm2039, %v2299, %v2306
    %v2308 = vrot.slane %v2303, 4
    %v2310 = vshrl.u32 %v2029, 16
    %v2312 = vrot.slane %v2310, 7
    %v2313 = vshll.u32 %v2029, 16
    %v2315 = vor.u32 %v2312, %v2313
    %v2316 = vsel %vm2039, %v2308, %v2315
    %v2317 = vrot.slane %v2312, 4
    %v2319 = vshrl.u32 %v2036, 16
    %v2321 = vrot.slane %v2319, 7
    %v2322 = vshll.u32 %v2036, 16
    %v2324 = vor.u32 %v2321, %v2322
    %v2325 = vsel %vm2039, %v2317, %v2324
    %v2326 = vrot.slane %v2321, 4
    %v2360 = vmul.bf16 %v1136, %v2046
    %v2361 = vmul.bf16 %v1137, %v2055
    %v2362 = vmul.bf16 %v1138, %v2064
    %v2363 = vmul.bf16 %v1139, %v2073
    %v2364 = vmul.bf16 %v1140, %v2082
    %v2365 = vmul.bf16 %v1141, %v2091
    %v2366 = vmul.bf16 %v1142, %v2100
    %v2367 = vmul.bf16 %v1143, %v2109
    %v2368 = vmul.bf16 %v1144, %v2118
    %v2369 = vmul.bf16 %v1145, %v2127
    %v2370 = vmul.bf16 %v1146, %v2136
    %v2371 = vmul.bf16 %v1147, %v2145
    %v2372 = vmul.bf16 %v1148, %v2154
    %v2373 = vmul.bf16 %v1149, %v2163
    %v2374 = vmul.bf16 %v1150, %v2172
    %v2375 = vmul.bf16 %v1151, %v2181
    %v2376 = vmul.bf16 %v1152, %v2190
    %v2377 = vmul.bf16 %v1153, %v2199
    %v2378 = vmul.bf16 %v1154, %v2208
    %v2379 = vmul.bf16 %v1155, %v2217
    %v2380 = vmul.bf16 %v1156, %v2226
    %v2381 = vmul.bf16 %v1157, %v2235
    %v2382 = vmul.bf16 %v1158, %v2244
    %v2383 = vmul.bf16 %v1159, %v2253
    %v2384 = vmul.bf16 %v1160, %v2262
    %v2385 = vmul.bf16 %v1161, %v2271
    %v2386 = vmul.bf16 %v1162, %v2280
    %v2387 = vmul.bf16 %v1163, %v2289
    %v2388 = vmul.bf16 %v1164, %v2298
    %v2389 = vmul.bf16 %v1165, %v2307
    %v2390 = vmul.bf16 %v1166, %v2316
    %v2391 = vmul.bf16 %v1167, %v2325
    %v2392 = vmul.bf16 %v1796, %v2326
    %v2394 = vshrl.u32 %v1763, 16
    %v2396 = vrot.slane %v2394, 7
    %v2397 = vrot.slane %v2396, 4
    %v2399 = vshrl.u32 %v1764, 16
    %v2401 = vrot.slane %v2399, 7
    %v2402 = vshll.u32 %v1764, 16
    %v2404 = vor.u32 %v2401, %v2402
    %v2405 = vsel %vm2039, %v2397, %v2404
    %v2406 = vrot.slane %v2401, 4
    %v2408 = vshrl.u32 %v1765, 16
    %v2410 = vrot.slane %v2408, 7
    %v2411 = vshll.u32 %v1765, 16
    %v2413 = vor.u32 %v2410, %v2411
    %v2414 = vsel %vm2039, %v2406, %v2413
    %v2415 = vrot.slane %v2410, 4
    %v2417 = vshrl.u32 %v1766, 16
    %v2419 = vrot.slane %v2417, 7
    %v2420 = vshll.u32 %v1766, 16
    %v2422 = vor.u32 %v2419, %v2420
    %v2423 = vsel %vm2039, %v2415, %v2422
    %v2424 = vrot.slane %v2419, 4
    %v2426 = vshrl.u32 %v1767, 16
    %v2428 = vrot.slane %v2426, 7
    %v2429 = vshll.u32 %v1767, 16
    %v2431 = vor.u32 %v2428, %v2429
    %v2432 = vsel %vm2039, %v2424, %v2431
    %v2433 = vrot.slane %v2428, 4
    %v2435 = vshrl.u32 %v1768, 16
    %v2437 = vrot.slane %v2435, 7
    %v2438 = vshll.u32 %v1768, 16
    %v2440 = vor.u32 %v2437, %v2438
    %v2441 = vsel %vm2039, %v2433, %v2440
    %v2442 = vrot.slane %v2437, 4
    %v2444 = vshrl.u32 %v1769, 16
    %v2446 = vrot.slane %v2444, 7
    %v2447 = vshll.u32 %v1769, 16
    %v2449 = vor.u32 %v2446, %v2447
    %v2450 = vsel %vm2039, %v2442, %v2449
    %v2451 = vrot.slane %v2446, 4
    %v2453 = vshrl.u32 %v1770, 16
    %v2455 = vrot.slane %v2453, 7
    %v2456 = vshll.u32 %v1770, 16
    %v2458 = vor.u32 %v2455, %v2456
    %v2459 = vsel %vm2039, %v2451, %v2458
    %v2460 = vrot.slane %v2455, 4
    %v2462 = vshrl.u32 %v1771, 16
    %v2464 = vrot.slane %v2462, 7
    %v2465 = vshll.u32 %v1771, 16
    %v2467 = vor.u32 %v2464, %v2465
    %v2468 = vsel %vm2039, %v2460, %v2467
    %v2469 = vrot.slane %v2464, 4
    %v2471 = vshrl.u32 %v1772, 16
    %v2473 = vrot.slane %v2471, 7
    %v2474 = vshll.u32 %v1772, 16
    %v2476 = vor.u32 %v2473, %v2474
    %v2477 = vsel %vm2039, %v2469, %v2476
    %v2478 = vrot.slane %v2473, 4
    %v2480 = vshrl.u32 %v1773, 16
    %v2482 = vrot.slane %v2480, 7
    %v2483 = vshll.u32 %v1773, 16
    %v2485 = vor.u32 %v2482, %v2483
    %v2486 = vsel %vm2039, %v2478, %v2485
    %v2487 = vrot.slane %v2482, 4
    %v2489 = vshrl.u32 %v1774, 16
    %v2491 = vrot.slane %v2489, 7
    %v2492 = vshll.u32 %v1774, 16
    %v2494 = vor.u32 %v2491, %v2492
    %v2495 = vsel %vm2039, %v2487, %v2494
    %v2496 = vrot.slane %v2491, 4
    %v2498 = vshrl.u32 %v1775, 16
    %v2500 = vrot.slane %v2498, 7
    %v2501 = vshll.u32 %v1775, 16
    %v2503 = vor.u32 %v2500, %v2501
    %v2504 = vsel %vm2039, %v2496, %v2503
    %v2505 = vrot.slane %v2500, 4
    %v2507 = vshrl.u32 %v1776, 16
    %v2509 = vrot.slane %v2507, 7
    %v2510 = vshll.u32 %v1776, 16
    %v2512 = vor.u32 %v2509, %v2510
    %v2513 = vsel %vm2039, %v2505, %v2512
    %v2514 = vrot.slane %v2509, 4
    %v2516 = vshrl.u32 %v1777, 16
    %v2518 = vrot.slane %v2516, 7
    %v2519 = vshll.u32 %v1777, 16
    %v2521 = vor.u32 %v2518, %v2519
    %v2522 = vsel %vm2039, %v2514, %v2521
    %v2523 = vrot.slane %v2518, 4
    %v2525 = vshrl.u32 %v1778, 16
    %v2527 = vrot.slane %v2525, 7
    %v2528 = vshll.u32 %v1778, 16
    %v2530 = vor.u32 %v2527, %v2528
    %v2531 = vsel %vm2039, %v2523, %v2530
    %v2532 = vrot.slane %v2527, 4
    %v2534 = vshrl.u32 %v1779, 16
    %v2536 = vrot.slane %v2534, 7
    %v2537 = vshll.u32 %v1779, 16
    %v2539 = vor.u32 %v2536, %v2537
    %v2540 = vsel %vm2039, %v2532, %v2539
    %v2541 = vrot.slane %v2536, 4
    %v2543 = vshrl.u32 %v1780, 16
    %v2545 = vrot.slane %v2543, 7
    %v2546 = vshll.u32 %v1780, 16
    %v2548 = vor.u32 %v2545, %v2546
    %v2549 = vsel %vm2039, %v2541, %v2548
    %v2550 = vrot.slane %v2545, 4
    %v2552 = vshrl.u32 %v1781, 16
    %v2554 = vrot.slane %v2552, 7
    %v2555 = vshll.u32 %v1781, 16
    %v2557 = vor.u32 %v2554, %v2555
    %v2558 = vsel %vm2039, %v2550, %v2557
    %v2559 = vrot.slane %v2554, 4
    %v2561 = vshrl.u32 %v1782, 16
    %v2563 = vrot.slane %v2561, 7
    %v2564 = vshll.u32 %v1782, 16
    %v2566 = vor.u32 %v2563, %v2564
    %v2567 = vsel %vm2039, %v2559, %v2566
    %v2568 = vrot.slane %v2563, 4
    %v2570 = vshrl.u32 %v1783, 16
    %v2572 = vrot.slane %v2570, 7
    %v2573 = vshll.u32 %v1783, 16
    %v2575 = vor.u32 %v2572, %v2573
    %v2576 = vsel %vm2039, %v2568, %v2575
    %v2577 = vrot.slane %v2572, 4
    %v2579 = vshrl.u32 %v1784, 16
    %v2581 = vrot.slane %v2579, 7
    %v2582 = vshll.u32 %v1784, 16
    %v2584 = vor.u32 %v2581, %v2582
    %v2585 = vsel %vm2039, %v2577, %v2584
    %v2586 = vrot.slane %v2581, 4
    %v2588 = vshrl.u32 %v1785, 16
    %v2590 = vrot.slane %v2588, 7
    %v2591 = vshll.u32 %v1785, 16
    %v2593 = vor.u32 %v2590, %v2591
    %v2594 = vsel %vm2039, %v2586, %v2593
    %v2595 = vrot.slane %v2590, 4
    %v2597 = vshrl.u32 %v1786, 16
    %v2599 = vrot.slane %v2597, 7
    %v2600 = vshll.u32 %v1786, 16
    %v2602 = vor.u32 %v2599, %v2600
    %v2603 = vsel %vm2039, %v2595, %v2602
    %v2604 = vrot.slane %v2599, 4
    %v2606 = vshrl.u32 %v1787, 16
    %v2608 = vrot.slane %v2606, 7
    %v2609 = vshll.u32 %v1787, 16
    %v2611 = vor.u32 %v2608, %v2609
    %v2612 = vsel %vm2039, %v2604, %v2611
    %v2613 = vrot.slane %v2608, 4
    %v2615 = vshrl.u32 %v1788, 16
    %v2617 = vrot.slane %v2615, 7
    %v2618 = vshll.u32 %v1788, 16
    %v2620 = vor.u32 %v2617, %v2618
    %v2621 = vsel %vm2039, %v2613, %v2620
    %v2622 = vrot.slane %v2617, 4
    %v2624 = vshrl.u32 %v1789, 16
    %v2626 = vrot.slane %v2624, 7
    %v2627 = vshll.u32 %v1789, 16
    %v2629 = vor.u32 %v2626, %v2627
    %v2630 = vsel %vm2039, %v2622, %v2629
    %v2631 = vrot.slane %v2626, 4
    %v2633 = vshrl.u32 %v1790, 16
    %v2635 = vrot.slane %v2633, 7
    %v2636 = vshll.u32 %v1790, 16
    %v2638 = vor.u32 %v2635, %v2636
    %v2639 = vsel %vm2039, %v2631, %v2638
    %v2640 = vrot.slane %v2635, 4
    %v2642 = vshrl.u32 %v1791, 16
    %v2644 = vrot.slane %v2642, 7
    %v2645 = vshll.u32 %v1791, 16
    %v2647 = vor.u32 %v2644, %v2645
    %v2648 = vsel %vm2039, %v2640, %v2647
    %v2649 = vrot.slane %v2644, 4
    %v2651 = vshrl.u32 %v1792, 16
    %v2653 = vrot.slane %v2651, 7
    %v2654 = vshll.u32 %v1792, 16
    %v2656 = vor.u32 %v2653, %v2654
    %v2657 = vsel %vm2039, %v2649, %v2656
    %v2658 = vrot.slane %v2653, 4
    %v2660 = vshrl.u32 %v1793, 16
    %v2662 = vrot.slane %v2660, 7
    %v2663 = vshll.u32 %v1793, 16
    %v2665 = vor.u32 %v2662, %v2663
    %v2666 = vsel %vm2039, %v2658, %v2665
    %v2667 = vrot.slane %v2662, 4
    %v2669 = vshrl.u32 %v1794, 16
    %v2671 = vrot.slane %v2669, 7
    %v2672 = vshll.u32 %v1794, 16
    %v2674 = vor.u32 %v2671, %v2672
    %v2675 = vsel %vm2039, %v2667, %v2674
    %v2676 = vrot.slane %v2671, 4
    %v2678 = vshrl.u32 %v1795, 16
    %v2680 = vrot.slane %v2678, 7
    %v2681 = vshll.u32 %v1795, 16
    %v2683 = vor.u32 %v2680, %v2681
    %v2684 = vsel %vm2039, %v2676, %v2683
    %2717 = vst [vmem:[#allocation2 + $0x8] sm:$0xf] %v2405
    %2718 = vst [vmem:[#allocation2 + $0xc] sm:$0xf] %v2414
    %2719 = vst [vmem:[#allocation2 + $0x10] sm:$0xf] %v2423
    %2720 = vst [vmem:[#allocation2 + $0x14] sm:$0xf] %v2432
    %2721 = vst [vmem:[#allocation2 + $0x18] sm:$0xf] %v2441
    %2722 = vst [vmem:[#allocation2 + $0x1c] sm:$0xf] %v2450
    %2723 = vst [vmem:[#allocation2 + $0x20] sm:$0xf] %v2459
    %2724 = vst [vmem:[#allocation2 + $0x24] sm:$0xf] %v2468
    %2725 = vst [vmem:[#allocation2 + $0x28] sm:$0xf] %v2477
    %2726 = vst [vmem:[#allocation2 + $0x2c] sm:$0xf] %v2486
    %2727 = vst [vmem:[#allocation2 + $0x30] sm:$0xf] %v2495
    %2728 = vst [vmem:[#allocation2 + $0x34] sm:$0xf] %v2504
    %2729 = vst [vmem:[#allocation2 + $0x38] sm:$0xf] %v2513
    %2730 = vst [vmem:[#allocation2 + $0x3c] sm:$0xf] %v2522
    %2731 = vst [vmem:[#allocation2 + $0x40] sm:$0xf] %v2531
    %2732 = vst [vmem:[#allocation2 + $0x44] sm:$0xf] %v2540
    %2733 = vst [vmem:[#allocation2 + $0x48] sm:$0xf] %v2549
    %2734 = vst [vmem:[#allocation2 + $0x4c] sm:$0xf] %v2558
    %2735 = vst [vmem:[#allocation2 + $0x50] sm:$0xf] %v2567
    %2736 = vst [vmem:[#allocation2 + $0x54] sm:$0xf] %v2576
    %2737 = vst [vmem:[#allocation2 + $0x58] sm:$0xf] %v2585
    %2738 = vst [vmem:[#allocation2 + $0x5c] sm:$0xf] %v2594
    %2739 = vst [vmem:[#allocation2 + $0x60] sm:$0xf] %v2603
    %2740 = vst [vmem:[#allocation2 + $0x64] sm:$0xf] %v2612
    %2741 = vst [vmem:[#allocation2 + $0x68] sm:$0xf] %v2621
    %2742 = vst [vmem:[#allocation2 + $0x6c] sm:$0xf] %v2630
    %2743 = vst [vmem:[#allocation2 + $0x70] sm:$0xf] %v2639
    %2744 = vst [vmem:[#allocation2 + $0x74] sm:$0xf] %v2648
    %2745 = vst [vmem:[#allocation2 + $0x78] sm:$0xf] %v2657
    %2746 = vst [vmem:[#allocation2 + $0x7c] sm:$0xf] %v2666
    %2747 = vst [vmem:[#allocation2 + $0x80] sm:$0xf] %v2675
    %2748 = vst [vmem:[#allocation2 + $0x84] sm:$0xf] %v2684
    %2749 = vrot.lane.b32.xlu0 %v1039, 32
    %v2750 = vpop.permute.xlu0 %2749
    %2751 = vrot.lane.b32.xlu0 %v1040, 32
    %v2752 = vpop.permute.xlu0 %2751
    %2753 = vrot.lane.b32.xlu0 %v1041, 32
    %v2754 = vpop.permute.xlu0 %2753
    %2755 = vrot.lane.b32.xlu0 %v1042, 32
    %v2756 = vpop.permute.xlu0 %2755
    %2757 = vrot.lane.b32.xlu0 %v1043, 32
    %v2758 = vpop.permute.xlu0 %2757
    %2759 = vrot.lane.b32.xlu0 %v1044, 32
    %v2760 = vpop.permute.xlu0 %2759
    %2761 = vrot.lane.b32.xlu0 %v1045, 32
    %v2762 = vpop.permute.xlu0 %2761
    %2763 = vrot.lane.b32.xlu0 %v1046, 32
    %v2764 = vpop.permute.xlu0 %2763
    %2765 = vrot.lane.b32.xlu0 %v1047, 32
    %v2766 = vpop.permute.xlu0 %2765
    %2767 = vrot.lane.b32.xlu0 %v1048, 32
    %v2768 = vpop.permute.xlu0 %2767
    %2769 = vrot.lane.b32.xlu0 %v1049, 32
    %v2770 = vpop.permute.xlu0 %2769
    %2771 = vrot.lane.b32.xlu0 %v1050, 32
    %v2772 = vpop.permute.xlu0 %2771
    %2773 = vrot.lane.b32.xlu0 %v1051, 32
    %v2774 = vpop.permute.xlu0 %2773
    %2775 = vrot.lane.b32.xlu0 %v1052, 32
    %v2776 = vpop.permute.xlu0 %2775
    %2777 = vrot.lane.b32.xlu0 %v1053, 32
    %v2778 = vpop.permute.xlu0 %2777
    %2779 = vrot.lane.b32.xlu0 %v1054, 32
    %v2780 = vpop.permute.xlu0 %2779
    %2781 = vrot.lane.b32.xlu0 %v1055, 32
    %v2782 = vpop.permute.xlu0 %2781
    %2783 = vrot.lane.b32.xlu0 %v1056, 32
    %v2784 = vpop.permute.xlu0 %2783
    %2785 = vrot.lane.b32.xlu0 %v1057, 32
    %v2786 = vpop.permute.xlu0 %2785
    %2787 = vrot.lane.b32.xlu0 %v1058, 32
    %v2788 = vpop.permute.xlu0 %2787
    %2789 = vrot.lane.b32.xlu0 %v1059, 32
    %v2790 = vpop.permute.xlu0 %2789
    %2791 = vrot.lane.b32.xlu0 %v1060, 32
    %v2792 = vpop.permute.xlu0 %2791
    %2793 = vrot.lane.b32.xlu0 %v1061, 32
    %v2794 = vpop.permute.xlu0 %2793
    %2795 = vrot.lane.b32.xlu0 %v1062, 32
    %v2796 = vpop.permute.xlu0 %2795
    %2797 = vrot.lane.b32.xlu0 %v1063, 32
    %v2798 = vpop.permute.xlu0 %2797
    %2799 = vrot.lane.b32.xlu0 %v1064, 32
    %v2800 = vpop.permute.xlu0 %2799
    %2801 = vrot.lane.b32.xlu0 %v1065, 32
    %v2802 = vpop.permute.xlu0 %2801
    %2803 = vrot.lane.b32.xlu0 %v1066, 32
    %v2804 = vpop.permute.xlu0 %2803
    %2805 = vrot.lane.b32.xlu0 %v1067, 32
    %v2806 = vpop.permute.xlu0 %2805
    %2807 = vrot.lane.b32.xlu0 %v1068, 32
    %v2808 = vpop.permute.xlu0 %2807
    %2809 = vrot.lane.b32.xlu0 %v1069, 32
    %v2810 = vpop.permute.xlu0 %2809
    %2811 = vrot.lane.b32.xlu0 %v1070, 32
    %v2812 = vpop.permute.xlu0 %2811
    %vm2845 = vcmask 519424
    %2846 = vst.msk [vmem:[#allocation2 + $0x8] sm:$0xf] %vm2845, %v2750
    %2847 = vst.msk [vmem:[#allocation2 + $0xc] sm:$0xf] %vm2845, %v2752
    %2848 = vst.msk [vmem:[#allocation2 + $0x10] sm:$0xf] %vm2845, %v2754
    %2849 = vst.msk [vmem:[#allocation2 + $0x14] sm:$0xf] %vm2845, %v2756
    %2850 = vst.msk [vmem:[#allocation2 + $0x18] sm:$0xf] %vm2845, %v2758
    %2851 = vst.msk [vmem:[#allocation2 + $0x1c] sm:$0xf] %vm2845, %v2760
    %2852 = vst.msk [vmem:[#allocation2 + $0x20] sm:$0xf] %vm2845, %v2762
    %2853 = vst.msk [vmem:[#allocation2 + $0x24] sm:$0xf] %vm2845, %v2764
    %2854 = vst.msk [vmem:[#allocation2 + $0x28] sm:$0xf] %vm2845, %v2766
    %2855 = vst.msk [vmem:[#allocation2 + $0x2c] sm:$0xf] %vm2845, %v2768
    %2856 = vst.msk [vmem:[#allocation2 + $0x30] sm:$0xf] %vm2845, %v2770
    %2857 = vst.msk [vmem:[#allocation2 + $0x34] sm:$0xf] %vm2845, %v2772
    %2858 = vst.msk [vmem:[#allocation2 + $0x38] sm:$0xf] %vm2845, %v2774
    %2859 = vst.msk [vmem:[#allocation2 + $0x3c] sm:$0xf] %vm2845, %v2776
    %2860 = vst.msk [vmem:[#allocation2 + $0x40] sm:$0xf] %vm2845, %v2778
    %2861 = vst.msk [vmem:[#allocation2 + $0x44] sm:$0xf] %vm2845, %v2780
    %2862 = vst.msk [vmem:[#allocation2 + $0x48] sm:$0xf] %vm2845, %v2782
    %2863 = vst.msk [vmem:[#allocation2 + $0x4c] sm:$0xf] %vm2845, %v2784
    %2864 = vst.msk [vmem:[#allocation2 + $0x50] sm:$0xf] %vm2845, %v2786
    %2865 = vst.msk [vmem:[#allocation2 + $0x54] sm:$0xf] %vm2845, %v2788
    %2866 = vst.msk [vmem:[#allocation2 + $0x58] sm:$0xf] %vm2845, %v2790
    %2867 = vst.msk [vmem:[#allocation2 + $0x5c] sm:$0xf] %vm2845, %v2792
    %2868 = vst.msk [vmem:[#allocation2 + $0x60] sm:$0xf] %vm2845, %v2794
    %2869 = vst.msk [vmem:[#allocation2 + $0x64] sm:$0xf] %vm2845, %v2796
    %2870 = vst.msk [vmem:[#allocation2 + $0x68] sm:$0xf] %vm2845, %v2798
    %2871 = vst.msk [vmem:[#allocation2 + $0x6c] sm:$0xf] %vm2845, %v2800
    %2872 = vst.msk [vmem:[#allocation2 + $0x70] sm:$0xf] %vm2845, %v2802
    %2873 = vst.msk [vmem:[#allocation2 + $0x74] sm:$0xf] %vm2845, %v2804
    %2874 = vst.msk [vmem:[#allocation2 + $0x78] sm:$0xf] %vm2845, %v2806
    %2875 = vst.msk [vmem:[#allocation2 + $0x7c] sm:$0xf] %vm2845, %v2808
    %2876 = vst.msk [vmem:[#allocation2 + $0x80] sm:$0xf] %vm2845, %v2810
    %2877 = vst.msk [vmem:[#allocation2 + $0x84] sm:$0xf] %vm2845, %v2812
    %v2879 = vshrl.u32 %v2360, 16
    %v2881 = vrot.slane %v2879, 4
    %v2882 = vshll.u32 %v2360, 16
    %v2884 = vrot.slane %v2882, 5
    %v2885 = vor.u32 %v2881, %v2884
    %v2886 = vrot.slane %v2885, 4
    %v2888 = vshll.u32 %v2361, 16
    %v2890 = vrot.slane %v2888, 5
    %v2891 = vsel %vm1410, %v2886, %v2890
    %v2892 = vshrl.u32 %v2361, 16
    %v2894 = vrot.slane %v2892, 4
    %v2895 = vor.u32 %v2894, %v2890
    %v2896 = vrot.slane %v2895, 4
    %v2898 = vshll.u32 %v2362, 16
    %v2900 = vrot.slane %v2898, 5
    %v2901 = vsel %vm1410, %v2896, %v2900
    %v2902 = vshrl.u32 %v2362, 16
    %v2904 = vrot.slane %v2902, 4
    %v2905 = vor.u32 %v2904, %v2900
    %v2906 = vrot.slane %v2905, 4
    %v2908 = vshll.u32 %v2363, 16
    %v2910 = vrot.slane %v2908, 5
    %v2911 = vsel %vm1410, %v2906, %v2910
    %v2912 = vshrl.u32 %v2363, 16
    %v2914 = vrot.slane %v2912, 4
    %v2915 = vor.u32 %v2914, %v2910
    %v2916 = vrot.slane %v2915, 4
    %v2918 = vshll.u32 %v2364, 16
    %v2920 = vrot.slane %v2918, 5
    %v2921 = vsel %vm1410, %v2916, %v2920
    %v2922 = vshrl.u32 %v2364, 16
    %v2924 = vrot.slane %v2922, 4
    %v2925 = vor.u32 %v2924, %v2920
    %v2926 = vrot.slane %v2925, 4
    %v2928 = vshll.u32 %v2365, 16
    %v2930 = vrot.slane %v2928, 5
    %v2931 = vsel %vm1410, %v2926, %v2930
    %v2932 = vshrl.u32 %v2365, 16
    %v2934 = vrot.slane %v2932, 4
    %v2935 = vor.u32 %v2934, %v2930
    %v2936 = vrot.slane %v2935, 4
    %v2938 = vshll.u32 %v2366, 16
    %v2940 = vrot.slane %v2938, 5
    %v2941 = vsel %vm1410, %v2936, %v2940
    %v2942 = vshrl.u32 %v2366, 16
    %v2944 = vrot.slane %v2942, 4
    %v2945 = vor.u32 %v2944, %v2940
    %v2946 = vrot.slane %v2945, 4
    %v2948 = vshll.u32 %v2367, 16
    %v2950 = vrot.slane %v2948, 5
    %v2951 = vsel %vm1410, %v2946, %v2950
    %v2952 = vshrl.u32 %v2367, 16
    %v2954 = vrot.slane %v2952, 4
    %v2955 = vor.u32 %v2954, %v2950
    %v2956 = vrot.slane %v2955, 4
    %v2958 = vshll.u32 %v2368, 16
    %v2960 = vrot.slane %v2958, 5
    %v2961 = vsel %vm1410, %v2956, %v2960
    %v2962 = vshrl.u32 %v2368, 16
    %v2964 = vrot.slane %v2962, 4
    %v2965 = vor.u32 %v2964, %v2960
    %v2966 = vrot.slane %v2965, 4
    %v2968 = vshll.u32 %v2369, 16
    %v2970 = vrot.slane %v2968, 5
    %v2971 = vsel %vm1410, %v2966, %v2970
    %v2972 = vshrl.u32 %v2369, 16
    %v2974 = vrot.slane %v2972, 4
    %v2975 = vor.u32 %v2974, %v2970
    %v2976 = vrot.slane %v2975, 4
    %v2978 = vshll.u32 %v2370, 16
    %v2980 = vrot.slane %v2978, 5
    %v2981 = vsel %vm1410, %v2976, %v2980
    %v2982 = vshrl.u32 %v2370, 16
    %v2984 = vrot.slane %v2982, 4
    %v2985 = vor.u32 %v2984, %v2980
    %v2986 = vrot.slane %v2985, 4
    %v2988 = vshll.u32 %v2371, 16
    %v2990 = vrot.slane %v2988, 5
    %v2991 = vsel %vm1410, %v2986, %v2990
    %v2992 = vshrl.u32 %v2371, 16
    %v2994 = vrot.slane %v2992, 4
    %v2995 = vor.u32 %v2994, %v2990
    %v2996 = vrot.slane %v2995, 4
    %v2998 = vshll.u32 %v2372, 16
    %v3000 = vrot.slane %v2998, 5
    %v3001 = vsel %vm1410, %v2996, %v3000
    %v3002 = vshrl.u32 %v2372, 16
    %v3004 = vrot.slane %v3002, 4
    %v3005 = vor.u32 %v3004, %v3000
    %v3006 = vrot.slane %v3005, 4
    %v3008 = vshll.u32 %v2373, 16
    %v3010 = vrot.slane %v3008, 5
    %v3011 = vsel %vm1410, %v3006, %v3010
    %v3012 = vshrl.u32 %v2373, 16
    %v3014 = vrot.slane %v3012, 4
    %v3015 = vor.u32 %v3014, %v3010
    %v3016 = vrot.slane %v3015, 4
    %v3018 = vshll.u32 %v2374, 16
    %v3020 = vrot.slane %v3018, 5
    %v3021 = vsel %vm1410, %v3016, %v3020
    %v3022 = vshrl.u32 %v2374, 16
    %v3024 = vrot.slane %v3022, 4
    %v3025 = vor.u32 %v3024, %v3020
    %v3026 = vrot.slane %v3025, 4
    %v3028 = vshll.u32 %v2375, 16
    %v3030 = vrot.slane %v3028, 5
    %v3031 = vsel %vm1410, %v3026, %v3030
    %v3032 = vshrl.u32 %v2375, 16
    %v3034 = vrot.slane %v3032, 4
    %v3035 = vor.u32 %v3034, %v3030
    %v3036 = vrot.slane %v3035, 4
    %v3038 = vshll.u32 %v2376, 16
    %v3040 = vrot.slane %v3038, 5
    %v3041 = vsel %vm1410, %v3036, %v3040
    %v3042 = vshrl.u32 %v2376, 16
    %v3044 = vrot.slane %v3042, 4
    %v3045 = vor.u32 %v3044, %v3040
    %v3046 = vrot.slane %v3045, 4
    %v3048 = vshll.u32 %v2377, 16
    %v3050 = vrot.slane %v3048, 5
    %v3051 = vsel %vm1410, %v3046, %v3050
    %v3052 = vshrl.u32 %v2377, 16
    %v3054 = vrot.slane %v3052, 4
    %v3055 = vor.u32 %v3054, %v3050
    %v3056 = vrot.slane %v3055, 4
    %v3058 = vshll.u32 %v2378, 16
    %v3060 = vrot.slane %v3058, 5
    %v3061 = vsel %vm1410, %v3056, %v3060
    %v3062 = vshrl.u32 %v2378, 16
    %v3064 = vrot.slane %v3062, 4
    %v3065 = vor.u32 %v3064, %v3060
    %v3066 = vrot.slane %v3065, 4
    %v3068 = vshll.u32 %v2379, 16
    %v3070 = vrot.slane %v3068, 5
    %v3071 = vsel %vm1410, %v3066, %v3070
    %v3072 = vshrl.u32 %v2379, 16
    %v3074 = vrot.slane %v3072, 4
    %v3075 = vor.u32 %v3074, %v3070
    %v3076 = vrot.slane %v3075, 4
    %v3078 = vshll.u32 %v2380, 16
    %v3080 = vrot.slane %v3078, 5
    %v3081 = vsel %vm1410, %v3076, %v3080
    %v3082 = vshrl.u32 %v2380, 16
    %v3084 = vrot.slane %v3082, 4
    %v3085 = vor.u32 %v3084, %v3080
    %v3086 = vrot.slane %v3085, 4
    %v3088 = vshll.u32 %v2381, 16
    %v3090 = vrot.slane %v3088, 5
    %v3091 = vsel %vm1410, %v3086, %v3090
    %v3092 = vshrl.u32 %v2381, 16
    %v3094 = vrot.slane %v3092, 4
    %v3095 = vor.u32 %v3094, %v3090
    %v3096 = vrot.slane %v3095, 4
    %v3098 = vshll.u32 %v2382, 16
    %v3100 = vrot.slane %v3098, 5
    %v3101 = vsel %vm1410, %v3096, %v3100
    %v3102 = vshrl.u32 %v2382, 16
    %v3104 = vrot.slane %v3102, 4
    %v3105 = vor.u32 %v3104, %v3100
    %v3106 = vrot.slane %v3105, 4
    %v3108 = vshll.u32 %v2383, 16
    %v3110 = vrot.slane %v3108, 5
    %v3111 = vsel %vm1410, %v3106, %v3110
    %v3112 = vshrl.u32 %v2383, 16
    %v3114 = vrot.slane %v3112, 4
    %v3115 = vor.u32 %v3114, %v3110
    %v3116 = vrot.slane %v3115, 4
    %v3118 = vshll.u32 %v2384, 16
    %v3120 = vrot.slane %v3118, 5
    %v3121 = vsel %vm1410, %v3116, %v3120
    %v3122 = vshrl.u32 %v2384, 16
    %v3124 = vrot.slane %v3122, 4
    %v3125 = vor.u32 %v3124, %v3120
    %v3126 = vrot.slane %v3125, 4
    %v3128 = vshll.u32 %v2385, 16
    %v3130 = vrot.slane %v3128, 5
    %v3131 = vsel %vm1410, %v3126, %v3130
    %v3132 = vshrl.u32 %v2385, 16
    %v3134 = vrot.slane %v3132, 4
    %v3135 = vor.u32 %v3134, %v3130
    %v3136 = vrot.slane %v3135, 4
    %v3138 = vshll.u32 %v2386, 16
    %v3140 = vrot.slane %v3138, 5
    %v3141 = vsel %vm1410, %v3136, %v3140
    %v3142 = vshrl.u32 %v2386, 16
    %v3144 = vrot.slane %v3142, 4
    %v3145 = vor.u32 %v3144, %v3140
    %v3146 = vrot.slane %v3145, 4
    %v3148 = vshll.u32 %v2387, 16
    %v3150 = vrot.slane %v3148, 5
    %v3151 = vsel %vm1410, %v3146, %v3150
    %v3152 = vshrl.u32 %v2387, 16
    %v3154 = vrot.slane %v3152, 4
    %v3155 = vor.u32 %v3154, %v3150
    %v3156 = vrot.slane %v3155, 4
    %v3158 = vshll.u32 %v2388, 16
    %v3160 = vrot.slane %v3158, 5
    %v3161 = vsel %vm1410, %v3156, %v3160
    %v3162 = vshrl.u32 %v2388, 16
    %v3164 = vrot.slane %v3162, 4
    %v3165 = vor.u32 %v3164, %v3160
    %v3166 = vrot.slane %v3165, 4
    %v3168 = vshll.u32 %v2389, 16
    %v3170 = vrot.slane %v3168, 5
    %v3171 = vsel %vm1410, %v3166, %v3170
    %v3172 = vshrl.u32 %v2389, 16
    %v3174 = vrot.slane %v3172, 4
    %v3175 = vor.u32 %v3174, %v3170
    %v3176 = vrot.slane %v3175, 4
    %v3178 = vshll.u32 %v2390, 16
    %v3180 = vrot.slane %v3178, 5
    %v3181 = vsel %vm1410, %v3176, %v3180
    %v3182 = vshrl.u32 %v2390, 16
    %v3184 = vrot.slane %v3182, 4
    %v3185 = vor.u32 %v3184, %v3180
    %v3186 = vrot.slane %v3185, 4
    %v3188 = vshll.u32 %v2391, 16
    %v3190 = vrot.slane %v3188, 5
    %v3191 = vsel %vm1410, %v3186, %v3190
    %v3192 = vshrl.u32 %v2391, 16
    %v3194 = vrot.slane %v3192, 4
    %v3195 = vor.u32 %v3194, %v3190
    %v3196 = vrot.slane %v3195, 4
    %v3198 = vshll.u32 %v2392, 16
    %v3200 = vrot.slane %v3198, 5
    %v3201 = vsel %vm1410, %v3196, %v3200
    %3202 = vrot.lane.b32.xlu0 %v2891, 64
    %v3203 = vpop.permute.xlu0 %3202
    %3204 = vrot.lane.b32.xlu0 %v2901, 64
    %v3205 = vpop.permute.xlu0 %3204
    %3206 = vrot.lane.b32.xlu0 %v2911, 64
    %v3207 = vpop.permute.xlu0 %3206
    %3208 = vrot.lane.b32.xlu0 %v2921, 64
    %v3209 = vpop.permute.xlu0 %3208
    %3210 = vrot.lane.b32.xlu0 %v2931, 64
    %v3211 = vpop.permute.xlu0 %3210
    %3212 = vrot.lane.b32.xlu0 %v2941, 64
    %v3213 = vpop.permute.xlu0 %3212
    %3214 = vrot.lane.b32.xlu0 %v2951, 64
    %v3215 = vpop.permute.xlu0 %3214
    %3216 = vrot.lane.b32.xlu0 %v2961, 64
    %v3217 = vpop.permute.xlu0 %3216
    %3218 = vrot.lane.b32.xlu0 %v2971, 64
    %v3219 = vpop.permute.xlu0 %3218
    %3220 = vrot.lane.b32.xlu0 %v2981, 64
    %v3221 = vpop.permute.xlu0 %3220
    %3222 = vrot.lane.b32.xlu0 %v2991, 64
    %v3223 = vpop.permute.xlu0 %3222
    %3224 = vrot.lane.b32.xlu0 %v3001, 64
    %v3225 = vpop.permute.xlu0 %3224
    %3226 = vrot.lane.b32.xlu0 %v3011, 64
    %v3227 = vpop.permute.xlu0 %3226
    %3228 = vrot.lane.b32.xlu0 %v3021, 64
    %v3229 = vpop.permute.xlu0 %3228
    %3230 = vrot.lane.b32.xlu0 %v3031, 64
    %v3231 = vpop.permute.xlu0 %3230
    %3232 = vrot.lane.b32.xlu0 %v3041, 64
    %v3233 = vpop.permute.xlu0 %3232
    %3234 = vrot.lane.b32.xlu0 %v3051, 64
    %v3235 = vpop.permute.xlu0 %3234
    %3236 = vrot.lane.b32.xlu0 %v3061, 64
    %v3237 = vpop.permute.xlu0 %3236
    %3238 = vrot.lane.b32.xlu0 %v3071, 64
    %v3239 = vpop.permute.xlu0 %3238
    %3240 = vrot.lane.b32.xlu0 %v3081, 64
    %v3241 = vpop.permute.xlu0 %3240
    %3242 = vrot.lane.b32.xlu0 %v3091, 64
    %v3243 = vpop.permute.xlu0 %3242
    %3244 = vrot.lane.b32.xlu0 %v3101, 64
    %v3245 = vpop.permute.xlu0 %3244
    %3246 = vrot.lane.b32.xlu0 %v3111, 64
    %v3247 = vpop.permute.xlu0 %3246
    %3248 = vrot.lane.b32.xlu0 %v3121, 64
    %v3249 = vpop.permute.xlu0 %3248
    %3250 = vrot.lane.b32.xlu0 %v3131, 64
    %v3251 = vpop.permute.xlu0 %3250
    %3252 = vrot.lane.b32.xlu0 %v3141, 64
    %v3253 = vpop.permute.xlu0 %3252
    %3254 = vrot.lane.b32.xlu0 %v3151, 64
    %v3255 = vpop.permute.xlu0 %3254
    %3256 = vrot.lane.b32.xlu0 %v3161, 64
    %v3257 = vpop.permute.xlu0 %3256
    %3258 = vrot.lane.b32.xlu0 %v3171, 64
    %v3259 = vpop.permute.xlu0 %3258
    %3260 = vrot.lane.b32.xlu0 %v3181, 64
    %v3261 = vpop.permute.xlu0 %3260
    %3262 = vrot.lane.b32.xlu0 %v3191, 64
    %v3263 = vpop.permute.xlu0 %3262
    %3264 = vrot.lane.b32.xlu0 %v3201, 64
    %v3265 = vpop.permute.xlu0 %3264
    %vm3298 = vcmask 781824
    %3299 = vst.msk [vmem:[#allocation2 + $0x8] sm:$0xf] %vm3298, %v3203
    %3300 = vst.msk [vmem:[#allocation2 + $0xc] sm:$0xf] %vm3298, %v3205
    %3301 = vst.msk [vmem:[#allocation2 + $0x10] sm:$0xf] %vm3298, %v3207
    %3302 = vst.msk [vmem:[#allocation2 + $0x14] sm:$0xf] %vm3298, %v3209
    %3303 = vst.msk [vmem:[#allocation2 + $0x18] sm:$0xf] %vm3298, %v3211
    %3304 = vst.msk [vmem:[#allocation2 + $0x1c] sm:$0xf] %vm3298, %v3213
    %3305 = vst.msk [vmem:[#allocation2 + $0x20] sm:$0xf] %vm3298, %v3215
    %3306 = vst.msk [vmem:[#allocation2 + $0x24] sm:$0xf] %vm3298, %v3217
    %3307 = vst.msk [vmem:[#allocation2 + $0x28] sm:$0xf] %vm3298, %v3219
    %3308 = vst.msk [vmem:[#allocation2 + $0x2c] sm:$0xf] %vm3298, %v3221
    %3309 = vst.msk [vmem:[#allocation2 + $0x30] sm:$0xf] %vm3298, %v3223
    %3310 = vst.msk [vmem:[#allocation2 + $0x34] sm:$0xf] %vm3298, %v3225
    %3311 = vst.msk [vmem:[#allocation2 + $0x38] sm:$0xf] %vm3298, %v3227
    %3312 = vst.msk [vmem:[#allocation2 + $0x3c] sm:$0xf] %vm3298, %v3229
    %3313 = vst.msk [vmem:[#allocation2 + $0x40] sm:$0xf] %vm3298, %v3231
    %3314 = vst.msk [vmem:[#allocation2 + $0x44] sm:$0xf] %vm3298, %v3233
    %3315 = vst.msk [vmem:[#allocation2 + $0x48] sm:$0xf] %vm3298, %v3235
    %3316 = vst.msk [vmem:[#allocation2 + $0x4c] sm:$0xf] %vm3298, %v3237
    %3317 = vst.msk [vmem:[#allocation2 + $0x50] sm:$0xf] %vm3298, %v3239
    %3318 = vst.msk [vmem:[#allocation2 + $0x54] sm:$0xf] %vm3298, %v3241
    %3319 = vst.msk [vmem:[#allocation2 + $0x58] sm:$0xf] %vm3298, %v3243
    %3320 = vst.msk [vmem:[#allocation2 + $0x5c] sm:$0xf] %vm3298, %v3245
    %3321 = vst.msk [vmem:[#allocation2 + $0x60] sm:$0xf] %vm3298, %v3247
    %3322 = vst.msk [vmem:[#allocation2 + $0x64] sm:$0xf] %vm3298, %v3249
    %3323 = vst.msk [vmem:[#allocation2 + $0x68] sm:$0xf] %vm3298, %v3251
    %3324 = vst.msk [vmem:[#allocation2 + $0x6c] sm:$0xf] %vm3298, %v3253
    %3325 = vst.msk [vmem:[#allocation2 + $0x70] sm:$0xf] %vm3298, %v3255
    %3326 = vst.msk [vmem:[#allocation2 + $0x74] sm:$0xf] %vm3298, %v3257
    %3327 = vst.msk [vmem:[#allocation2 + $0x78] sm:$0xf] %vm3298, %v3259
    %3328 = vst.msk [vmem:[#allocation2 + $0x7c] sm:$0xf] %vm3298, %v3261
    %3329 = vst.msk [vmem:[#allocation2 + $0x80] sm:$0xf] %vm3298, %v3263
    %3330 = vst.msk [vmem:[#allocation2 + $0x84] sm:$0xf] %vm3298, %v3265
    %v3331 = vld [vmem:[#allocation2] sm:$0xf]
    %v3332 = vld [vmem:[#allocation2 + $0x4] sm:$0xf]
    %v3333 = vld [vmem:[#allocation2 + $0x8] sm:$0xf]
    %v3334 = vld [vmem:[#allocation2 + $0xc] sm:$0xf]
    %v3335 = vld [vmem:[#allocation2 + $0x10] sm:$0xf]
    %v3336 = vld [vmem:[#allocation2 + $0x14] sm:$0xf]
    %v3337 = vld [vmem:[#allocation2 + $0x18] sm:$0xf]
    %v3338 = vld [vmem:[#allocation2 + $0x1c] sm:$0xf]
    %v3339 = vld [vmem:[#allocation2 + $0x20] sm:$0xf]
    %v3340 = vld [vmem:[#allocation2 + $0x24] sm:$0xf]
    %v3341 = vld [vmem:[#allocation2 + $0x28] sm:$0xf]
    %v3342 = vld [vmem:[#allocation2 + $0x2c] sm:$0xf]
    %v3343 = vld [vmem:[#allocation2 + $0x30] sm:$0xf]
    %v3344 = vld [vmem:[#allocation2 + $0x34] sm:$0xf]
    %v3345 = vld [vmem:[#allocation2 + $0x38] sm:$0xf]
    %v3346 = vld [vmem:[#allocation2 + $0x3c] sm:$0xf]
    %v3347 = vld [vmem:[#allocation2 + $0x40] sm:$0xf]
    %v3348 = vld [vmem:[#allocation2 + $0x44] sm:$0xf]
    %v3349 = vld [vmem:[#allocation2 + $0x48] sm:$0xf]
    %v3350 = vld [vmem:[#allocation2 + $0x4c] sm:$0xf]
    %v3351 = vld [vmem:[#allocation2 + $0x50] sm:$0xf]
    %v3352 = vld [vmem:[#allocation2 + $0x54] sm:$0xf]
    %v3353 = vld [vmem:[#allocation2 + $0x58] sm:$0xf]
    %v3354 = vld [vmem:[#allocation2 + $0x5c] sm:$0xf]
    %v3355 = vld [vmem:[#allocation2 + $0x60] sm:$0xf]
    %v3356 = vld [vmem:[#allocation2 + $0x64] sm:$0xf]
    %v3357 = vld [vmem:[#allocation2 + $0x68] sm:$0xf]
    %v3358 = vld [vmem:[#allocation2 + $0x6c] sm:$0xf]
    %v3359 = vld [vmem:[#allocation2 + $0x70] sm:$0xf]
    %v3360 = vld [vmem:[#allocation2 + $0x74] sm:$0xf]
    %v3361 = vld [vmem:[#allocation2 + $0x78] sm:$0xf]
    %v3362 = vld [vmem:[#allocation2 + $0x7c] sm:$0xf]
    %v3363 = vld [vmem:[#allocation6] sm:$0xf]
    %v3364 = vld [vmem:[#allocation6 + $0x4] sm:$0xf]
    %v3365 = vld [vmem:[#allocation6 + $0x8] sm:$0xf]
    %v3366 = vld [vmem:[#allocation6 + $0xc] sm:$0xf]
    %v3367 = vld [vmem:[#allocation6 + $0x10] sm:$0xf]
    %v3368 = vld [vmem:[#allocation6 + $0x14] sm:$0xf]
    %v3369 = vld [vmem:[#allocation6 + $0x18] sm:$0xf]
    %v3370 = vld [vmem:[#allocation6 + $0x1c] sm:$0xf]
    %v3371 = vld [vmem:[#allocation6 + $0x20] sm:$0xf]
    %v3372 = vld [vmem:[#allocation6 + $0x24] sm:$0xf]
    %v3373 = vld [vmem:[#allocation6 + $0x28] sm:$0xf]
    %v3374 = vld [vmem:[#allocation6 + $0x2c] sm:$0xf]
    %v3375 = vld [vmem:[#allocation6 + $0x30] sm:$0xf]
    %v3376 = vld [vmem:[#allocation6 + $0x34] sm:$0xf]
    %v3377 = vld [vmem:[#allocation6 + $0x38] sm:$0xf]
    %v3378 = vld [vmem:[#allocation6 + $0x3c] sm:$0xf]
    %v3379 = vld [vmem:[#allocation2 + $0x80] sm:$0xf]
    %v3380 = vld [vmem:[#allocation2 + $0x84] sm:$0xf]
    %s3381 = scalar_lea.vmem [#allocation6], 64
    %v3382 = vld [vmem:[%s3381] sm:$0xf]
    %v3383 = vld [vmem:[%s3381 + $0x4] sm:$0xf]
    %v3384 = vld [vmem:[%s3381 + $0x8] sm:$0xf]
    %v3385 = vld [vmem:[%s3381 + $0xc] sm:$0xf]
    %v3386 = vld [vmem:[%s3381 + $0x10] sm:$0xf]
    %v3387 = vld [vmem:[%s3381 + $0x14] sm:$0xf]
    %v3388 = vld [vmem:[%s3381 + $0x18] sm:$0xf]
    %v3389 = vld [vmem:[%s3381 + $0x1c] sm:$0xf]
    %v3390 = vld [vmem:[%s3381 + $0x20] sm:$0xf]
    %v3391 = vld [vmem:[%s3381 + $0x24] sm:$0xf]
    %v3392 = vld [vmem:[%s3381 + $0x28] sm:$0xf]
    %v3393 = vld [vmem:[%s3381 + $0x2c] sm:$0xf]
    %v3394 = vld [vmem:[%s3381 + $0x30] sm:$0xf]
    %v3395 = vld [vmem:[%s3381 + $0x34] sm:$0xf]
    %v3396 = vld [vmem:[%s3381 + $0x38] sm:$0xf]
    %v3397 = vld [vmem:[%s3381 + $0x3c] sm:$0xf]
    %v3430 = vunpack.c.l.b16 %v3333
    %v3431 = vunpack.c.l.b16 %v3334
    %v3432 = vunpack.c.l.b16 %v3335
    %v3433 = vunpack.c.l.b16 %v3336
    %v3434 = vunpack.c.l.b16 %v3337
    %v3435 = vunpack.c.l.b16 %v3338
    %v3436 = vunpack.c.l.b16 %v3339
    %v3437 = vunpack.c.l.b16 %v3340
    %v3438 = vunpack.c.l.b16 %v3341
    %v3439 = vunpack.c.l.b16 %v3342
    %v3440 = vunpack.c.l.b16 %v3343
    %v3441 = vunpack.c.l.b16 %v3344
    %v3442 = vunpack.c.l.b16 %v3345
    %v3443 = vunpack.c.l.b16 %v3346
    %v3444 = vunpack.c.l.b16 %v3347
    %v3445 = vunpack.c.l.b16 %v3348
    %v3446 = vunpack.c.l.b16 %v3349
    %v3447 = vunpack.c.l.b16 %v3350
    %v3448 = vunpack.c.l.b16 %v3351
    %v3449 = vunpack.c.l.b16 %v3352
    %v3450 = vunpack.c.l.b16 %v3353
    %v3451 = vunpack.c.l.b16 %v3354
    %v3452 = vunpack.c.l.b16 %v3355
    %v3453 = vunpack.c.l.b16 %v3356
    %v3454 = vunpack.c.l.b16 %v3357
    %v3455 = vunpack.c.l.b16 %v3358
    %v3456 = vunpack.c.l.b16 %v3359
    %v3457 = vunpack.c.l.b16 %v3360
    %v3458 = vunpack.c.l.b16 %v3361
    %v3459 = vunpack.c.l.b16 %v3362
    %v3460 = vunpack.c.l.b16 %v3379
    %v3461 = vunpack.c.l.b16 %v3380
    %v3462 = vpack.c.b16 %v3431, %v3430
    %v3463 = vpack.c.b16 %v3433, %v3432
    %v3464 = vpack.c.b16 %v3435, %v3434
    %v3465 = vpack.c.b16 %v3437, %v3436
    %v3466 = vpack.c.b16 %v3439, %v3438
    %v3467 = vpack.c.b16 %v3441, %v3440
    %v3468 = vpack.c.b16 %v3443, %v3442
    %v3469 = vpack.c.b16 %v3445, %v3444
    %v3470 = vpack.c.b16 %v3447, %v3446
    %v3471 = vpack.c.b16 %v3449, %v3448
    %v3472 = vpack.c.b16 %v3451, %v3450
    %v3473 = vpack.c.b16 %v3453, %v3452
    %v3474 = vpack.c.b16 %v3455, %v3454
    %v3475 = vpack.c.b16 %v3457, %v3456
    %v3476 = vpack.c.b16 %v3459, %v3458
    %v3477 = vpack.c.b16 %v3461, %v3460
    %v3510 = vunpack.c.l.b16 %v3382
    %v3511 = vunpack.c.l.b16 %v3383
    %v3512 = vunpack.c.l.b16 %v3384
    %v3513 = vunpack.c.l.b16 %v3385
    %v3514 = vunpack.c.l.b16 %v3386
    %v3515 = vunpack.c.l.b16 %v3387
    %v3516 = vunpack.c.l.b16 %v3388
    %v3517 = vunpack.c.l.b16 %v3389
    %v3518 = vunpack.c.l.b16 %v3390
    %v3519 = vunpack.c.l.b16 %v3391
    %v3520 = vunpack.c.l.b16 %v3392
    %v3521 = vunpack.c.l.b16 %v3393
    %v3522 = vunpack.c.l.b16 %v3394
    %v3523 = vunpack.c.l.b16 %v3395
    %v3524 = vunpack.c.l.b16 %v3396
    %v3525 = vunpack.c.l.b16 %v3397
    %v3526 = vpack.c.b16 %v3511, %v3510
    %v3527 = vpack.c.b16 %v3513, %v3512
    %v3528 = vpack.c.b16 %v3515, %v3514
    %v3529 = vpack.c.b16 %v3517, %v3516
    %v3530 = vpack.c.b16 %v3519, %v3518
    %v3531 = vpack.c.b16 %v3521, %v3520
    %v3532 = vpack.c.b16 %v3523, %v3522
    %v3533 = vpack.c.b16 %v3525, %v3524
    %3542 = vmatprep.subr.bf16.mxu0 0
    %3543 = vmatpush1.bf16.msra.mxu0 %v3533
    %3544 = vmatprep.subr.bf16.mxu0 0
    %3545 = vmatpush1.bf16.msra.mxu0 %v3532
    %3546 = vmatprep.subr.bf16.mxu0 0
    %3547 = vmatpush1.bf16.msra.mxu0 %v3531
    %3548 = vmatprep.subr.bf16.mxu0 0
    %3549 = vmatpush1.bf16.msra.mxu0 %v3530
    %3550 = vmatprep.subr.bf16.mxu0 0
    %3551 = vmatpush1.bf16.msra.mxu0 %v3529
    %3552 = vmatprep.subr.bf16.mxu0 0
    %3553 = vmatpush1.bf16.msra.mxu0 %v3528
    %3554 = vmatprep.subr.bf16.mxu0 0
    %3555 = vmatpush1.bf16.msra.mxu0 %v3527
    %3556 = vmatprep.subr.bf16.mxu0 0
    %3557 = vmatpush1.bf16.msra.mxu0 %v3526
    %3558 = vmatprep.subr.bf16.mxu0 0
    %3559 = vmatpush2.bf16.msra.mxu0 0
    %3560 = vmatprep.subr.bf16.mxu0 0
    %3561 = vmatpush2.bf16.msra.mxu0 0
    %3562 = vmatprep.subr.bf16.mxu0 0
    %3563 = vmatpush2.bf16.msra.mxu0 0
    %3564 = vmatprep.subr.bf16.mxu0 0
    %3565 = vmatpush2.bf16.msra.mxu0 0
    %3566 = vmatprep.subr.bf16.mxu0 0
    %3567 = vmatpush2.bf16.msra.mxu0 0
    %3568 = vmatprep.subr.bf16.mxu0 0
    %3569 = vmatpush2.bf16.msra.mxu0 0
    %3570 = vmatprep.subr.bf16.mxu0 0
    %3571 = vmatpush2.bf16.msra.mxu0 0
    %3572 = vmatprep.subr.bf16.mxu0 0
    %3573 = vmatpush2.bf16.msra.mxu0 0
    %3574 = vmatprep.mubr.bf16.mxu0 0
    %3575 = vmatmul.mubr.bf16.gmra.mxu0 %v3462
    %v3576 = vpop.f32.mrf.mxu0
    %v3577 = vadd.f32 0.0, %v3576
    %v3578 = vpop.f32.mrf.mxu0
    %v3579 = vpop.f32.mrf.mxu0
    %v3580 = vadd.f32 0.0, %v3579
    %v3581 = vpop.f32.mrf.mxu0
    %3582 = vmatprep.mubr.bf16.mxu0 0
    %3583 = vmatmul.mubr.bf16.gmra.mxu0 %v3463
    %v3584 = vpop.f32.mrf.mxu0
    %v3585 = vadd.f32 0.0, %v3584
    %v3586 = vpop.f32.mrf.mxu0
    %v3587 = vpop.f32.mrf.mxu0
    %v3588 = vadd.f32 0.0, %v3587
    %v3589 = vpop.f32.mrf.mxu0
    %3590 = vmatprep.mubr.bf16.mxu0 0
    %3591 = vmatmul.mubr.bf16.gmra.mxu0 %v3464
    %v3592 = vpop.f32.mrf.mxu0
    %v3593 = vadd.f32 0.0, %v3592
    %v3594 = vpop.f32.mrf.mxu0
    %v3595 = vpop.f32.mrf.mxu0
    %v3596 = vadd.f32 0.0, %v3595
    %v3597 = vpop.f32.mrf.mxu0
    %3598 = vmatprep.mubr.bf16.mxu0 0
    %3599 = vmatmul.mubr.bf16.gmra.mxu0 %v3465
    %v3600 = vpop.f32.mrf.mxu0
    %v3601 = vadd.f32 0.0, %v3600
    %v3602 = vpop.f32.mrf.mxu0
    %v3603 = vpop.f32.mrf.mxu0
    %v3604 = vadd.f32 0.0, %v3603
    %v3605 = vpop.f32.mrf.mxu0
    %3606 = vmatprep.mubr.bf16.mxu0 0
    %3607 = vmatmul.mubr.bf16.gmra.mxu0 %v3466
    %v3608 = vpop.f32.mrf.mxu0
    %v3609 = vadd.f32 0.0, %v3608
    %v3610 = vpop.f32.mrf.mxu0
    %v3611 = vpop.f32.mrf.mxu0
    %v3612 = vadd.f32 0.0, %v3611
    %v3613 = vpop.f32.mrf.mxu0
    %3614 = vmatprep.mubr.bf16.mxu0 0
    %3615 = vmatmul.mubr.bf16.gmra.mxu0 %v3467
    %v3616 = vpop.f32.mrf.mxu0
    %v3617 = vadd.f32 0.0, %v3616
    %v3618 = vpop.f32.mrf.mxu0
    %v3619 = vpop.f32.mrf.mxu0
    %v3620 = vadd.f32 0.0, %v3619
    %v3621 = vpop.f32.mrf.mxu0
    %3622 = vmatprep.mubr.bf16.mxu0 0
    %3623 = vmatmul.mubr.bf16.gmra.mxu0 %v3468
    %v3624 = vpop.f32.mrf.mxu0
    %v3625 = vadd.f32 0.0, %v3624
    %v3626 = vpop.f32.mrf.mxu0
    %v3627 = vpop.f32.mrf.mxu0
    %v3628 = vadd.f32 0.0, %v3627
    %v3629 = vpop.f32.mrf.mxu0
    %3630 = vmatprep.mubr.bf16.mxu0 0
    %3631 = vmatmul.mubr.bf16.gmra.mxu0 %v3469
    %v3632 = vpop.f32.mrf.mxu0
    %v3633 = vadd.f32 0.0, %v3632
    %v3634 = vpop.f32.mrf.mxu0
    %v3635 = vpop.f32.mrf.mxu0
    %v3636 = vadd.f32 0.0, %v3635
    %v3637 = vpop.f32.mrf.mxu0
    %3638 = vmatprep.mubr.bf16.mxu0 0
    %3639 = vmatmul.mubr.bf16.gmra.mxu0 %v3470
    %v3640 = vpop.f32.mrf.mxu0
    %v3641 = vadd.f32 0.0, %v3640
    %v3642 = vpop.f32.mrf.mxu0
    %v3643 = vpop.f32.mrf.mxu0
    %v3644 = vadd.f32 0.0, %v3643
    %v3645 = vpop.f32.mrf.mxu0
    %3646 = vmatprep.mubr.bf16.mxu0 0
    %3647 = vmatmul.mubr.bf16.gmra.mxu0 %v3471
    %v3648 = vpop.f32.mrf.mxu0
    %v3649 = vadd.f32 0.0, %v3648
    %v3650 = vpop.f32.mrf.mxu0
    %v3651 = vpop.f32.mrf.mxu0
    %v3652 = vadd.f32 0.0, %v3651
    %v3653 = vpop.f32.mrf.mxu0
    %3654 = vmatprep.mubr.bf16.mxu0 0
    %3655 = vmatmul.mubr.bf16.gmra.mxu0 %v3472
    %v3656 = vpop.f32.mrf.mxu0
    %v3657 = vadd.f32 0.0, %v3656
    %v3658 = vpop.f32.mrf.mxu0
    %v3659 = vpop.f32.mrf.mxu0
    %v3660 = vadd.f32 0.0, %v3659
    %v3661 = vpop.f32.mrf.mxu0
    %3662 = vmatprep.mubr.bf16.mxu0 0
    %3663 = vmatmul.mubr.bf16.gmra.mxu0 %v3473
    %v3664 = vpop.f32.mrf.mxu0
    %v3665 = vadd.f32 0.0, %v3664
    %v3666 = vpop.f32.mrf.mxu0
    %v3667 = vpop.f32.mrf.mxu0
    %v3668 = vadd.f32 0.0, %v3667
    %v3669 = vpop.f32.mrf.mxu0
    %3670 = vmatprep.mubr.bf16.mxu0 0
    %3671 = vmatmul.mubr.bf16.gmra.mxu0 %v3474
    %v3672 = vpop.f32.mrf.mxu0
    %v3673 = vadd.f32 0.0, %v3672
    %v3674 = vpop.f32.mrf.mxu0
    %v3675 = vpop.f32.mrf.mxu0
    %v3676 = vadd.f32 0.0, %v3675
    %v3677 = vpop.f32.mrf.mxu0
    %3678 = vmatprep.mubr.bf16.mxu0 0
    %3679 = vmatmul.mubr.bf16.gmra.mxu0 %v3475
    %v3680 = vpop.f32.mrf.mxu0
    %v3681 = vadd.f32 0.0, %v3680
    %v3682 = vpop.f32.mrf.mxu0
    %v3683 = vpop.f32.mrf.mxu0
    %v3684 = vadd.f32 0.0, %v3683
    %v3685 = vpop.f32.mrf.mxu0
    %3686 = vmatprep.mubr.bf16.mxu0 0
    %3687 = vmatmul.mubr.bf16.gmra.mxu0 %v3476
    %v3688 = vpop.f32.mrf.mxu0
    %v3689 = vadd.f32 0.0, %v3688
    %v3690 = vpop.f32.mrf.mxu0
    %v3691 = vpop.f32.mrf.mxu0
    %v3692 = vadd.f32 0.0, %v3691
    %v3693 = vpop.f32.mrf.mxu0
    %3694 = vmatprep.mubr.bf16.mxu0 0
    %3695 = vmatmul.mubr.bf16.gmra.mxu0 %v3477
    %v3696 = vpop.f32.mrf.mxu0
    %v3697 = vadd.f32 0.0, %v3696
    %v3698 = vpop.f32.mrf.mxu0
    %v3699 = vpop.f32.mrf.mxu0
    %v3700 = vadd.f32 0.0, %v3699
    %v3701 = vpop.f32.mrf.mxu0
    %3702 = vdwg.mxu0
    %v3705 = vunpack.c.l.b16 %v3331
    %v3706 = vunpack.c.l.b16 %v3332
    %v3707 = vpack.c.b16 %v3706, %v3705
    %v3725 = vunpack.c.l.b16 %v3363
    %v3726 = vunpack.c.l.b16 %v3364
    %v3727 = vunpack.c.l.b16 %v3365
    %v3728 = vunpack.c.l.b16 %v3366
    %v3729 = vunpack.c.l.b16 %v3367
    %v3730 = vunpack.c.l.b16 %v3368
    %v3731 = vunpack.c.l.b16 %v3369
    %v3732 = vunpack.c.l.b16 %v3370
    %v3733 = vunpack.c.l.b16 %v3371
    %v3734 = vunpack.c.l.b16 %v3372
    %v3735 = vunpack.c.l.b16 %v3373
    %v3736 = vunpack.c.l.b16 %v3374
    %v3737 = vunpack.c.l.b16 %v3375
    %v3738 = vunpack.c.l.b16 %v3376
    %v3739 = vunpack.c.l.b16 %v3377
    %v3740 = vunpack.c.l.b16 %v3378
    %v3741 = vpack.c.b16 %v3726, %v3725
    %v3742 = vpack.c.b16 %v3728, %v3727
    %v3743 = vpack.c.b16 %v3730, %v3729
    %v3744 = vpack.c.b16 %v3732, %v3731
    %v3745 = vpack.c.b16 %v3734, %v3733
    %v3746 = vpack.c.b16 %v3736, %v3735
    %v3747 = vpack.c.b16 %v3738, %v3737
    %v3748 = vpack.c.b16 %v3740, %v3739
    %3757 = vmatprep.subr.bf16.mxu0 0
    %3758 = vmatpush1.bf16.msra.mxu0 %v3748
    %3759 = vmatprep.subr.bf16.mxu0 0
    %3760 = vmatpush1.bf16.msra.mxu0 %v3747
    %3761 = vmatprep.subr.bf16.mxu0 0
    %3762 = vmatpush1.bf16.msra.mxu0 %v3746
    %3763 = vmatprep.subr.bf16.mxu0 0
    %3764 = vmatpush1.bf16.msra.mxu0 %v3745
    %3765 = vmatprep.subr.bf16.mxu0 0
    %3766 = vmatpush1.bf16.msra.mxu0 %v3744
    %3767 = vmatprep.subr.bf16.mxu0 0
    %3768 = vmatpush1.bf16.msra.mxu0 %v3743
    %3769 = vmatprep.subr.bf16.mxu0 0
    %3770 = vmatpush1.bf16.msra.mxu0 %v3742
    %3771 = vmatprep.subr.bf16.mxu0 0
    %3772 = vmatpush1.bf16.msra.mxu0 %v3741
    %3773 = vmatprep.subr.bf16.mxu0 0
    %3774 = vmatpush2.bf16.msra.mxu0 0
    %3775 = vmatprep.subr.bf16.mxu0 0
    %3776 = vmatpush2.bf16.msra.mxu0 0
    %3777 = vmatprep.subr.bf16.mxu0 0
    %3778 = vmatpush2.bf16.msra.mxu0 0
    %3779 = vmatprep.subr.bf16.mxu0 0
    %3780 = vmatpush2.bf16.msra.mxu0 0
    %3781 = vmatprep.subr.bf16.mxu0 0
    %3782 = vmatpush2.bf16.msra.mxu0 0
    %3783 = vmatprep.subr.bf16.mxu0 0
    %3784 = vmatpush2.bf16.msra.mxu0 0
    %3785 = vmatprep.subr.bf16.mxu0 0
    %3786 = vmatpush2.bf16.msra.mxu0 0
    %3787 = vmatprep.subr.bf16.mxu0 0
    %3788 = vmatpush2.bf16.msra.mxu0 0
    %3789 = vmatprep.mubr.bf16.mxu0 0
    %3790 = vmatmul.mubr.bf16.gmra.mxu0 %v3707
    %v3791 = vpop.f32.mrf.mxu0
    %v3792 = vadd.f32 %v3577, %v3791
    %v3793 = vpop.f32.mrf.mxu0
    %v3794 = vpop.f32.mrf.mxu0
    %v3795 = vadd.f32 %v3580, %v3794
    %v3796 = vpop.f32.mrf.mxu0
    %3797 = vmatprep.mubr.bf16.mxu0 0
    %3798 = vmatmul.mubr.bf16.gmra.mxu0 %v3462
    %v3799 = vpop.f32.mrf.mxu0
    %v3800 = vadd.f32 %v3585, %v3799
    %v3801 = vpop.f32.mrf.mxu0
    %v3802 = vpop.f32.mrf.mxu0
    %v3803 = vadd.f32 %v3588, %v3802
    %v3804 = vpop.f32.mrf.mxu0
    %3805 = vmatprep.mubr.bf16.mxu0 0
    %3806 = vmatmul.mubr.bf16.gmra.mxu0 %v3463
    %v3807 = vpop.f32.mrf.mxu0
    %v3808 = vadd.f32 %v3593, %v3807
    %v3809 = vpop.f32.mrf.mxu0
    %v3810 = vpop.f32.mrf.mxu0
    %v3811 = vadd.f32 %v3596, %v3810
    %v3812 = vpop.f32.mrf.mxu0
    %3813 = vmatprep.mubr.bf16.mxu0 0
    %3814 = vmatmul.mubr.bf16.gmra.mxu0 %v3464
    %v3815 = vpop.f32.mrf.mxu0
    %v3816 = vadd.f32 %v3601, %v3815
    %v3817 = vpop.f32.mrf.mxu0
    %v3818 = vpop.f32.mrf.mxu0
    %v3819 = vadd.f32 %v3604, %v3818
    %v3820 = vpop.f32.mrf.mxu0
    %3821 = vmatprep.mubr.bf16.mxu0 0
    %3822 = vmatmul.mubr.bf16.gmra.mxu0 %v3465
    %v3823 = vpop.f32.mrf.mxu0
    %v3824 = vadd.f32 %v3609, %v3823
    %v3825 = vpop.f32.mrf.mxu0
    %v3826 = vpop.f32.mrf.mxu0
    %v3827 = vadd.f32 %v3612, %v3826
    %v3828 = vpop.f32.mrf.mxu0
    %3829 = vmatprep.mubr.bf16.mxu0 0
    %3830 = vmatmul.mubr.bf16.gmra.mxu0 %v3466
    %v3831 = vpop.f32.mrf.mxu0
    %v3832 = vadd.f32 %v3617, %v3831
    %v3833 = vpop.f32.mrf.mxu0
    %v3834 = vpop.f32.mrf.mxu0
    %v3835 = vadd.f32 %v3620, %v3834
    %v3836 = vpop.f32.mrf.mxu0
    %3837 = vmatprep.mubr.bf16.mxu0 0
    %3838 = vmatmul.mubr.bf16.gmra.mxu0 %v3467
    %v3839 = vpop.f32.mrf.mxu0
    %v3840 = vadd.f32 %v3625, %v3839
    %v3841 = vpop.f32.mrf.mxu0
    %v3842 = vpop.f32.mrf.mxu0
    %v3843 = vadd.f32 %v3628, %v3842
    %v3844 = vpop.f32.mrf.mxu0
    %3845 = vmatprep.mubr.bf16.mxu0 0
    %3846 = vmatmul.mubr.bf16.gmra.mxu0 %v3468
    %v3847 = vpop.f32.mrf.mxu0
    %v3848 = vadd.f32 %v3633, %v3847
    %v3849 = vpop.f32.mrf.mxu0
    %v3850 = vpop.f32.mrf.mxu0
    %v3851 = vadd.f32 %v3636, %v3850
    %v3852 = vpop.f32.mrf.mxu0
    %3853 = vmatprep.mubr.bf16.mxu0 0
    %3854 = vmatmul.mubr.bf16.gmra.mxu0 %v3469
    %v3855 = vpop.f32.mrf.mxu0
    %v3856 = vadd.f32 %v3641, %v3855
    %v3857 = vpop.f32.mrf.mxu0
    %v3858 = vpop.f32.mrf.mxu0
    %v3859 = vadd.f32 %v3644, %v3858
    %v3860 = vpop.f32.mrf.mxu0
    %3861 = vmatprep.mubr.bf16.mxu0 0
    %3862 = vmatmul.mubr.bf16.gmra.mxu0 %v3470
    %v3863 = vpop.f32.mrf.mxu0
    %v3864 = vadd.f32 %v3649, %v3863
    %v3865 = vpop.f32.mrf.mxu0
    %v3866 = vpop.f32.mrf.mxu0
    %v3867 = vadd.f32 %v3652, %v3866
    %v3868 = vpop.f32.mrf.mxu0
    %3869 = vmatprep.mubr.bf16.mxu0 0
    %3870 = vmatmul.mubr.bf16.gmra.mxu0 %v3471
    %v3871 = vpop.f32.mrf.mxu0
    %v3872 = vadd.f32 %v3657, %v3871
    %v3873 = vpop.f32.mrf.mxu0
    %v3874 = vpop.f32.mrf.mxu0
    %v3875 = vadd.f32 %v3660, %v3874
    %v3876 = vpop.f32.mrf.mxu0
    %3877 = vmatprep.mubr.bf16.mxu0 0
    %3878 = vmatmul.mubr.bf16.gmra.mxu0 %v3472
    %v3879 = vpop.f32.mrf.mxu0
    %v3880 = vadd.f32 %v3665, %v3879
    %v3881 = vpop.f32.mrf.mxu0
    %v3882 = vpop.f32.mrf.mxu0
    %v3883 = vadd.f32 %v3668, %v3882
    %v3884 = vpop.f32.mrf.mxu0
    %3885 = vmatprep.mubr.bf16.mxu0 0
    %3886 = vmatmul.mubr.bf16.gmra.mxu0 %v3473
    %v3887 = vpop.f32.mrf.mxu0
    %v3888 = vadd.f32 %v3673, %v3887
    %v3889 = vpop.f32.mrf.mxu0
    %v3890 = vpop.f32.mrf.mxu0
    %v3891 = vadd.f32 %v3676, %v3890
    %v3892 = vpop.f32.mrf.mxu0
    %3893 = vmatprep.mubr.bf16.mxu0 0
    %3894 = vmatmul.mubr.bf16.gmra.mxu0 %v3474
    %v3895 = vpop.f32.mrf.mxu0
    %v3896 = vadd.f32 %v3681, %v3895
    %v3897 = vpop.f32.mrf.mxu0
    %v3898 = vpop.f32.mrf.mxu0
    %v3899 = vadd.f32 %v3684, %v3898
    %v3900 = vpop.f32.mrf.mxu0
    %3901 = vmatprep.mubr.bf16.mxu0 0
    %3902 = vmatmul.mubr.bf16.gmra.mxu0 %v3475
    %v3903 = vpop.f32.mrf.mxu0
    %v3904 = vadd.f32 %v3689, %v3903
    %v3905 = vpop.f32.mrf.mxu0
    %v3906 = vpop.f32.mrf.mxu0
    %v3907 = vadd.f32 %v3692, %v3906
    %v3908 = vpop.f32.mrf.mxu0
    %3909 = vmatprep.mubr.bf16.mxu0 0
    %3910 = vmatmul.mubr.bf16.gmra.mxu0 %v3476
    %v3911 = vpop.f32.mrf.mxu0
    %v3912 = vadd.f32 %v3697, %v3911
    %v3913 = vpop.f32.mrf.mxu0
    %v3914 = vpop.f32.mrf.mxu0
    %v3915 = vadd.f32 %v3700, %v3914
    %v3916 = vpop.f32.mrf.mxu0
    %3917 = vdwg.mxu0
    %v3918 = vld [vmem:[#allocation2 + $0x10] sm:$0xf]
    %v3919 = vld [vmem:[#allocation2 + $0x14] sm:$0xf]
    %v3920 = vld [vmem:[#allocation2 + $0x18] sm:$0xf]
    %v3921 = vld [vmem:[#allocation2 + $0x1c] sm:$0xf]
    %v3922 = vld [vmem:[#allocation2 + $0x20] sm:$0xf]
    %v3923 = vld [vmem:[#allocation2 + $0x24] sm:$0xf]
    %v3924 = vld [vmem:[#allocation2 + $0x28] sm:$0xf]
    %v3925 = vld [vmem:[#allocation2 + $0x2c] sm:$0xf]
    %v3926 = vld [vmem:[#allocation2 + $0x30] sm:$0xf]
    %v3927 = vld [vmem:[#allocation2 + $0x34] sm:$0xf]
    %v3928 = vld [vmem:[#allocation2 + $0x38] sm:$0xf]
    %v3929 = vld [vmem:[#allocation2 + $0x3c] sm:$0xf]
    %v3930 = vld [vmem:[#allocation2 + $0x40] sm:$0xf]
    %v3931 = vld [vmem:[#allocation2 + $0x44] sm:$0xf]
    %v3932 = vld [vmem:[#allocation2 + $0x48] sm:$0xf]
    %v3933 = vld [vmem:[#allocation2 + $0x4c] sm:$0xf]
    %v3934 = vld [vmem:[#allocation2 + $0x50] sm:$0xf]
    %v3935 = vld [vmem:[#allocation2 + $0x54] sm:$0xf]
    %v3936 = vld [vmem:[#allocation2 + $0x58] sm:$0xf]
    %v3937 = vld [vmem:[#allocation2 + $0x5c] sm:$0xf]
    %v3938 = vld [vmem:[#allocation2 + $0x60] sm:$0xf]
    %v3939 = vld [vmem:[#allocation2 + $0x64] sm:$0xf]
    %v3940 = vld [vmem:[#allocation2 + $0x68] sm:$0xf]
    %v3941 = vld [vmem:[#allocation2 + $0x6c] sm:$0xf]
    %v3942 = vld [vmem:[#allocation2 + $0x70] sm:$0xf]
    %v3943 = vld [vmem:[#allocation2 + $0x74] sm:$0xf]
    %v3944 = vld [vmem:[#allocation2 + $0x78] sm:$0xf]
    %v3945 = vld [vmem:[#allocation2 + $0x7c] sm:$0xf]
    %v3946 = vld [vmem:[#allocation2 + $0x80] sm:$0xf]
    %v3947 = vld [vmem:[#allocation2 + $0x84] sm:$0xf]
    %v3948 = vld [vmem:[#allocation2 + $0x88] sm:$0xf]
    %v3949 = vld [vmem:[#allocation2 + $0x8c] sm:$0xf]
    %s3950 = scalar_lea.vmem [#allocation6], 128
    %v3951 = vld [vmem:[%s3950] sm:$0xf]
    %v3952 = vld [vmem:[%s3950 + $0x4] sm:$0xf]
    %v3953 = vld [vmem:[%s3950 + $0x8] sm:$0xf]
    %v3954 = vld [vmem:[%s3950 + $0xc] sm:$0xf]
    %v3955 = vld [vmem:[%s3950 + $0x10] sm:$0xf]
    %v3956 = vld [vmem:[%s3950 + $0x14] sm:$0xf]
    %v3957 = vld [vmem:[%s3950 + $0x18] sm:$0xf]
    %v3958 = vld [vmem:[%s3950 + $0x1c] sm:$0xf]
    %v3959 = vld [vmem:[%s3950 + $0x20] sm:$0xf]
    %v3960 = vld [vmem:[%s3950 + $0x24] sm:$0xf]
    %v3961 = vld [vmem:[%s3950 + $0x28] sm:$0xf]
    %v3962 = vld [vmem:[%s3950 + $0x2c] sm:$0xf]
    %v3963 = vld [vmem:[%s3950 + $0x30] sm:$0xf]
    %v3964 = vld [vmem:[%s3950 + $0x34] sm:$0xf]
    %v3965 = vld [vmem:[%s3950 + $0x38] sm:$0xf]
    %v3966 = vld [vmem:[%s3950 + $0x3c] sm:$0xf]
    %v3999 = vunpack.c.l.b16 %v3918
    %v4000 = vunpack.c.l.b16 %v3919
    %v4001 = vunpack.c.l.b16 %v3920
    %v4002 = vunpack.c.l.b16 %v3921
    %v4003 = vunpack.c.l.b16 %v3922
    %v4004 = vunpack.c.l.b16 %v3923
    %v4005 = vunpack.c.l.b16 %v3924
    %v4006 = vunpack.c.l.b16 %v3925
    %v4007 = vunpack.c.l.b16 %v3926
    %v4008 = vunpack.c.l.b16 %v3927
    %v4009 = vunpack.c.l.b16 %v3928
    %v4010 = vunpack.c.l.b16 %v3929
    %v4011 = vunpack.c.l.b16 %v3930
    %v4012 = vunpack.c.l.b16 %v3931
    %v4013 = vunpack.c.l.b16 %v3932
    %v4014 = vunpack.c.l.b16 %v3933
    %v4015 = vunpack.c.l.b16 %v3934
    %v4016 = vunpack.c.l.b16 %v3935
    %v4017 = vunpack.c.l.b16 %v3936
    %v4018 = vunpack.c.l.b16 %v3937
    %v4019 = vunpack.c.l.b16 %v3938
    %v4020 = vunpack.c.l.b16 %v3939
    %v4021 = vunpack.c.l.b16 %v3940
    %v4022 = vunpack.c.l.b16 %v3941
    %v4023 = vunpack.c.l.b16 %v3942
    %v4024 = vunpack.c.l.b16 %v3943
    %v4025 = vunpack.c.l.b16 %v3944
    %v4026 = vunpack.c.l.b16 %v3945
    %v4027 = vunpack.c.l.b16 %v3946
    %v4028 = vunpack.c.l.b16 %v3947
    %v4029 = vunpack.c.l.b16 %v3948
    %v4030 = vunpack.c.l.b16 %v3949
    %v4031 = vpack.c.b16 %v4000, %v3999
    %v4032 = vpack.c.b16 %v4002, %v4001
    %v4033 = vpack.c.b16 %v4004, %v4003
    %v4034 = vpack.c.b16 %v4006, %v4005
    %v4035 = vpack.c.b16 %v4008, %v4007
    %v4036 = vpack.c.b16 %v4010, %v4009
    %v4037 = vpack.c.b16 %v4012, %v4011
    %v4038 = vpack.c.b16 %v4014, %v4013
    %v4039 = vpack.c.b16 %v4016, %v4015
    %v4040 = vpack.c.b16 %v4018, %v4017
    %v4041 = vpack.c.b16 %v4020, %v4019
    %v4042 = vpack.c.b16 %v4022, %v4021
    %v4043 = vpack.c.b16 %v4024, %v4023
    %v4044 = vpack.c.b16 %v4026, %v4025
    %v4045 = vpack.c.b16 %v4028, %v4027
    %v4046 = vpack.c.b16 %v4030, %v4029
    %v4079 = vunpack.c.l.b16 %v3951
    %v4080 = vunpack.c.l.b16 %v3952
    %v4081 = vunpack.c.l.b16 %v3953
    %v4082 = vunpack.c.l.b16 %v3954
    %v4083 = vunpack.c.l.b16 %v3955
    %v4084 = vunpack.c.l.b16 %v3956
    %v4085 = vunpack.c.l.b16 %v3957
    %v4086 = vunpack.c.l.b16 %v3958
    %v4087 = vunpack.c.l.b16 %v3959
    %v4088 = vunpack.c.l.b16 %v3960
    %v4089 = vunpack.c.l.b16 %v3961
    %v4090 = vunpack.c.l.b16 %v3962
    %v4091 = vunpack.c.l.b16 %v3963
    %v4092 = vunpack.c.l.b16 %v3964
    %v4093 = vunpack.c.l.b16 %v3965
    %v4094 = vunpack.c.l.b16 %v3966
    %v4095 = vpack.c.b16 %v4080, %v4079
    %v4096 = vpack.c.b16 %v4082, %v4081
    %v4097 = vpack.c.b16 %v4084, %v4083
    %v4098 = vpack.c.b16 %v4086, %v4085
    %v4099 = vpack.c.b16 %v4088, %v4087
    %v4100 = vpack.c.b16 %v4090, %v4089
    %v4101 = vpack.c.b16 %v4092, %v4091
    %v4102 = vpack.c.b16 %v4094, %v4093
    %4111 = vmatprep.subr.bf16.mxu0 0
    %4112 = vmatpush1.bf16.msra.mxu0 %v4102
    %4113 = vmatprep.subr.bf16.mxu0 0
    %4114 = vmatpush1.bf16.msra.mxu0 %v4101
    %4115 = vmatprep.subr.bf16.mxu0 0
    %4116 = vmatpush1.bf16.msra.mxu0 %v4100
    %4117 = vmatprep.subr.bf16.mxu0 0
    %4118 = vmatpush1.bf16.msra.mxu0 %v4099
    %4119 = vmatprep.subr.bf16.mxu0 0
    %4120 = vmatpush1.bf16.msra.mxu0 %v4098
    %4121 = vmatprep.subr.bf16.mxu0 0
    %4122 = vmatpush1.bf16.msra.mxu0 %v4097
    %4123 = vmatprep.subr.bf16.mxu0 0
    %4124 = vmatpush1.bf16.msra.mxu0 %v4096
    %4125 = vmatprep.subr.bf16.mxu0 0
    %4126 = vmatpush1.bf16.msra.mxu0 %v4095
    %4127 = vmatprep.subr.bf16.mxu0 0
    %4128 = vmatpush2.bf16.msra.mxu0 0
    %4129 = vmatprep.subr.bf16.mxu0 0
    %4130 = vmatpush2.bf16.msra.mxu0 0
    %4131 = vmatprep.subr.bf16.mxu0 0
    %4132 = vmatpush2.bf16.msra.mxu0 0
    %4133 = vmatprep.subr.bf16.mxu0 0
    %4134 = vmatpush2.bf16.msra.mxu0 0
    %4135 = vmatprep.subr.bf16.mxu0 0
    %4136 = vmatpush2.bf16.msra.mxu0 0
    %4137 = vmatprep.subr.bf16.mxu0 0
    %4138 = vmatpush2.bf16.msra.mxu0 0
    %4139 = vmatprep.subr.bf16.mxu0 0
    %4140 = vmatpush2.bf16.msra.mxu0 0
    %4141 = vmatprep.subr.bf16.mxu0 0
    %4142 = vmatpush2.bf16.msra.mxu0 0
    %4143 = vmatprep.mubr.bf16.mxu0 0
    %4144 = vmatmul.mubr.bf16.gmra.mxu0 %v4031
    %v4145 = vpop.f32.mrf.mxu0
    %v4146 = vadd.f32 0.0, %v4145
    %v4147 = vpop.f32.mrf.mxu0
    %v4148 = vpop.f32.mrf.mxu0
    %v4149 = vadd.f32 0.0, %v4148
    %v4150 = vpop.f32.mrf.mxu0
    %4151 = vmatprep.mubr.bf16.mxu0 0
    %4152 = vmatmul.mubr.bf16.gmra.mxu0 %v4032
    %v4153 = vpop.f32.mrf.mxu0
    %v4154 = vadd.f32 0.0, %v4153
    %v4155 = vpop.f32.mrf.mxu0
    %v4156 = vpop.f32.mrf.mxu0
    %v4157 = vadd.f32 0.0, %v4156
    %v4158 = vpop.f32.mrf.mxu0
    %4159 = vmatprep.mubr.bf16.mxu0 0
    %4160 = vmatmul.mubr.bf16.gmra.mxu0 %v4033
    %v4161 = vpop.f32.mrf.mxu0
    %v4162 = vadd.f32 0.0, %v4161
    %v4163 = vpop.f32.mrf.mxu0
    %v4164 = vpop.f32.mrf.mxu0
    %v4165 = vadd.f32 0.0, %v4164
    %v4166 = vpop.f32.mrf.mxu0
    %4167 = vmatprep.mubr.bf16.mxu0 0
    %4168 = vmatmul.mubr.bf16.gmra.mxu0 %v4034
    %v4169 = vpop.f32.mrf.mxu0
    %v4170 = vadd.f32 0.0, %v4169
    %v4171 = vpop.f32.mrf.mxu0
    %v4172 = vpop.f32.mrf.mxu0
    %v4173 = vadd.f32 0.0, %v4172
    %v4174 = vpop.f32.mrf.mxu0
    %4175 = vmatprep.mubr.bf16.mxu0 0
    %4176 = vmatmul.mubr.bf16.gmra.mxu0 %v4035
    %v4177 = vpop.f32.mrf.mxu0
    %v4178 = vadd.f32 0.0, %v4177
    %v4179 = vpop.f32.mrf.mxu0
    %v4180 = vpop.f32.mrf.mxu0
    %v4181 = vadd.f32 0.0, %v4180
    %v4182 = vpop.f32.mrf.mxu0
    %4183 = vmatprep.mubr.bf16.mxu0 0
    %4184 = vmatmul.mubr.bf16.gmra.mxu0 %v4036
    %v4185 = vpop.f32.mrf.mxu0
    %v4186 = vadd.f32 0.0, %v4185
    %v4187 = vpop.f32.mrf.mxu0
    %v4188 = vpop.f32.mrf.mxu0
    %v4189 = vadd.f32 0.0, %v4188
    %v4190 = vpop.f32.mrf.mxu0
    %4191 = vmatprep.mubr.bf16.mxu0 0
    %4192 = vmatmul.mubr.bf16.gmra.mxu0 %v4037
    %v4193 = vpop.f32.mrf.mxu0
    %v4194 = vadd.f32 0.0, %v4193
    %v4195 = vpop.f32.mrf.mxu0
    %v4196 = vpop.f32.mrf.mxu0
    %v4197 = vadd.f32 0.0, %v4196
    %v4198 = vpop.f32.mrf.mxu0
    %4199 = vmatprep.mubr.bf16.mxu0 0
    %4200 = vmatmul.mubr.bf16.gmra.mxu0 %v4038
    %v4201 = vpop.f32.mrf.mxu0
    %v4202 = vadd.f32 0.0, %v4201
    %v4203 = vpop.f32.mrf.mxu0
    %v4204 = vpop.f32.mrf.mxu0
    %v4205 = vadd.f32 0.0, %v4204
    %v4206 = vpop.f32.mrf.mxu0
    %4207 = vmatprep.mubr.bf16.mxu0 0
    %4208 = vmatmul.mubr.bf16.gmra.mxu0 %v4039
    %v4209 = vpop.f32.mrf.mxu0
    %v4210 = vadd.f32 0.0, %v4209
    %v4211 = vpop.f32.mrf.mxu0
    %v4212 = vpop.f32.mrf.mxu0
    %v4213 = vadd.f32 0.0, %v4212
    %v4214 = vpop.f32.mrf.mxu0
    %4215 = vmatprep.mubr.bf16.mxu0 0
    %4216 = vmatmul.mubr.bf16.gmra.mxu0 %v4040
    %v4217 = vpop.f32.mrf.mxu0
    %v4218 = vadd.f32 0.0, %v4217
    %v4219 = vpop.f32.mrf.mxu0
    %v4220 = vpop.f32.mrf.mxu0
    %v4221 = vadd.f32 0.0, %v4220
    %v4222 = vpop.f32.mrf.mxu0
    %4223 = vmatprep.mubr.bf16.mxu0 0
    %4224 = vmatmul.mubr.bf16.gmra.mxu0 %v4041
    %v4225 = vpop.f32.mrf.mxu0
    %v4226 = vadd.f32 0.0, %v4225
    %v4227 = vpop.f32.mrf.mxu0
    %v4228 = vpop.f32.mrf.mxu0
    %v4229 = vadd.f32 0.0, %v4228
    %v4230 = vpop.f32.mrf.mxu0
    %4231 = vmatprep.mubr.bf16.mxu0 0
    %4232 = vmatmul.mubr.bf16.gmra.mxu0 %v4042
    %v4233 = vpop.f32.mrf.mxu0
    %v4234 = vadd.f32 0.0, %v4233
    %v4235 = vpop.f32.mrf.mxu0
    %v4236 = vpop.f32.mrf.mxu0
    %v4237 = vadd.f32 0.0, %v4236
    %v4238 = vpop.f32.mrf.mxu0
    %4239 = vmatprep.mubr.bf16.mxu0 0
    %4240 = vmatmul.mubr.bf16.gmra.mxu0 %v4043
    %v4241 = vpop.f32.mrf.mxu0
    %v4242 = vadd.f32 0.0, %v4241
    %v4243 = vpop.f32.mrf.mxu0
    %v4244 = vpop.f32.mrf.mxu0
    %v4245 = vadd.f32 0.0, %v4244
    %v4246 = vpop.f32.mrf.mxu0
    %4247 = vmatprep.mubr.bf16.mxu0 0
    %4248 = vmatmul.mubr.bf16.gmra.mxu0 %v4044
    %v4249 = vpop.f32.mrf.mxu0
    %v4250 = vadd.f32 0.0, %v4249
    %v4251 = vpop.f32.mrf.mxu0
    %v4252 = vpop.f32.mrf.mxu0
    %v4253 = vadd.f32 0.0, %v4252
    %v4254 = vpop.f32.mrf.mxu0
    %4255 = vmatprep.mubr.bf16.mxu0 0
    %4256 = vmatmul.mubr.bf16.gmra.mxu0 %v4045
    %v4257 = vpop.f32.mrf.mxu0
    %v4258 = vadd.f32 0.0, %v4257
    %v4259 = vpop.f32.mrf.mxu0
    %v4260 = vpop.f32.mrf.mxu0
    %v4261 = vadd.f32 0.0, %v4260
    %v4262 = vpop.f32.mrf.mxu0
    %4263 = vmatprep.mubr.bf16.mxu0 0
    %4264 = vmatmul.mubr.bf16.gmra.mxu0 %v4046
    %v4265 = vpop.f32.mrf.mxu0
    %v4266 = vadd.f32 0.0, %v4265
    %v4267 = vpop.f32.mrf.mxu0
    %v4268 = vpop.f32.mrf.mxu0
    %v4269 = vadd.f32 0.0, %v4268
    %v4270 = vpop.f32.mrf.mxu0
    %4271 = vdwg.mxu0
    %v4272 = vadd.f32 %v3792, %v4146
    %v4273 = vadd.f32 %v3795, %v4149
    %v4274 = vadd.f32 %v3800, %v4154
    %v4275 = vadd.f32 %v3803, %v4157
    %v4276 = vadd.f32 %v3808, %v4162
    %v4277 = vadd.f32 %v3811, %v4165
    %v4278 = vadd.f32 %v3816, %v4170
    %v4279 = vadd.f32 %v3819, %v4173
    %v4280 = vadd.f32 %v3824, %v4178
    %v4281 = vadd.f32 %v3827, %v4181
    %v4282 = vadd.f32 %v3832, %v4186
    %v4283 = vadd.f32 %v3835, %v4189
    %v4284 = vadd.f32 %v3840, %v4194
    %v4285 = vadd.f32 %v3843, %v4197
    %v4286 = vadd.f32 %v3848, %v4202
    %v4287 = vadd.f32 %v3851, %v4205
    %v4288 = vadd.f32 %v3856, %v4210
    %v4289 = vadd.f32 %v3859, %v4213
    %v4290 = vadd.f32 %v3864, %v4218
    %v4291 = vadd.f32 %v3867, %v4221
    %v4292 = vadd.f32 %v3872, %v4226
    %v4293 = vadd.f32 %v3875, %v4229
    %v4294 = vadd.f32 %v3880, %v4234
    %v4295 = vadd.f32 %v3883, %v4237
    %v4296 = vadd.f32 %v3888, %v4242
    %v4297 = vadd.f32 %v3891, %v4245
    %v4298 = vadd.f32 %v3896, %v4250
    %v4299 = vadd.f32 %v3899, %v4253
    %v4300 = vadd.f32 %v3904, %v4258
    %v4301 = vadd.f32 %v3907, %v4261
    %v4302 = vadd.f32 %v3912, %v4266
    %v4303 = vadd.f32 %v3915, %v4269
    %v4304 = vadd.f32 %v4272, %v4273
    %v4305 = vadd.f32 %v4304, %v4274
    %v4306 = vadd.f32 %v4305, %v4275
    %v4307 = vadd.f32 %v4306, %v4276
    %v4308 = vadd.f32 %v4307, %v4277
    %v4309 = vadd.f32 %v4308, %v4278
    %v4310 = vadd.f32 %v4309, %v4279
    %v4311 = vadd.f32 %v4310, %v4280
    %v4312 = vadd.f32 %v4311, %v4281
    %v4313 = vadd.f32 %v4312, %v4282
    %v4314 = vadd.f32 %v4313, %v4283
    %v4315 = vadd.f32 %v4314, %v4284
    %v4316 = vadd.f32 %v4315, %v4285
    %v4317 = vadd.f32 %v4316, %v4286
    %v4318 = vadd.f32 %v4317, %v4287
    %v4319 = vadd.f32 %v4318, %v4288
    %v4320 = vadd.f32 %v4319, %v4289
    %v4321 = vadd.f32 %v4320, %v4290
    %v4322 = vadd.f32 %v4321, %v4291
    %v4323 = vadd.f32 %v4322, %v4292
    %v4324 = vadd.f32 %v4323, %v4293
    %v4325 = vadd.f32 %v4324, %v4294
    %v4326 = vadd.f32 %v4325, %v4295
    %v4327 = vadd.f32 %v4326, %v4296
    %v4328 = vadd.f32 %v4327, %v4297
    %v4329 = vadd.f32 %v4328, %v4298
    %v4330 = vadd.f32 %v4329, %v4299
    %v4331 = vadd.f32 %v4330, %v4300
    %v4332 = vadd.f32 %v4331, %v4301
    %v4333 = vadd.f32 %v4332, %v4302
    %v4334 = vadd.f32 %v4333, %v4303
    %v4335 = vrot.slane %v4334, 4
    %v4336 = vadd.f32 %v4334, %v4335
    %v4337 = vrot.slane %v4336, 2
    %v4338 = vadd.f32 %v4336, %v4337
    %v4339 = vrot.slane %v4338, 1
    %v4340 = vadd.f32 %v4338, %v4339
    %v4341 = vmul.f32 %v4340, 0.00390625
    %v4342 = vsub.f32 %v4272, %v4341
    %v4343 = vsub.f32 %v4273, %v4341
    %v4344 = vsub.f32 %v4274, %v4341
    %v4345 = vsub.f32 %v4275, %v4341
    %v4346 = vsub.f32 %v4276, %v4341
    %v4347 = vsub.f32 %v4277, %v4341
    %v4348 = vsub.f32 %v4278, %v4341
    %v4349 = vsub.f32 %v4279, %v4341
    %v4350 = vsub.f32 %v4280, %v4341
    %v4351 = vsub.f32 %v4281, %v4341
    %v4352 = vsub.f32 %v4282, %v4341
    %v4353 = vsub.f32 %v4283, %v4341
    %v4354 = vsub.f32 %v4284, %v4341
    %v4355 = vsub.f32 %v4285, %v4341
    %v4356 = vsub.f32 %v4286, %v4341
    %v4357 = vsub.f32 %v4287, %v4341
    %v4358 = vsub.f32 %v4288, %v4341
    %v4359 = vsub.f32 %v4289, %v4341
    %v4360 = vsub.f32 %v4290, %v4341
    %v4361 = vsub.f32 %v4291, %v4341
    %v4362 = vsub.f32 %v4292, %v4341
    %v4363 = vsub.f32 %v4293, %v4341
    %v4364 = vsub.f32 %v4294, %v4341
    %v4365 = vsub.f32 %v4295, %v4341
    %v4366 = vsub.f32 %v4296, %v4341
    %v4367 = vsub.f32 %v4297, %v4341
    %v4368 = vsub.f32 %v4298, %v4341
    %v4369 = vsub.f32 %v4299, %v4341
    %v4370 = vsub.f32 %v4300, %v4341
    %v4371 = vsub.f32 %v4301, %v4341
    %v4372 = vsub.f32 %v4302, %v4341
    %v4373 = vsub.f32 %v4303, %v4341
    %v4374 = vmul.f32 %v4342, %v4342
    %v4375 = vmul.f32 %v4343, %v4343
    %v4376 = vmul.f32 %v4344, %v4344
    %v4377 = vmul.f32 %v4345, %v4345
    %v4378 = vmul.f32 %v4346, %v4346
    %v4379 = vmul.f32 %v4347, %v4347
    %v4380 = vmul.f32 %v4348, %v4348
    %v4381 = vmul.f32 %v4349, %v4349
    %v4382 = vmul.f32 %v4350, %v4350
    %v4383 = vmul.f32 %v4351, %v4351
    %v4384 = vmul.f32 %v4352, %v4352
    %v4385 = vmul.f32 %v4353, %v4353
    %v4386 = vmul.f32 %v4354, %v4354
    %v4387 = vmul.f32 %v4355, %v4355
    %v4388 = vmul.f32 %v4356, %v4356
    %v4389 = vmul.f32 %v4357, %v4357
    %v4390 = vmul.f32 %v4358, %v4358
    %v4391 = vmul.f32 %v4359, %v4359
    %v4392 = vmul.f32 %v4360, %v4360
    %v4393 = vmul.f32 %v4361, %v4361
    %v4394 = vmul.f32 %v4362, %v4362
    %v4395 = vmul.f32 %v4363, %v4363
    %v4396 = vmul.f32 %v4364, %v4364
    %v4397 = vmul.f32 %v4365, %v4365
    %v4398 = vmul.f32 %v4366, %v4366
    %v4399 = vmul.f32 %v4367, %v4367
    %v4400 = vmul.f32 %v4368, %v4368
    %v4401 = vmul.f32 %v4369, %v4369
    %v4402 = vmul.f32 %v4370, %v4370
    %v4403 = vmul.f32 %v4371, %v4371
    %v4404 = vmul.f32 %v4372, %v4372
    %v4405 = vmul.f32 %v4373, %v4373
    %v4406 = vadd.f32 %v4374, %v4375
    %v4407 = vadd.f32 %v4406, %v4376
    %v4408 = vadd.f32 %v4407, %v4377
    %v4409 = vadd.f32 %v4408, %v4378
    %v4410 = vadd.f32 %v4409, %v4379
    %v4411 = vadd.f32 %v4410, %v4380
    %v4412 = vadd.f32 %v4411, %v4381
    %v4413 = vadd.f32 %v4412, %v4382
    %v4414 = vadd.f32 %v4413, %v4383
    %v4415 = vadd.f32 %v4414, %v4384
    %v4416 = vadd.f32 %v4415, %v4385
    %v4417 = vadd.f32 %v4416, %v4386
    %v4418 = vadd.f32 %v4417, %v4387
    %v4419 = vadd.f32 %v4418, %v4388
    %v4420 = vadd.f32 %v4419, %v4389
    %v4421 = vadd.f32 %v4420, %v4390
    %v4422 = vadd.f32 %v4421, %v4391
    %v4423 = vadd.f32 %v4422, %v4392
    %v4424 = vadd.f32 %v4423, %v4393
    %v4425 = vadd.f32 %v4424, %v4394
    %v4426 = vadd.f32 %v4425, %v4395
    %v4427 = vadd.f32 %v4426, %v4396
    %v4428 = vadd.f32 %v4427, %v4397
    %v4429 = vadd.f32 %v4428, %v4398
    %v4430 = vadd.f32 %v4429, %v4399
    %v4431 = vadd.f32 %v4430, %v4400
    %v4432 = vadd.f32 %v4431, %v4401
    %v4433 = vadd.f32 %v4432, %v4402
    %v4434 = vadd.f32 %v4433, %v4403
    %v4435 = vadd.f32 %v4434, %v4404
    %v4436 = vadd.f32 %v4435, %v4405
    %v4437 = vrot.slane %v4436, 4
    %v4438 = vadd.f32 %v4436, %v4437
    %v4439 = vrot.slane %v4438, 2
    %v4440 = vadd.f32 %v4438, %v4439
    %v4441 = vrot.slane %v4440, 1
    %v4442 = vadd.f32 %v4440, %v4441
    %v4443 = vmul.f32 %v4442, 0.00390625
    %v4444 = vadd.f32 %v4443, 1e-05
    %v4445 = vrsqrt.pop %v4444
    %v4446 = vmul.f32 %v4342, %v4445
    %v4447 = vmul.f32 %v4343, %v4445
    %v4448 = vmul.f32 %v4344, %v4445
    %v4449 = vmul.f32 %v4345, %v4445
    %v4450 = vmul.f32 %v4346, %v4445
    %v4451 = vmul.f32 %v4347, %v4445
    %v4452 = vmul.f32 %v4348, %v4445
    %v4453 = vmul.f32 %v4349, %v4445
    %v4454 = vmul.f32 %v4350, %v4445
    %v4455 = vmul.f32 %v4351, %v4445
    %v4456 = vmul.f32 %v4352, %v4445
    %v4457 = vmul.f32 %v4353, %v4445
    %v4458 = vmul.f32 %v4354, %v4445
    %v4459 = vmul.f32 %v4355, %v4445
    %v4460 = vmul.f32 %v4356, %v4445
    %v4461 = vmul.f32 %v4357, %v4445
    %v4462 = vmul.f32 %v4358, %v4445
    %v4463 = vmul.f32 %v4359, %v4445
    %v4464 = vmul.f32 %v4360, %v4445
    %v4465 = vmul.f32 %v4361, %v4445
    %v4466 = vmul.f32 %v4362, %v4445
    %v4467 = vmul.f32 %v4363, %v4445
    %v4468 = vmul.f32 %v4364, %v4445
    %v4469 = vmul.f32 %v4365, %v4445
    %v4470 = vmul.f32 %v4366, %v4445
    %v4471 = vmul.f32 %v4367, %v4445
    %v4472 = vmul.f32 %v4368, %v4445
    %v4473 = vmul.f32 %v4369, %v4445
    %v4474 = vmul.f32 %v4370, %v4445
    %v4475 = vmul.f32 %v4371, %v4445
    %v4476 = vmul.f32 %v4372, %v4445
    %v4477 = vmul.f32 %v4373, %v4445
    %v4478 = vmul.f32 %v4446, 0.01
    %v4479 = vmul.f32 %v4447, 0.01
    %v4480 = vmul.f32 %v4448, 0.01
    %v4481 = vmul.f32 %v4449, 0.01
    %v4482 = vmul.f32 %v4450, 0.01
    %v4483 = vmul.f32 %v4451, 0.01
    %v4484 = vmul.f32 %v4452, 0.01
    %v4485 = vmul.f32 %v4453, 0.01
    %v4486 = vmul.f32 %v4454, 0.01
    %v4487 = vmul.f32 %v4455, 0.01
    %v4488 = vmul.f32 %v4456, 0.01
    %v4489 = vmul.f32 %v4457, 0.01
    %v4490 = vmul.f32 %v4458, 0.01
    %v4491 = vmul.f32 %v4459, 0.01
    %v4492 = vmul.f32 %v4460, 0.01
    %v4493 = vmul.f32 %v4461, 0.01
    %v4494 = vmul.f32 %v4462, 0.01
    %v4495 = vmul.f32 %v4463, 0.01
    %v4496 = vmul.f32 %v4464, 0.01
    %v4497 = vmul.f32 %v4465, 0.01
    %v4498 = vmul.f32 %v4466, 0.01
    %v4499 = vmul.f32 %v4467, 0.01
    %v4500 = vmul.f32 %v4468, 0.01
    %v4501 = vmul.f32 %v4469, 0.01
    %v4502 = vmul.f32 %v4470, 0.01
    %v4503 = vmul.f32 %v4471, 0.01
    %v4504 = vmul.f32 %v4472, 0.01
    %v4505 = vmul.f32 %v4473, 0.01
    %v4506 = vmul.f32 %v4474, 0.01
    %v4507 = vmul.f32 %v4475, 0.01
    %v4508 = vmul.f32 %v4476, 0.01
    %v4509 = vmul.f32 %v4477, 0.01
    %v4510 = vmax.f32 %v4446, %v4478
    %v4511 = vmax.f32 %v4447, %v4479
    %v4512 = vmax.f32 %v4448, %v4480
    %v4513 = vmax.f32 %v4449, %v4481
    %v4514 = vmax.f32 %v4450, %v4482
    %v4515 = vmax.f32 %v4451, %v4483
    %v4516 = vmax.f32 %v4452, %v4484
    %v4517 = vmax.f32 %v4453, %v4485
    %v4518 = vmax.f32 %v4454, %v4486
    %v4519 = vmax.f32 %v4455, %v4487
    %v4520 = vmax.f32 %v4456, %v4488
    %v4521 = vmax.f32 %v4457, %v4489
    %v4522 = vmax.f32 %v4458, %v4490
    %v4523 = vmax.f32 %v4459, %v4491
    %v4524 = vmax.f32 %v4460, %v4492
    %v4525 = vmax.f32 %v4461, %v4493
    %v4526 = vmax.f32 %v4462, %v4494
    %v4527 = vmax.f32 %v4463, %v4495
    %v4528 = vmax.f32 %v4464, %v4496
    %v4529 = vmax.f32 %v4465, %v4497
    %v4530 = vmax.f32 %v4466, %v4498
    %v4531 = vmax.f32 %v4467, %v4499
    %v4532 = vmax.f32 %v4468, %v4500
    %v4533 = vmax.f32 %v4469, %v4501
    %v4534 = vmax.f32 %v4470, %v4502
    %v4535 = vmax.f32 %v4471, %v4503
    %v4536 = vmax.f32 %v4472, %v4504
    %v4537 = vmax.f32 %v4473, %v4505
    %v4538 = vmax.f32 %v4474, %v4506
    %v4539 = vmax.f32 %v4475, %v4507
    %v4540 = vmax.f32 %v4476, %v4508
    %v4541 = vmax.f32 %v4477, %v4509
    %v4542 = vpack.c.bf16 %v4511, %v4510
    %v4543 = vpack.c.bf16 %v4513, %v4512
    %v4544 = vpack.c.bf16 %v4515, %v4514
    %v4545 = vpack.c.bf16 %v4517, %v4516
    %v4546 = vpack.c.bf16 %v4519, %v4518
    %v4547 = vpack.c.bf16 %v4521, %v4520
    %v4548 = vpack.c.bf16 %v4523, %v4522
    %v4549 = vpack.c.bf16 %v4525, %v4524
    %v4550 = vpack.c.bf16 %v4527, %v4526
    %v4551 = vpack.c.bf16 %v4529, %v4528
    %v4552 = vpack.c.bf16 %v4531, %v4530
    %v4553 = vpack.c.bf16 %v4533, %v4532
    %v4554 = vpack.c.bf16 %v4535, %v4534
    %v4555 = vpack.c.bf16 %v4537, %v4536
    %v4556 = vpack.c.bf16 %v4539, %v4538
    %v4557 = vpack.c.bf16 %v4541, %v4540
    %v4574 = vunpack.c.l.b16 %v4542
    %v4575 = vunpack.c.h.b16 %v4542
    %v4576 = vunpack.c.l.b16 %v4543
    %v4577 = vunpack.c.h.b16 %v4543
    %v4578 = vunpack.c.l.b16 %v4544
    %v4579 = vunpack.c.h.b16 %v4544
    %v4580 = vunpack.c.l.b16 %v4545
    %v4581 = vunpack.c.h.b16 %v4545
    %v4582 = vunpack.c.l.b16 %v4546
    %v4583 = vunpack.c.h.b16 %v4546
    %v4584 = vunpack.c.l.b16 %v4547
    %v4585 = vunpack.c.h.b16 %v4547
    %v4586 = vunpack.c.l.b16 %v4548
    %v4587 = vunpack.c.h.b16 %v4548
    %v4588 = vunpack.c.l.b16 %v4549
    %v4589 = vunpack.c.h.b16 %v4549
    %v4590 = vunpack.c.l.b16 %v4550
    %v4591 = vunpack.c.h.b16 %v4550
    %v4592 = vunpack.c.l.b16 %v4551
    %v4593 = vunpack.c.h.b16 %v4551
    %v4594 = vunpack.c.l.b16 %v4552
    %v4595 = vunpack.c.h.b16 %v4552
    %v4596 = vunpack.c.l.b16 %v4553
    %v4597 = vunpack.c.h.b16 %v4553
    %v4598 = vunpack.c.l.b16 %v4554
    %v4599 = vunpack.c.h.b16 %v4554
    %v4600 = vunpack.c.l.b16 %v4555
    %v4601 = vunpack.c.h.b16 %v4555
    %v4602 = vunpack.c.l.b16 %v4556
    %v4603 = vunpack.c.h.b16 %v4556
    %v4604 = vunpack.c.l.b16 %v4557
    %v4605 = vunpack.c.h.b16 %v4557
    %v4606 = vpack.c.b16 %v4574, %v4574
    %v4607 = vpack.c.b16 %v4575, %v4575
    %v4608 = vpack.c.b16 %v4576, %v4576
    %v4609 = vpack.c.b16 %v4577, %v4577
    %v4610 = vpack.c.b16 %v4578, %v4578
    %v4611 = vpack.c.b16 %v4579, %v4579
    %v4612 = vpack.c.b16 %v4580, %v4580
    %v4613 = vpack.c.b16 %v4581, %v4581
    %v4614 = vpack.c.b16 %v4582, %v4582
    %v4615 = vpack.c.b16 %v4583, %v4583
    %v4616 = vpack.c.b16 %v4584, %v4584
    %v4617 = vpack.c.b16 %v4585, %v4585
    %v4618 = vpack.c.b16 %v4586, %v4586
    %v4619 = vpack.c.b16 %v4587, %v4587
    %v4620 = vpack.c.b16 %v4588, %v4588
    %v4621 = vpack.c.b16 %v4589, %v4589
    %v4622 = vpack.c.b16 %v4590, %v4590
    %v4623 = vpack.c.b16 %v4591, %v4591
    %v4624 = vpack.c.b16 %v4592, %v4592
    %v4625 = vpack.c.b16 %v4593, %v4593
    %v4626 = vpack.c.b16 %v4594, %v4594
    %v4627 = vpack.c.b16 %v4595, %v4595
    %v4628 = vpack.c.b16 %v4596, %v4596
    %v4629 = vpack.c.b16 %v4597, %v4597
    %v4630 = vpack.c.b16 %v4598, %v4598
    %v4631 = vpack.c.b16 %v4599, %v4599
    %v4632 = vpack.c.b16 %v4600, %v4600
    %v4633 = vpack.c.b16 %v4601, %v4601
    %v4634 = vpack.c.b16 %v4602, %v4602
    %v4635 = vpack.c.b16 %v4603, %v4603
    %v4636 = vpack.c.b16 %v4604, %v4604
    %v4637 = vpack.c.b16 %v4605, %v4605
    %4670 = vst [vmem:[#allocation2 + $0x8] sm:$0xf] %v4606
    %4671 = vst [vmem:[#allocation2 + $0xc] sm:$0xf] %v4607
    %4672 = vst [vmem:[#allocation2 + $0x10] sm:$0xf] %v4608
    %4673 = vst [vmem:[#allocation2 + $0x14] sm:$0xf] %v4609
    %4674 = vst [vmem:[#allocation2 + $0x18] sm:$0xf] %v4610
    %4675 = vst [vmem:[#allocation2 + $0x1c] sm:$0xf] %v4611
    %4676 = vst [vmem:[#allocation2 + $0x20] sm:$0xf] %v4612
    %4677 = vst [vmem:[#allocation2 + $0x24] sm:$0xf] %v4613
    %4678 = vst [vmem:[#allocation2 + $0x28] sm:$0xf] %v4614
    %4679 = vst [vmem:[#allocation2 + $0x2c] sm:$0xf] %v4615
    %4680 = vst [vmem:[#allocation2 + $0x30] sm:$0xf] %v4616
    %4681 = vst [vmem:[#allocation2 + $0x34] sm:$0xf] %v4617
    %4682 = vst [vmem:[#allocation2 + $0x38] sm:$0xf] %v4618
    %4683 = vst [vmem:[#allocation2 + $0x3c] sm:$0xf] %v4619
    %4684 = vst [vmem:[#allocation2 + $0x40] sm:$0xf] %v4620
    %4685 = vst [vmem:[#allocation2 + $0x44] sm:$0xf] %v4621
    %4686 = vst [vmem:[#allocation2 + $0x48] sm:$0xf] %v4622
    %4687 = vst [vmem:[#allocation2 + $0x4c] sm:$0xf] %v4623
    %4688 = vst [vmem:[#allocation2 + $0x50] sm:$0xf] %v4624
    %4689 = vst [vmem:[#allocation2 + $0x54] sm:$0xf] %v4625
    %4690 = vst [vmem:[#allocation2 + $0x58] sm:$0xf] %v4626
    %4691 = vst [vmem:[#allocation2 + $0x5c] sm:$0xf] %v4627
    %4692 = vst [vmem:[#allocation2 + $0x60] sm:$0xf] %v4628
    %4693 = vst [vmem:[#allocation2 + $0x64] sm:$0xf] %v4629
    %4694 = vst [vmem:[#allocation2 + $0x68] sm:$0xf] %v4630
    %4695 = vst [vmem:[#allocation2 + $0x6c] sm:$0xf] %v4631
    %4696 = vst [vmem:[#allocation2 + $0x70] sm:$0xf] %v4632
    %4697 = vst [vmem:[#allocation2 + $0x74] sm:$0xf] %v4633
    %4698 = vst [vmem:[#allocation2 + $0x78] sm:$0xf] %v4634
    %4699 = vst [vmem:[#allocation2 + $0x7c] sm:$0xf] %v4635
    %4700 = vst [vmem:[#allocation2 + $0x80] sm:$0xf] %v4636
    %4701 = vst [vmem:[#allocation2 + $0x84] sm:$0xf] %v4637
    %v4702 = vld [vmem:[#allocation2 + $0x4] sm:$0x8]
    %v4703 = vld [vmem:[#allocation2 + $0x8] sm:$0xf]
    %v4704 = vld [vmem:[#allocation2 + $0xc] sm:$0xf]
    %v4705 = vld [vmem:[#allocation2 + $0x10] sm:$0xf]
    %v4706 = vld [vmem:[#allocation2 + $0x14] sm:$0xf]
    %v4707 = vld [vmem:[#allocation2 + $0x18] sm:$0xf]
    %v4708 = vld [vmem:[#allocation2 + $0x1c] sm:$0xf]
    %v4709 = vld [vmem:[#allocation2 + $0x20] sm:$0xf]
    %v4710 = vld [vmem:[#allocation2 + $0x24] sm:$0xf]
    %v4711 = vld [vmem:[#allocation2 + $0x28] sm:$0xf]
    %v4712 = vld [vmem:[#allocation2 + $0x2c] sm:$0xf]
    %v4713 = vld [vmem:[#allocation2 + $0x30] sm:$0xf]
    %v4714 = vld [vmem:[#allocation2 + $0x34] sm:$0xf]
    %v4715 = vld [vmem:[#allocation2 + $0x38] sm:$0xf]
    %v4716 = vld [vmem:[#allocation2 + $0x3c] sm:$0xf]
    %v4717 = vld [vmem:[#allocation2 + $0x40] sm:$0xf]
    %v4718 = vld [vmem:[#allocation2 + $0x44] sm:$0xf]
    %v4719 = vld [vmem:[#allocation2 + $0x48] sm:$0xf]
    %v4720 = vld [vmem:[#allocation2 + $0x4c] sm:$0xf]
    %v4721 = vld [vmem:[#allocation2 + $0x50] sm:$0xf]
    %v4722 = vld [vmem:[#allocation2 + $0x54] sm:$0xf]
    %v4723 = vld [vmem:[#allocation2 + $0x58] sm:$0xf]
    %v4724 = vld [vmem:[#allocation2 + $0x5c] sm:$0xf]
    %v4725 = vld [vmem:[#allocation2 + $0x60] sm:$0xf]
    %v4726 = vld [vmem:[#allocation2 + $0x64] sm:$0xf]
    %v4727 = vld [vmem:[#allocation2 + $0x68] sm:$0xf]
    %v4728 = vld [vmem:[#allocation2 + $0x6c] sm:$0xf]
    %v4729 = vld [vmem:[#allocation2 + $0x70] sm:$0xf]
    %v4730 = vld [vmem:[#allocation2 + $0x74] sm:$0xf]
    %v4731 = vld [vmem:[#allocation2 + $0x78] sm:$0xf]
    %v4732 = vld [vmem:[#allocation2 + $0x7c] sm:$0xf]
    %v4733 = vld [vmem:[#allocation2 + $0x80] sm:$0xf]
    %v4734 = vld [vmem:[#allocation2 + $0x84] sm:$0xf]
    %v4735 = vmul.bf16 %v4702, %v1414
    %v4736 = vmul.bf16 %v4703, %v1424
    %v4737 = vmul.bf16 %v4704, %v1434
    %v4738 = vmul.bf16 %v4705, %v1444
    %v4739 = vmul.bf16 %v4706, %v1454
    %v4740 = vmul.bf16 %v4707, %v1464
    %v4741 = vmul.bf16 %v4708, %v1474
    %v4742 = vmul.bf16 %v4709, %v1484
    %v4743 = vmul.bf16 %v4710, %v1494
    %v4744 = vmul.bf16 %v4711, %v1504
    %v4745 = vmul.bf16 %v4712, %v1514
    %v4746 = vmul.bf16 %v4713, %v1524
    %v4747 = vmul.bf16 %v4714, %v1534
    %v4748 = vmul.bf16 %v4715, %v1544
    %v4749 = vmul.bf16 %v4716, %v1554
    %v4750 = vmul.bf16 %v4717, %v1564
    %v4751 = vmul.bf16 %v4718, %v1574
    %v4752 = vmul.bf16 %v4719, %v1584
    %v4753 = vmul.bf16 %v4720, %v1594
    %v4754 = vmul.bf16 %v4721, %v1604
    %v4755 = vmul.bf16 %v4722, %v1614
    %v4756 = vmul.bf16 %v4723, %v1624
    %v4757 = vmul.bf16 %v4724, %v1634
    %v4758 = vmul.bf16 %v4725, %v1644
    %v4759 = vmul.bf16 %v4726, %v1654
    %v4760 = vmul.bf16 %v4727, %v1664
    %v4761 = vmul.bf16 %v4728, %v1674
    %v4762 = vmul.bf16 %v4729, %v1684
    %v4763 = vmul.bf16 %v4730, %v1694
    %v4764 = vmul.bf16 %v4731, %v1704
    %v4765 = vmul.bf16 %v4732, %v1714
    %v4766 = vmul.bf16 %v4733, %v1724
    %v4767 = vmul.bf16 %v4734, %v1729
    %v4768 = vld [vmem:[#allocation2 + $0x88] sm:$0x1]
    %v4769 = vmul.bf16 %v4703, %v2046
    %v4770 = vmul.bf16 %v4704, %v2055
    %v4771 = vmul.bf16 %v4705, %v2064
    %v4772 = vmul.bf16 %v4706, %v2073
    %v4773 = vmul.bf16 %v4707, %v2082
    %v4774 = vmul.bf16 %v4708, %v2091
    %v4775 = vmul.bf16 %v4709, %v2100
    %v4776 = vmul.bf16 %v4710, %v2109
    %v4777 = vmul.bf16 %v4711, %v2118
    %v4778 = vmul.bf16 %v4712, %v2127
    %v4779 = vmul.bf16 %v4713, %v2136
    %v4780 = vmul.bf16 %v4714, %v2145
    %v4781 = vmul.bf16 %v4715, %v2154
    %v4782 = vmul.bf16 %v4716, %v2163
    %v4783 = vmul.bf16 %v4717, %v2172
    %v4784 = vmul.bf16 %v4718, %v2181
    %v4785 = vmul.bf16 %v4719, %v2190
    %v4786 = vmul.bf16 %v4720, %v2199
    %v4787 = vmul.bf16 %v4721, %v2208
    %v4788 = vmul.bf16 %v4722, %v2217
    %v4789 = vmul.bf16 %v4723, %v2226
    %v4790 = vmul.bf16 %v4724, %v2235
    %v4791 = vmul.bf16 %v4725, %v2244
    %v4792 = vmul.bf16 %v4726, %v2253
    %v4793 = vmul.bf16 %v4727, %v2262
    %v4794 = vmul.bf16 %v4728, %v2271
    %v4795 = vmul.bf16 %v4729, %v2280
    %v4796 = vmul.bf16 %v4730, %v2289
    %v4797 = vmul.bf16 %v4731, %v2298
    %v4798 = vmul.bf16 %v4732, %v2307
    %v4799 = vmul.bf16 %v4733, %v2316
    %v4800 = vmul.bf16 %v4734, %v2325
    %v4801 = vmul.bf16 %v4768, %v2326
    %v4803 = vshrl.u32 %v4735, 16
    %v4805 = vrot.slane %v4803, 7
    %v4806 = vrot.slane %v4805, 4
    %v4808 = vshrl.u32 %v4736, 16
    %v4810 = vrot.slane %v4808, 7
    %v4811 = vshll.u32 %v4736, 16
    %v4813 = vor.u32 %v4810, %v4811
    %v4814 = vsel %vm2039, %v4806, %v4813
    %v4815 = vrot.slane %v4810, 4
    %v4817 = vshrl.u32 %v4737, 16
    %v4819 = vrot.slane %v4817, 7
    %v4820 = vshll.u32 %v4737, 16
    %v4822 = vor.u32 %v4819, %v4820
    %v4823 = vsel %vm2039, %v4815, %v4822
    %v4824 = vrot.slane %v4819, 4
    %v4826 = vshrl.u32 %v4738, 16
    %v4828 = vrot.slane %v4826, 7
    %v4829 = vshll.u32 %v4738, 16
    %v4831 = vor.u32 %v4828, %v4829
    %v4832 = vsel %vm2039, %v4824, %v4831
    %v4833 = vrot.slane %v4828, 4
    %v4835 = vshrl.u32 %v4739, 16
    %v4837 = vrot.slane %v4835, 7
    %v4838 = vshll.u32 %v4739, 16
    %v4840 = vor.u32 %v4837, %v4838
    %v4841 = vsel %vm2039, %v4833, %v4840
    %v4842 = vrot.slane %v4837, 4
    %v4844 = vshrl.u32 %v4740, 16
    %v4846 = vrot.slane %v4844, 7
    %v4847 = vshll.u32 %v4740, 16
    %v4849 = vor.u32 %v4846, %v4847
    %v4850 = vsel %vm2039, %v4842, %v4849
    %v4851 = vrot.slane %v4846, 4
    %v4853 = vshrl.u32 %v4741, 16
    %v4855 = vrot.slane %v4853, 7
    %v4856 = vshll.u32 %v4741, 16
    %v4858 = vor.u32 %v4855, %v4856
    %v4859 = vsel %vm2039, %v4851, %v4858
    %v4860 = vrot.slane %v4855, 4
    %v4862 = vshrl.u32 %v4742, 16
    %v4864 = vrot.slane %v4862, 7
    %v4865 = vshll.u32 %v4742, 16
    %v4867 = vor.u32 %v4864, %v4865
    %v4868 = vsel %vm2039, %v4860, %v4867
    %v4869 = vrot.slane %v4864, 4
    %v4871 = vshrl.u32 %v4743, 16
    %v4873 = vrot.slane %v4871, 7
    %v4874 = vshll.u32 %v4743, 16
    %v4876 = vor.u32 %v4873, %v4874
    %v4877 = vsel %vm2039, %v4869, %v4876
    %v4878 = vrot.slane %v4873, 4
    %v4880 = vshrl.u32 %v4744, 16
    %v4882 = vrot.slane %v4880, 7
    %v4883 = vshll.u32 %v4744, 16
    %v4885 = vor.u32 %v4882, %v4883
    %v4886 = vsel %vm2039, %v4878, %v4885
    %v4887 = vrot.slane %v4882, 4
    %v4889 = vshrl.u32 %v4745, 16
    %v4891 = vrot.slane %v4889, 7
    %v4892 = vshll.u32 %v4745, 16
    %v4894 = vor.u32 %v4891, %v4892
    %v4895 = vsel %vm2039, %v4887, %v4894
    %v4896 = vrot.slane %v4891, 4
    %v4898 = vshrl.u32 %v4746, 16
    %v4900 = vrot.slane %v4898, 7
    %v4901 = vshll.u32 %v4746, 16
    %v4903 = vor.u32 %v4900, %v4901
    %v4904 = vsel %vm2039, %v4896, %v4903
    %v4905 = vrot.slane %v4900, 4
    %v4907 = vshrl.u32 %v4747, 16
    %v4909 = vrot.slane %v4907, 7
    %v4910 = vshll.u32 %v4747, 16
    %v4912 = vor.u32 %v4909, %v4910
    %v4913 = vsel %vm2039, %v4905, %v4912
    %v4914 = vrot.slane %v4909, 4
    %v4916 = vshrl.u32 %v4748, 16
    %v4918 = vrot.slane %v4916, 7
    %v4919 = vshll.u32 %v4748, 16
    %v4921 = vor.u32 %v4918, %v4919
    %v4922 = vsel %vm2039, %v4914, %v4921
    %v4923 = vrot.slane %v4918, 4
    %v4925 = vshrl.u32 %v4749, 16
    %v4927 = vrot.slane %v4925, 7
    %v4928 = vshll.u32 %v4749, 16
    %v4930 = vor.u32 %v4927, %v4928
    %v4931 = vsel %vm2039, %v4923, %v4930
    %v4932 = vrot.slane %v4927, 4
    %v4934 = vshrl.u32 %v4750, 16
    %v4936 = vrot.slane %v4934, 7
    %v4937 = vshll.u32 %v4750, 16
    %v4939 = vor.u32 %v4936, %v4937
    %v4940 = vsel %vm2039, %v4932, %v4939
    %v4941 = vrot.slane %v4936, 4
    %v4943 = vshrl.u32 %v4751, 16
    %v4945 = vrot.slane %v4943, 7
    %v4946 = vshll.u32 %v4751, 16
    %v4948 = vor.u32 %v4945, %v4946
    %v4949 = vsel %vm2039, %v4941, %v4948
    %v4950 = vrot.slane %v4945, 4
    %v4952 = vshrl.u32 %v4752, 16
    %v4954 = vrot.slane %v4952, 7
    %v4955 = vshll.u32 %v4752, 16
    %v4957 = vor.u32 %v4954, %v4955
    %v4958 = vsel %vm2039, %v4950, %v4957
    %v4959 = vrot.slane %v4954, 4
    %v4961 = vshrl.u32 %v4753, 16
    %v4963 = vrot.slane %v4961, 7
    %v4964 = vshll.u32 %v4753, 16
    %v4966 = vor.u32 %v4963, %v4964
    %v4967 = vsel %vm2039, %v4959, %v4966
    %v4968 = vrot.slane %v4963, 4
    %v4970 = vshrl.u32 %v4754, 16
    %v4972 = vrot.slane %v4970, 7
    %v4973 = vshll.u32 %v4754, 16
    %v4975 = vor.u32 %v4972, %v4973
    %v4976 = vsel %vm2039, %v4968, %v4975
    %v4977 = vrot.slane %v4972, 4
    %v4979 = vshrl.u32 %v4755, 16
    %v4981 = vrot.slane %v4979, 7
    %v4982 = vshll.u32 %v4755, 16
    %v4984 = vor.u32 %v4981, %v4982
    %v4985 = vsel %vm2039, %v4977, %v4984
    %v4986 = vrot.slane %v4981, 4
    %v4988 = vshrl.u32 %v4756, 16
    %v4990 = vrot.slane %v4988, 7
    %v4991 = vshll.u32 %v4756, 16
    %v4993 = vor.u32 %v4990, %v4991
    %v4994 = vsel %vm2039, %v4986, %v4993
    %v4995 = vrot.slane %v4990, 4
    %v4997 = vshrl.u32 %v4757, 16
    %v4999 = vrot.slane %v4997, 7
    %v5000 = vshll.u32 %v4757, 16
    %v5002 = vor.u32 %v4999, %v5000
    %v5003 = vsel %vm2039, %v4995, %v5002
    %v5004 = vrot.slane %v4999, 4
    %v5006 = vshrl.u32 %v4758, 16
    %v5008 = vrot.slane %v5006, 7
    %v5009 = vshll.u32 %v4758, 16
    %v5011 = vor.u32 %v5008, %v5009
    %v5012 = vsel %vm2039, %v5004, %v5011
    %v5013 = vrot.slane %v5008, 4
    %v5015 = vshrl.u32 %v4759, 16
    %v5017 = vrot.slane %v5015, 7
    %v5018 = vshll.u32 %v4759, 16
    %v5020 = vor.u32 %v5017, %v5018
    %v5021 = vsel %vm2039, %v5013, %v5020
    %v5022 = vrot.slane %v5017, 4
    %v5024 = vshrl.u32 %v4760, 16
    %v5026 = vrot.slane %v5024, 7
    %v5027 = vshll.u32 %v4760, 16
    %v5029 = vor.u32 %v5026, %v5027
    %v5030 = vsel %vm2039, %v5022, %v5029
    %v5031 = vrot.slane %v5026, 4
    %v5033 = vshrl.u32 %v4761, 16
    %v5035 = vrot.slane %v5033, 7
    %v5036 = vshll.u32 %v4761, 16
    %v5038 = vor.u32 %v5035, %v5036
    %v5039 = vsel %vm2039, %v5031, %v5038
    %v5040 = vrot.slane %v5035, 4
    %v5042 = vshrl.u32 %v4762, 16
    %v5044 = vrot.slane %v5042, 7
    %v5045 = vshll.u32 %v4762, 16
    %v5047 = vor.u32 %v5044, %v5045
    %v5048 = vsel %vm2039, %v5040, %v5047
    %v5049 = vrot.slane %v5044, 4
    %v5051 = vshrl.u32 %v4763, 16
    %v5053 = vrot.slane %v5051, 7
    %v5054 = vshll.u32 %v4763, 16
    %v5056 = vor.u32 %v5053, %v5054
    %v5057 = vsel %vm2039, %v5049, %v5056
    %v5058 = vrot.slane %v5053, 4
    %v5060 = vshrl.u32 %v4764, 16
    %v5062 = vrot.slane %v5060, 7
    %v5063 = vshll.u32 %v4764, 16
    %v5065 = vor.u32 %v5062, %v5063
    %v5066 = vsel %vm2039, %v5058, %v5065
    %v5067 = vrot.slane %v5062, 4
    %v5069 = vshrl.u32 %v4765, 16
    %v5071 = vrot.slane %v5069, 7
    %v5072 = vshll.u32 %v4765, 16
    %v5074 = vor.u32 %v5071, %v5072
    %v5075 = vsel %vm2039, %v5067, %v5074
    %v5076 = vrot.slane %v5071, 4
    %v5078 = vshrl.u32 %v4766, 16
    %v5080 = vrot.slane %v5078, 7
    %v5081 = vshll.u32 %v4766, 16
    %v5083 = vor.u32 %v5080, %v5081
    %v5084 = vsel %vm2039, %v5076, %v5083
    %v5085 = vrot.slane %v5080, 4
    %v5087 = vshrl.u32 %v4767, 16
    %v5089 = vrot.slane %v5087, 7
    %v5090 = vshll.u32 %v4767, 16
    %v5092 = vor.u32 %v5089, %v5090
    %v5093 = vsel %vm2039, %v5085, %v5092
    %5126 = vst [vmem:[#allocation2 + $0x8] sm:$0xf] %v4814
    %5127 = vst [vmem:[#allocation2 + $0xc] sm:$0xf] %v4823
    %5128 = vst [vmem:[#allocation2 + $0x10] sm:$0xf] %v4832
    %5129 = vst [vmem:[#allocation2 + $0x14] sm:$0xf] %v4841
    %5130 = vst [vmem:[#allocation2 + $0x18] sm:$0xf] %v4850
    %5131 = vst [vmem:[#allocation2 + $0x1c] sm:$0xf] %v4859
    %5132 = vst [vmem:[#allocation2 + $0x20] sm:$0xf] %v4868
    %5133 = vst [vmem:[#allocation2 + $0x24] sm:$0xf] %v4877
    %5134 = vst [vmem:[#allocation2 + $0x28] sm:$0xf] %v4886
    %5135 = vst [vmem:[#allocation2 + $0x2c] sm:$0xf] %v4895
    %5136 = vst [vmem:[#allocation2 + $0x30] sm:$0xf] %v4904
    %5137 = vst [vmem:[#allocation2 + $0x34] sm:$0xf] %v4913
    %5138 = vst [vmem:[#allocation2 + $0x38] sm:$0xf] %v4922
    %5139 = vst [vmem:[#allocation2 + $0x3c] sm:$0xf] %v4931
    %5140 = vst [vmem:[#allocation2 + $0x40] sm:$0xf] %v4940
    %5141 = vst [vmem:[#allocation2 + $0x44] sm:$0xf] %v4949
    %5142 = vst [vmem:[#allocation2 + $0x48] sm:$0xf] %v4958
    %5143 = vst [vmem:[#allocation2 + $0x4c] sm:$0xf] %v4967
    %5144 = vst [vmem:[#allocation2 + $0x50] sm:$0xf] %v4976
    %5145 = vst [vmem:[#allocation2 + $0x54] sm:$0xf] %v4985
    %5146 = vst [vmem:[#allocation2 + $0x58] sm:$0xf] %v4994
    %5147 = vst [vmem:[#allocation2 + $0x5c] sm:$0xf] %v5003
    %5148 = vst [vmem:[#allocation2 + $0x60] sm:$0xf] %v5012
    %5149 = vst [vmem:[#allocation2 + $0x64] sm:$0xf] %v5021
    %5150 = vst [vmem:[#allocation2 + $0x68] sm:$0xf] %v5030
    %5151 = vst [vmem:[#allocation2 + $0x6c] sm:$0xf] %v5039
    %5152 = vst [vmem:[#allocation2 + $0x70] sm:$0xf] %v5048
    %5153 = vst [vmem:[#allocation2 + $0x74] sm:$0xf] %v5057
    %5154 = vst [vmem:[#allocation2 + $0x78] sm:$0xf] %v5066
    %5155 = vst [vmem:[#allocation2 + $0x7c] sm:$0xf] %v5075
    %5156 = vst [vmem:[#allocation2 + $0x80] sm:$0xf] %v5084
    %5157 = vst [vmem:[#allocation2 + $0x84] sm:$0xf] %v5093
    %5158 = vrot.lane.b32.xlu0 %v4606, 32
    %v5159 = vpop.permute.xlu0 %5158
    %5160 = vrot.lane.b32.xlu0 %v4607, 32
    %v5161 = vpop.permute.xlu0 %5160
    %5162 = vrot.lane.b32.xlu0 %v4608, 32
    %v5163 = vpop.permute.xlu0 %5162
    %5164 = vrot.lane.b32.xlu0 %v4609, 32
    %v5165 = vpop.permute.xlu0 %5164
    %5166 = vrot.lane.b32.xlu0 %v4610, 32
    %v5167 = vpop.permute.xlu0 %5166
    %5168 = vrot.lane.b32.xlu0 %v4611, 32
    %v5169 = vpop.permute.xlu0 %5168
    %5170 = vrot.lane.b32.xlu0 %v4612, 32
    %v5171 = vpop.permute.xlu0 %5170
    %5172 = vrot.lane.b32.xlu0 %v4613, 32
    %v5173 = vpop.permute.xlu0 %5172
    %5174 = vrot.lane.b32.xlu0 %v4614, 32
    %v5175 = vpop.permute.xlu0 %5174
    %5176 = vrot.lane.b32.xlu0 %v4615, 32
    %v5177 = vpop.permute.xlu0 %5176
    %5178 = vrot.lane.b32.xlu0 %v4616, 32
    %v5179 = vpop.permute.xlu0 %5178
    %5180 = vrot.lane.b32.xlu0 %v4617, 32
    %v5181 = vpop.permute.xlu0 %5180
    %5182 = vrot.lane.b32.xlu0 %v4618, 32
    %v5183 = vpop.permute.xlu0 %5182
    %5184 = vrot.lane.b32.xlu0 %v4619, 32
    %v5185 = vpop.permute.xlu0 %5184
    %5186 = vrot.lane.b32.xlu0 %v4620, 32
    %v5187 = vpop.permute.xlu0 %5186
    %5188 = vrot.lane.b32.xlu0 %v4621, 32
    %v5189 = vpop.permute.xlu0 %5188
    %5190 = vrot.lane.b32.xlu0 %v4622, 32
    %v5191 = vpop.permute.xlu0 %5190
    %5192 = vrot.lane.b32.xlu0 %v4623, 32
    %v5193 = vpop.permute.xlu0 %5192
    %5194 = vrot.lane.b32.xlu0 %v4624, 32
    %v5195 = vpop.permute.xlu0 %5194
    %5196 = vrot.lane.b32.xlu0 %v4625, 32
    %v5197 = vpop.permute.xlu0 %5196
    %5198 = vrot.lane.b32.xlu0 %v4626, 32
    %v5199 = vpop.permute.xlu0 %5198
    %5200 = vrot.lane.b32.xlu0 %v4627, 32
    %v5201 = vpop.permute.xlu0 %5200
    %5202 = vrot.lane.b32.xlu0 %v4628, 32
    %v5203 = vpop.permute.xlu0 %5202
    %5204 = vrot.lane.b32.xlu0 %v4629, 32
    %v5205 = vpop.permute.xlu0 %5204
    %5206 = vrot.lane.b32.xlu0 %v4630, 32
    %v5207 = vpop.permute.xlu0 %5206
    %5208 = vrot.lane.b32.xlu0 %v4631, 32
    %v5209 = vpop.permute.xlu0 %5208
    %5210 = vrot.lane.b32.xlu0 %v4632, 32
    %v5211 = vpop.permute.xlu0 %5210
    %5212 = vrot.lane.b32.xlu0 %v4633, 32
    %v5213 = vpop.permute.xlu0 %5212
    %5214 = vrot.lane.b32.xlu0 %v4634, 32
    %v5215 = vpop.permute.xlu0 %5214
    %5216 = vrot.lane.b32.xlu0 %v4635, 32
    %v5217 = vpop.permute.xlu0 %5216
    %5218 = vrot.lane.b32.xlu0 %v4636, 32
    %v5219 = vpop.permute.xlu0 %5218
    %5220 = vrot.lane.b32.xlu0 %v4637, 32
    %v5221 = vpop.permute.xlu0 %5220
    %5254 = vst.msk [vmem:[#allocation2 + $0x8] sm:$0xf] %vm2845, %v5159
    %5255 = vst.msk [vmem:[#allocation2 + $0xc] sm:$0xf] %vm2845, %v5161
    %5256 = vst.msk [vmem:[#allocation2 + $0x10] sm:$0xf] %vm2845, %v5163
    %5257 = vst.msk [vmem:[#allocation2 + $0x14] sm:$0xf] %vm2845, %v5165
    %5258 = vst.msk [vmem:[#allocation2 + $0x18] sm:$0xf] %vm2845, %v5167
    %5259 = vst.msk [vmem:[#allocation2 + $0x1c] sm:$0xf] %vm2845, %v5169
    %5260 = vst.msk [vmem:[#allocation2 + $0x20] sm:$0xf] %vm2845, %v5171
    %5261 = vst.msk [vmem:[#allocation2 + $0x24] sm:$0xf] %vm2845, %v5173
    %5262 = vst.msk [vmem:[#allocation2 + $0x28] sm:$0xf] %vm2845, %v5175
    %5263 = vst.msk [vmem:[#allocation2 + $0x2c] sm:$0xf] %vm2845, %v5177
    %5264 = vst.msk [vmem:[#allocation2 + $0x30] sm:$0xf] %vm2845, %v5179
    %5265 = vst.msk [vmem:[#allocation2 + $0x34] sm:$0xf] %vm2845, %v5181
    %5266 = vst.msk [vmem:[#allocation2 + $0x38] sm:$0xf] %vm2845, %v5183
    %5267 = vst.msk [vmem:[#allocation2 + $0x3c] sm:$0xf] %vm2845, %v5185
    %5268 = vst.msk [vmem:[#allocation2 + $0x40] sm:$0xf] %vm2845, %v5187
    %5269 = vst.msk [vmem:[#allocation2 + $0x44] sm:$0xf] %vm2845, %v5189
    %5270 = vst.msk [vmem:[#allocation2 + $0x48] sm:$0xf] %vm2845, %v5191
    %5271 = vst.msk [vmem:[#allocation2 + $0x4c] sm:$0xf] %vm2845, %v5193
    %5272 = vst.msk [vmem:[#allocation2 + $0x50] sm:$0xf] %vm2845, %v5195
    %5273 = vst.msk [vmem:[#allocation2 + $0x54] sm:$0xf] %vm2845, %v5197
    %5274 = vst.msk [vmem:[#allocation2 + $0x58] sm:$0xf] %vm2845, %v5199
    %5275 = vst.msk [vmem:[#allocation2 + $0x5c] sm:$0xf] %vm2845, %v5201
    %5276 = vst.msk [vmem:[#allocation2 + $0x60] sm:$0xf] %vm2845, %v5203
    %5277 = vst.msk [vmem:[#allocation2 + $0x64] sm:$0xf] %vm2845, %v5205
    %5278 = vst.msk [vmem:[#allocation2 + $0x68] sm:$0xf] %vm2845, %v5207
    %5279 = vst.msk [vmem:[#allocation2 + $0x6c] sm:$0xf] %vm2845, %v5209
    %5280 = vst.msk [vmem:[#allocation2 + $0x70] sm:$0xf] %vm2845, %v5211
    %5281 = vst.msk [vmem:[#allocation2 + $0x74] sm:$0xf] %vm2845, %v5213
    %5282 = vst.msk [vmem:[#allocation2 + $0x78] sm:$0xf] %vm2845, %v5215
    %5283 = vst.msk [vmem:[#allocation2 + $0x7c] sm:$0xf] %vm2845, %v5217
    %5284 = vst.msk [vmem:[#allocation2 + $0x80] sm:$0xf] %vm2845, %v5219
    %5285 = vst.msk [vmem:[#allocation2 + $0x84] sm:$0xf] %vm2845, %v5221
    %v5287 = vshrl.u32 %v4769, 16
    %v5289 = vrot.slane %v5287, 4
    %v5290 = vshll.u32 %v4769, 16
    %v5292 = vrot.slane %v5290, 5
    %v5293 = vor.u32 %v5289, %v5292
    %v5294 = vrot.slane %v5293, 4
    %v5296 = vshll.u32 %v4770, 16
    %v5298 = vrot.slane %v5296, 5
    %v5299 = vsel %vm1410, %v5294, %v5298
    %v5300 = vshrl.u32 %v4770, 16
    %v5302 = vrot.slane %v5300, 4
    %v5303 = vor.u32 %v5302, %v5298
    %v5304 = vrot.slane %v5303, 4
    %v5306 = vshll.u32 %v4771, 16
    %v5308 = vrot.slane %v5306, 5
    %v5309 = vsel %vm1410, %v5304, %v5308
    %v5310 = vshrl.u32 %v4771, 16
    %v5312 = vrot.slane %v5310, 4
    %v5313 = vor.u32 %v5312, %v5308
    %v5314 = vrot.slane %v5313, 4
    %v5316 = vshll.u32 %v4772, 16
    %v5318 = vrot.slane %v5316, 5
    %v5319 = vsel %vm1410, %v5314, %v5318
    %v5320 = vshrl.u32 %v4772, 16
    %v5322 = vrot.slane %v5320, 4
    %v5323 = vor.u32 %v5322, %v5318
    %v5324 = vrot.slane %v5323, 4
    %v5326 = vshll.u32 %v4773, 16
    %v5328 = vrot.slane %v5326, 5
    %v5329 = vsel %vm1410, %v5324, %v5328
    %v5330 = vshrl.u32 %v4773, 16
    %v5332 = vrot.slane %v5330, 4
    %v5333 = vor.u32 %v5332, %v5328
    %v5334 = vrot.slane %v5333, 4
    %v5336 = vshll.u32 %v4774, 16
    %v5338 = vrot.slane %v5336, 5
    %v5339 = vsel %vm1410, %v5334, %v5338
    %v5340 = vshrl.u32 %v4774, 16
    %v5342 = vrot.slane %v5340, 4
    %v5343 = vor.u32 %v5342, %v5338
    %v5344 = vrot.slane %v5343, 4
    %v5346 = vshll.u32 %v4775, 16
    %v5348 = vrot.slane %v5346, 5
    %v5349 = vsel %vm1410, %v5344, %v5348
    %v5350 = vshrl.u32 %v4775, 16
    %v5352 = vrot.slane %v5350, 4
    %v5353 = vor.u32 %v5352, %v5348
    %v5354 = vrot.slane %v5353, 4
    %v5356 = vshll.u32 %v4776, 16
    %v5358 = vrot.slane %v5356, 5
    %v5359 = vsel %vm1410, %v5354, %v5358
    %v5360 = vshrl.u32 %v4776, 16
    %v5362 = vrot.slane %v5360, 4
    %v5363 = vor.u32 %v5362, %v5358
    %v5364 = vrot.slane %v5363, 4
    %v5366 = vshll.u32 %v4777, 16
    %v5368 = vrot.slane %v5366, 5
    %v5369 = vsel %vm1410, %v5364, %v5368
    %v5370 = vshrl.u32 %v4777, 16
    %v5372 = vrot.slane %v5370, 4
    %v5373 = vor.u32 %v5372, %v5368
    %v5374 = vrot.slane %v5373, 4
    %v5376 = vshll.u32 %v4778, 16
    %v5378 = vrot.slane %v5376, 5
    %v5379 = vsel %vm1410, %v5374, %v5378
    %v5380 = vshrl.u32 %v4778, 16
    %v5382 = vrot.slane %v5380, 4
    %v5383 = vor.u32 %v5382, %v5378
    %v5384 = vrot.slane %v5383, 4
    %v5386 = vshll.u32 %v4779, 16
    %v5388 = vrot.slane %v5386, 5
    %v5389 = vsel %vm1410, %v5384, %v5388
    %v5390 = vshrl.u32 %v4779, 16
    %v5392 = vrot.slane %v5390, 4
    %v5393 = vor.u32 %v5392, %v5388
    %v5394 = vrot.slane %v5393, 4
    %v5396 = vshll.u32 %v4780, 16
    %v5398 = vrot.slane %v5396, 5
    %v5399 = vsel %vm1410, %v5394, %v5398
    %v5400 = vshrl.u32 %v4780, 16
    %v5402 = vrot.slane %v5400, 4
    %v5403 = vor.u32 %v5402, %v5398
    %v5404 = vrot.slane %v5403, 4
    %v5406 = vshll.u32 %v4781, 16
    %v5408 = vrot.slane %v5406, 5
    %v5409 = vsel %vm1410, %v5404, %v5408
    %v5410 = vshrl.u32 %v4781, 16
    %v5412 = vrot.slane %v5410, 4
    %v5413 = vor.u32 %v5412, %v5408
    %v5414 = vrot.slane %v5413, 4
    %v5416 = vshll.u32 %v4782, 16
    %v5418 = vrot.slane %v5416, 5
    %v5419 = vsel %vm1410, %v5414, %v5418
    %v5420 = vshrl.u32 %v4782, 16
    %v5422 = vrot.slane %v5420, 4
    %v5423 = vor.u32 %v5422, %v5418
    %v5424 = vrot.slane %v5423, 4
    %v5426 = vshll.u32 %v4783, 16
    %v5428 = vrot.slane %v5426, 5
    %v5429 = vsel %vm1410, %v5424, %v5428
    %v5430 = vshrl.u32 %v4783, 16
    %v5432 = vrot.slane %v5430, 4
    %v5433 = vor.u32 %v5432, %v5428
    %v5434 = vrot.slane %v5433, 4
    %v5436 = vshll.u32 %v4784, 16
    %v5438 = vrot.slane %v5436, 5
    %v5439 = vsel %vm1410, %v5434, %v5438
    %v5440 = vshrl.u32 %v4784, 16
    %v5442 = vrot.slane %v5440, 4
    %v5443 = vor.u32 %v5442, %v5438
    %v5444 = vrot.slane %v5443, 4
    %v5446 = vshll.u32 %v4785, 16
    %v5448 = vrot.slane %v5446, 5
    %v5449 = vsel %vm1410, %v5444, %v5448
    %v5450 = vshrl.u32 %v4785, 16
    %v5452 = vrot.slane %v5450, 4
    %v5453 = vor.u32 %v5452, %v5448
    %v5454 = vrot.slane %v5453, 4
    %v5456 = vshll.u32 %v4786, 16
    %v5458 = vrot.slane %v5456, 5
    %v5459 = vsel %vm1410, %v5454, %v5458
    %v5460 = vshrl.u32 %v4786, 16
    %v5462 = vrot.slane %v5460, 4
    %v5463 = vor.u32 %v5462, %v5458
    %v5464 = vrot.slane %v5463, 4
    %v5466 = vshll.u32 %v4787, 16
    %v5468 = vrot.slane %v5466, 5
    %v5469 = vsel %vm1410, %v5464, %v5468
    %v5470 = vshrl.u32 %v4787, 16
    %v5472 = vrot.slane %v5470, 4
    %v5473 = vor.u32 %v5472, %v5468
    %v5474 = vrot.slane %v5473, 4
    %v5476 = vshll.u32 %v4788, 16
    %v5478 = vrot.slane %v5476, 5
    %v5479 = vsel %vm1410, %v5474, %v5478
    %v5480 = vshrl.u32 %v4788, 16
    %v5482 = vrot.slane %v5480, 4
    %v5483 = vor.u32 %v5482, %v5478
    %v5484 = vrot.slane %v5483, 4
    %v5486 = vshll.u32 %v4789, 16
    %v5488 = vrot.slane %v5486, 5
    %v5489 = vsel %vm1410, %v5484, %v5488
    %v5490 = vshrl.u32 %v4789, 16
    %v5492 = vrot.slane %v5490, 4
    %v5493 = vor.u32 %v5492, %v5488
    %v5494 = vrot.slane %v5493, 4
    %v5496 = vshll.u32 %v4790, 16
    %v5498 = vrot.slane %v5496, 5
    %v5499 = vsel %vm1410, %v5494, %v5498
    %v5500 = vshrl.u32 %v4790, 16
    %v5502 = vrot.slane %v5500, 4
    %v5503 = vor.u32 %v5502, %v5498
    %v5504 = vrot.slane %v5503, 4
    %v5506 = vshll.u32 %v4791, 16
    %v5508 = vrot.slane %v5506, 5
    %v5509 = vsel %vm1410, %v5504, %v5508
    %v5510 = vshrl.u32 %v4791, 16
    %v5512 = vrot.slane %v5510, 4
    %v5513 = vor.u32 %v5512, %v5508
    %v5514 = vrot.slane %v5513, 4
    %v5516 = vshll.u32 %v4792, 16
    %v5518 = vrot.slane %v5516, 5
    %v5519 = vsel %vm1410, %v5514, %v5518
    %v5520 = vshrl.u32 %v4792, 16
    %v5522 = vrot.slane %v5520, 4
    %v5523 = vor.u32 %v5522, %v5518
    %v5524 = vrot.slane %v5523, 4
    %v5526 = vshll.u32 %v4793, 16
    %v5528 = vrot.slane %v5526, 5
    %v5529 = vsel %vm1410, %v5524, %v5528
    %v5530 = vshrl.u32 %v4793, 16
    %v5532 = vrot.slane %v5530, 4
    %v5533 = vor.u32 %v5532, %v5528
    %v5534 = vrot.slane %v5533, 4
    %v5536 = vshll.u32 %v4794, 16
    %v5538 = vrot.slane %v5536, 5
    %v5539 = vsel %vm1410, %v5534, %v5538
    %v5540 = vshrl.u32 %v4794, 16
    %v5542 = vrot.slane %v5540, 4
    %v5543 = vor.u32 %v5542, %v5538
    %v5544 = vrot.slane %v5543, 4
    %v5546 = vshll.u32 %v4795, 16
    %v5548 = vrot.slane %v5546, 5
    %v5549 = vsel %vm1410, %v5544, %v5548
    %v5550 = vshrl.u32 %v4795, 16
    %v5552 = vrot.slane %v5550, 4
    %v5553 = vor.u32 %v5552, %v5548
    %v5554 = vrot.slane %v5553, 4
    %v5556 = vshll.u32 %v4796, 16
    %v5558 = vrot.slane %v5556, 5
    %v5559 = vsel %vm1410, %v5554, %v5558
    %v5560 = vshrl.u32 %v4796, 16
    %v5562 = vrot.slane %v5560, 4
    %v5563 = vor.u32 %v5562, %v5558
    %v5564 = vrot.slane %v5563, 4
    %v5566 = vshll.u32 %v4797, 16
    %v5568 = vrot.slane %v5566, 5
    %v5569 = vsel %vm1410, %v5564, %v5568
    %v5570 = vshrl.u32 %v4797, 16
    %v5572 = vrot.slane %v5570, 4
    %v5573 = vor.u32 %v5572, %v5568
    %v5574 = vrot.slane %v5573, 4
    %v5576 = vshll.u32 %v4798, 16
    %v5578 = vrot.slane %v5576, 5
    %v5579 = vsel %vm1410, %v5574, %v5578
    %v5580 = vshrl.u32 %v4798, 16
    %v5582 = vrot.slane %v5580, 4
    %v5583 = vor.u32 %v5582, %v5578
    %v5584 = vrot.slane %v5583, 4
    %v5586 = vshll.u32 %v4799, 16
    %v5588 = vrot.slane %v5586, 5
    %v5589 = vsel %vm1410, %v5584, %v5588
    %v5590 = vshrl.u32 %v4799, 16
    %v5592 = vrot.slane %v5590, 4
    %v5593 = vor.u32 %v5592, %v5588
    %v5594 = vrot.slane %v5593, 4
    %v5596 = vshll.u32 %v4800, 16
    %v5598 = vrot.slane %v5596, 5
    %v5599 = vsel %vm1410, %v5594, %v5598
    %v5600 = vshrl.u32 %v4800, 16
    %v5602 = vrot.slane %v5600, 4
    %v5603 = vor.u32 %v5602, %v5598
    %v5604 = vrot.slane %v5603, 4
    %v5606 = vshll.u32 %v4801, 16
    %v5608 = vrot.slane %v5606, 5
    %v5609 = vsel %vm1410, %v5604, %v5608
    %5610 = vrot.lane.b32.xlu0 %v5299, 64
    %v5611 = vpop.permute.xlu0 %5610
    %5612 = vrot.lane.b32.xlu0 %v5309, 64
    %v5613 = vpop.permute.xlu0 %5612
    %5614 = vrot.lane.b32.xlu0 %v5319, 64
    %v5615 = vpop.permute.xlu0 %5614
    %5616 = vrot.lane.b32.xlu0 %v5329, 64
    %v5617 = vpop.permute.xlu0 %5616
    %5618 = vrot.lane.b32.xlu0 %v5339, 64
    %v5619 = vpop.permute.xlu0 %5618
    %5620 = vrot.lane.b32.xlu0 %v5349, 64
    %v5621 = vpop.permute.xlu0 %5620
    %5622 = vrot.lane.b32.xlu0 %v5359, 64
    %v5623 = vpop.permute.xlu0 %5622
    %5624 = vrot.lane.b32.xlu0 %v5369, 64
    %v5625 = vpop.permute.xlu0 %5624
    %5626 = vrot.lane.b32.xlu0 %v5379, 64
    %v5627 = vpop.permute.xlu0 %5626
    %5628 = vrot.lane.b32.xlu0 %v5389, 64
    %v5629 = vpop.permute.xlu0 %5628
    %5630 = vrot.lane.b32.xlu0 %v5399, 64
    %v5631 = vpop.permute.xlu0 %5630
    %5632 = vrot.lane.b32.xlu0 %v5409, 64
    %v5633 = vpop.permute.xlu0 %5632
    %5634 = vrot.lane.b32.xlu0 %v5419, 64
    %v5635 = vpop.permute.xlu0 %5634
    %5636 = vrot.lane.b32.xlu0 %v5429, 64
    %v5637 = vpop.permute.xlu0 %5636
    %5638 = vrot.lane.b32.xlu0 %v5439, 64
    %v5639 = vpop.permute.xlu0 %5638
    %5640 = vrot.lane.b32.xlu0 %v5449, 64
    %v5641 = vpop.permute.xlu0 %5640
    %5642 = vrot.lane.b32.xlu0 %v5459, 64
    %v5643 = vpop.permute.xlu0 %5642
    %5644 = vrot.lane.b32.xlu0 %v5469, 64
    %v5645 = vpop.permute.xlu0 %5644
    %5646 = vrot.lane.b32.xlu0 %v5479, 64
    %v5647 = vpop.permute.xlu0 %5646
    %5648 = vrot.lane.b32.xlu0 %v5489, 64
    %v5649 = vpop.permute.xlu0 %5648
    %5650 = vrot.lane.b32.xlu0 %v5499, 64
    %v5651 = vpop.permute.xlu0 %5650
    %5652 = vrot.lane.b32.xlu0 %v5509, 64
    %v5653 = vpop.permute.xlu0 %5652
    %5654 = vrot.lane.b32.xlu0 %v5519, 64
    %v5655 = vpop.permute.xlu0 %5654
    %5656 = vrot.lane.b32.xlu0 %v5529, 64
    %v5657 = vpop.permute.xlu0 %5656
    %5658 = vrot.lane.b32.xlu0 %v5539, 64
    %v5659 = vpop.permute.xlu0 %5658
    %5660 = vrot.lane.b32.xlu0 %v5549, 64
    %v5661 = vpop.permute.xlu0 %5660
    %5662 = vrot.lane.b32.xlu0 %v5559, 64
    %v5663 = vpop.permute.xlu0 %5662
    %5664 = vrot.lane.b32.xlu0 %v5569, 64
    %v5665 = vpop.permute.xlu0 %5664
    %5666 = vrot.lane.b32.xlu0 %v5579, 64
    %v5667 = vpop.permute.xlu0 %5666
    %5668 = vrot.lane.b32.xlu0 %v5589, 64
    %v5669 = vpop.permute.xlu0 %5668
    %5670 = vrot.lane.b32.xlu0 %v5599, 64
    %v5671 = vpop.permute.xlu0 %5670
    %5672 = vrot.lane.b32.xlu0 %v5609, 64
    %v5673 = vpop.permute.xlu0 %5672
    %5706 = vst.msk [vmem:[#allocation2 + $0x8] sm:$0xf] %vm3298, %v5611
    %5707 = vst.msk [vmem:[#allocation2 + $0xc] sm:$0xf] %vm3298, %v5613
    %5708 = vst.msk [vmem:[#allocation2 + $0x10] sm:$0xf] %vm3298, %v5615
    %5709 = vst.msk [vmem:[#allocation2 + $0x14] sm:$0xf] %vm3298, %v5617
    %5710 = vst.msk [vmem:[#allocation2 + $0x18] sm:$0xf] %vm3298, %v5619
    %5711 = vst.msk [vmem:[#allocation2 + $0x1c] sm:$0xf] %vm3298, %v5621
    %5712 = vst.msk [vmem:[#allocation2 + $0x20] sm:$0xf] %vm3298, %v5623
    %5713 = vst.msk [vmem:[#allocation2 + $0x24] sm:$0xf] %vm3298, %v5625
    %5714 = vst.msk [vmem:[#allocation2 + $0x28] sm:$0xf] %vm3298, %v5627
    %5715 = vst.msk [vmem:[#allocation2 + $0x2c] sm:$0xf] %vm3298, %v5629
    %5716 = vst.msk [vmem:[#allocation2 + $0x30] sm:$0xf] %vm3298, %v5631
    %5717 = vst.msk [vmem:[#allocation2 + $0x34] sm:$0xf] %vm3298, %v5633
    %5718 = vst.msk [vmem:[#allocation2 + $0x38] sm:$0xf] %vm3298, %v5635
    %5719 = vst.msk [vmem:[#allocation2 + $0x3c] sm:$0xf] %vm3298, %v5637
    %5720 = vst.msk [vmem:[#allocation2 + $0x40] sm:$0xf] %vm3298, %v5639
    %5721 = vst.msk [vmem:[#allocation2 + $0x44] sm:$0xf] %vm3298, %v5641
    %5722 = vst.msk [vmem:[#allocation2 + $0x48] sm:$0xf] %vm3298, %v5643
    %5723 = vst.msk [vmem:[#allocation2 + $0x4c] sm:$0xf] %vm3298, %v5645
    %5724 = vst.msk [vmem:[#allocation2 + $0x50] sm:$0xf] %vm3298, %v5647
    %5725 = vst.msk [vmem:[#allocation2 + $0x54] sm:$0xf] %vm3298, %v5649
    %5726 = vst.msk [vmem:[#allocation2 + $0x58] sm:$0xf] %vm3298, %v5651
    %5727 = vst.msk [vmem:[#allocation2 + $0x5c] sm:$0xf] %vm3298, %v5653
    %5728 = vst.msk [vmem:[#allocation2 + $0x60] sm:$0xf] %vm3298, %v5655
    %5729 = vst.msk [vmem:[#allocation2 + $0x64] sm:$0xf] %vm3298, %v5657
    %5730 = vst.msk [vmem:[#allocation2 + $0x68] sm:$0xf] %vm3298, %v5659
    %5731 = vst.msk [vmem:[#allocation2 + $0x6c] sm:$0xf] %vm3298, %v5661
    %5732 = vst.msk [vmem:[#allocation2 + $0x70] sm:$0xf] %vm3298, %v5663
    %5733 = vst.msk [vmem:[#allocation2 + $0x74] sm:$0xf] %vm3298, %v5665
    %5734 = vst.msk [vmem:[#allocation2 + $0x78] sm:$0xf] %vm3298, %v5667
    %5735 = vst.msk [vmem:[#allocation2 + $0x7c] sm:$0xf] %vm3298, %v5669
    %5736 = vst.msk [vmem:[#allocation2 + $0x80] sm:$0xf] %vm3298, %v5671
    %5737 = vst.msk [vmem:[#allocation2 + $0x84] sm:$0xf] %vm3298, %v5673
    %v5738 = vld [vmem:[#allocation2] sm:$0xf]
    %v5739 = vld [vmem:[#allocation2 + $0x4] sm:$0xf]
    %v5740 = vld [vmem:[#allocation2 + $0x8] sm:$0xf]
    %v5741 = vld [vmem:[#allocation2 + $0xc] sm:$0xf]
    %v5742 = vld [vmem:[#allocation2 + $0x10] sm:$0xf]
    %v5743 = vld [vmem:[#allocation2 + $0x14] sm:$0xf]
    %v5744 = vld [vmem:[#allocation2 + $0x18] sm:$0xf]
    %v5745 = vld [vmem:[#allocation2 + $0x1c] sm:$0xf]
    %v5746 = vld [vmem:[#allocation2 + $0x20] sm:$0xf]
    %v5747 = vld [vmem:[#allocation2 + $0x24] sm:$0xf]
    %v5748 = vld [vmem:[#allocation2 + $0x28] sm:$0xf]
    %v5749 = vld [vmem:[#allocation2 + $0x2c] sm:$0xf]
    %v5750 = vld [vmem:[#allocation2 + $0x30] sm:$0xf]
    %v5751 = vld [vmem:[#allocation2 + $0x34] sm:$0xf]
    %v5752 = vld [vmem:[#allocation2 + $0x38] sm:$0xf]
    %v5753 = vld [vmem:[#allocation2 + $0x3c] sm:$0xf]
    %v5754 = vld [vmem:[#allocation2 + $0x40] sm:$0xf]
    %v5755 = vld [vmem:[#allocation2 + $0x44] sm:$0xf]
    %v5756 = vld [vmem:[#allocation2 + $0x48] sm:$0xf]
    %v5757 = vld [vmem:[#allocation2 + $0x4c] sm:$0xf]
    %v5758 = vld [vmem:[#allocation2 + $0x50] sm:$0xf]
    %v5759 = vld [vmem:[#allocation2 + $0x54] sm:$0xf]
    %v5760 = vld [vmem:[#allocation2 + $0x58] sm:$0xf]
    %v5761 = vld [vmem:[#allocation2 + $0x5c] sm:$0xf]
    %v5762 = vld [vmem:[#allocation2 + $0x60] sm:$0xf]
    %v5763 = vld [vmem:[#allocation2 + $0x64] sm:$0xf]
    %v5764 = vld [vmem:[#allocation2 + $0x68] sm:$0xf]
    %v5765 = vld [vmem:[#allocation2 + $0x6c] sm:$0xf]
    %v5766 = vld [vmem:[#allocation2 + $0x70] sm:$0xf]
    %v5767 = vld [vmem:[#allocation2 + $0x74] sm:$0xf]
    %v5768 = vld [vmem:[#allocation2 + $0x78] sm:$0xf]
    %v5769 = vld [vmem:[#allocation2 + $0x7c] sm:$0xf]
    %v5770 = vld [vmem:[#allocation8] sm:$0xf]
    %v5771 = vld [vmem:[#allocation8 + $0x4] sm:$0xf]
    %v5772 = vld [vmem:[#allocation8 + $0x8] sm:$0xf]
    %v5773 = vld [vmem:[#allocation8 + $0xc] sm:$0xf]
    %v5774 = vld [vmem:[#allocation8 + $0x10] sm:$0xf]
    %v5775 = vld [vmem:[#allocation8 + $0x14] sm:$0xf]
    %v5776 = vld [vmem:[#allocation8 + $0x18] sm:$0xf]
    %v5777 = vld [vmem:[#allocation8 + $0x1c] sm:$0xf]
    %v5778 = vld [vmem:[#allocation8 + $0x20] sm:$0xf]
    %v5779 = vld [vmem:[#allocation8 + $0x24] sm:$0xf]
    %v5780 = vld [vmem:[#allocation8 + $0x28] sm:$0xf]
    %v5781 = vld [vmem:[#allocation8 + $0x2c] sm:$0xf]
    %v5782 = vld [vmem:[#allocation8 + $0x30] sm:$0xf]
    %v5783 = vld [vmem:[#allocation8 + $0x34] sm:$0xf]
    %v5784 = vld [vmem:[#allocation8 + $0x38] sm:$0xf]
    %v5785 = vld [vmem:[#allocation8 + $0x3c] sm:$0xf]
    %v5786 = vld [vmem:[#allocation2 + $0x80] sm:$0xf]
    %v5787 = vld [vmem:[#allocation2 + $0x84] sm:$0xf]
    %s5788 = scalar_lea.vmem [#allocation8], 64
    %v5789 = vld [vmem:[%s5788] sm:$0xf]
    %v5790 = vld [vmem:[%s5788 + $0x4] sm:$0xf]
    %v5791 = vld [vmem:[%s5788 + $0x8] sm:$0xf]
    %v5792 = vld [vmem:[%s5788 + $0xc] sm:$0xf]
    %v5793 = vld [vmem:[%s5788 + $0x10] sm:$0xf]
    %v5794 = vld [vmem:[%s5788 + $0x14] sm:$0xf]
    %v5795 = vld [vmem:[%s5788 + $0x18] sm:$0xf]
    %v5796 = vld [vmem:[%s5788 + $0x1c] sm:$0xf]
    %v5797 = vld [vmem:[%s5788 + $0x20] sm:$0xf]
    %v5798 = vld [vmem:[%s5788 + $0x24] sm:$0xf]
    %v5799 = vld [vmem:[%s5788 + $0x28] sm:$0xf]
    %v5800 = vld [vmem:[%s5788 + $0x2c] sm:$0xf]
    %v5801 = vld [vmem:[%s5788 + $0x30] sm:$0xf]
    %v5802 = vld [vmem:[%s5788 + $0x34] sm:$0xf]
    %v5803 = vld [vmem:[%s5788 + $0x38] sm:$0xf]
    %v5804 = vld [vmem:[%s5788 + $0x3c] sm:$0xf]
    %v5837 = vunpack.c.l.b16 %v5740
    %v5838 = vunpack.c.l.b16 %v5741
    %v5839 = vunpack.c.l.b16 %v5742
    %v5840 = vunpack.c.l.b16 %v5743
    %v5841 = vunpack.c.l.b16 %v5744
    %v5842 = vunpack.c.l.b16 %v5745
    %v5843 = vunpack.c.l.b16 %v5746
    %v5844 = vunpack.c.l.b16 %v5747
    %v5845 = vunpack.c.l.b16 %v5748
    %v5846 = vunpack.c.l.b16 %v5749
    %v5847 = vunpack.c.l.b16 %v5750
    %v5848 = vunpack.c.l.b16 %v5751
    %v5849 = vunpack.c.l.b16 %v5752
    %v5850 = vunpack.c.l.b16 %v5753
    %v5851 = vunpack.c.l.b16 %v5754
    %v5852 = vunpack.c.l.b16 %v5755
    %v5853 = vunpack.c.l.b16 %v5756
    %v5854 = vunpack.c.l.b16 %v5757
    %v5855 = vunpack.c.l.b16 %v5758
    %v5856 = vunpack.c.l.b16 %v5759
    %v5857 = vunpack.c.l.b16 %v5760
    %v5858 = vunpack.c.l.b16 %v5761
    %v5859 = vunpack.c.l.b16 %v5762
    %v5860 = vunpack.c.l.b16 %v5763
    %v5861 = vunpack.c.l.b16 %v5764
    %v5862 = vunpack.c.l.b16 %v5765
    %v5863 = vunpack.c.l.b16 %v5766
    %v5864 = vunpack.c.l.b16 %v5767
    %v5865 = vunpack.c.l.b16 %v5768
    %v5866 = vunpack.c.l.b16 %v5769
    %v5867 = vunpack.c.l.b16 %v5786
    %v5868 = vunpack.c.l.b16 %v5787
    %v5869 = vpack.c.b16 %v5838, %v5837
    %v5870 = vpack.c.b16 %v5840, %v5839
    %v5871 = vpack.c.b16 %v5842, %v5841
    %v5872 = vpack.c.b16 %v5844, %v5843
    %v5873 = vpack.c.b16 %v5846, %v5845
    %v5874 = vpack.c.b16 %v5848, %v5847
    %v5875 = vpack.c.b16 %v5850, %v5849
    %v5876 = vpack.c.b16 %v5852, %v5851
    %v5877 = vpack.c.b16 %v5854, %v5853
    %v5878 = vpack.c.b16 %v5856, %v5855
    %v5879 = vpack.c.b16 %v5858, %v5857
    %v5880 = vpack.c.b16 %v5860, %v5859
    %v5881 = vpack.c.b16 %v5862, %v5861
    %v5882 = vpack.c.b16 %v5864, %v5863
    %v5883 = vpack.c.b16 %v5866, %v5865
    %v5884 = vpack.c.b16 %v5868, %v5867
    %v5917 = vunpack.c.l.b16 %v5789
    %v5918 = vunpack.c.l.b16 %v5790
    %v5919 = vunpack.c.l.b16 %v5791
    %v5920 = vunpack.c.l.b16 %v5792
    %v5921 = vunpack.c.l.b16 %v5793
    %v5922 = vunpack.c.l.b16 %v5794
    %v5923 = vunpack.c.l.b16 %v5795
    %v5924 = vunpack.c.l.b16 %v5796
    %v5925 = vunpack.c.l.b16 %v5797
    %v5926 = vunpack.c.l.b16 %v5798
    %v5927 = vunpack.c.l.b16 %v5799
    %v5928 = vunpack.c.l.b16 %v5800
    %v5929 = vunpack.c.l.b16 %v5801
    %v5930 = vunpack.c.l.b16 %v5802
    %v5931 = vunpack.c.l.b16 %v5803
    %v5932 = vunpack.c.l.b16 %v5804
    %v5933 = vpack.c.b16 %v5918, %v5917
    %v5934 = vpack.c.b16 %v5920, %v5919
    %v5935 = vpack.c.b16 %v5922, %v5921
    %v5936 = vpack.c.b16 %v5924, %v5923
    %v5937 = vpack.c.b16 %v5926, %v5925
    %v5938 = vpack.c.b16 %v5928, %v5927
    %v5939 = vpack.c.b16 %v5930, %v5929
    %v5940 = vpack.c.b16 %v5932, %v5931
    %5949 = vmatprep.subr.bf16.mxu0 0
    %5950 = vmatpush1.bf16.msra.mxu0 %v5940
    %5951 = vmatprep.subr.bf16.mxu0 0
    %5952 = vmatpush1.bf16.msra.mxu0 %v5939
    %5953 = vmatprep.subr.bf16.mxu0 0
    %5954 = vmatpush1.bf16.msra.mxu0 %v5938
    %5955 = vmatprep.subr.bf16.mxu0 0
    %5956 = vmatpush1.bf16.msra.mxu0 %v5937
    %5957 = vmatprep.subr.bf16.mxu0 0
    %5958 = vmatpush1.bf16.msra.mxu0 %v5936
    %5959 = vmatprep.subr.bf16.mxu0 0
    %5960 = vmatpush1.bf16.msra.mxu0 %v5935
    %5961 = vmatprep.subr.bf16.mxu0 0
    %5962 = vmatpush1.bf16.msra.mxu0 %v5934
    %5963 = vmatprep.subr.bf16.mxu0 0
    %5964 = vmatpush1.bf16.msra.mxu0 %v5933
    %5965 = vmatprep.subr.bf16.mxu0 0
    %5966 = vmatpush2.bf16.msra.mxu0 0
    %5967 = vmatprep.subr.bf16.mxu0 0
    %5968 = vmatpush2.bf16.msra.mxu0 0
    %5969 = vmatprep.subr.bf16.mxu0 0
    %5970 = vmatpush2.bf16.msra.mxu0 0
    %5971 = vmatprep.subr.bf16.mxu0 0
    %5972 = vmatpush2.bf16.msra.mxu0 0
    %5973 = vmatprep.subr.bf16.mxu0 0
    %5974 = vmatpush2.bf16.msra.mxu0 0
    %5975 = vmatprep.subr.bf16.mxu0 0
    %5976 = vmatpush2.bf16.msra.mxu0 0
    %5977 = vmatprep.subr.bf16.mxu0 0
    %5978 = vmatpush2.bf16.msra.mxu0 0
    %5979 = vmatprep.subr.bf16.mxu0 0
    %5980 = vmatpush2.bf16.msra.mxu0 0
    %5981 = vmatprep.mubr.bf16.mxu0 0
    %5982 = vmatmul.mubr.bf16.gmra.mxu0 %v5869
    %v5983 = vpop.f32.mrf.mxu0
    %v5984 = vadd.f32 0.0, %v5983
    %v5985 = vpop.f32.mrf.mxu0
    %v5986 = vpop.f32.mrf.mxu0
    %v5987 = vadd.f32 0.0, %v5986
    %v5988 = vpop.f32.mrf.mxu0
    %5989 = vmatprep.mubr.bf16.mxu0 0
    %5990 = vmatmul.mubr.bf16.gmra.mxu0 %v5870
    %v5991 = vpop.f32.mrf.mxu0
    %v5992 = vadd.f32 0.0, %v5991
    %v5993 = vpop.f32.mrf.mxu0
    %v5994 = vpop.f32.mrf.mxu0
    %v5995 = vadd.f32 0.0, %v5994
    %v5996 = vpop.f32.mrf.mxu0
    %5997 = vmatprep.mubr.bf16.mxu0 0
    %5998 = vmatmul.mubr.bf16.gmra.mxu0 %v5871
    %v5999 = vpop.f32.mrf.mxu0
    %v6000 = vadd.f32 0.0, %v5999
    %v6001 = vpop.f32.mrf.mxu0
    %v6002 = vpop.f32.mrf.mxu0
    %v6003 = vadd.f32 0.0, %v6002
    %v6004 = vpop.f32.mrf.mxu0
    %6005 = vmatprep.mubr.bf16.mxu0 0
    %6006 = vmatmul.mubr.bf16.gmra.mxu0 %v5872
    %v6007 = vpop.f32.mrf.mxu0
    %v6008 = vadd.f32 0.0, %v6007
    %v6009 = vpop.f32.mrf.mxu0
    %v6010 = vpop.f32.mrf.mxu0
    %v6011 = vadd.f32 0.0, %v6010
    %v6012 = vpop.f32.mrf.mxu0
    %6013 = vmatprep.mubr.bf16.mxu0 0
    %6014 = vmatmul.mubr.bf16.gmra.mxu0 %v5873
    %v6015 = vpop.f32.mrf.mxu0
    %v6016 = vadd.f32 0.0, %v6015
    %v6017 = vpop.f32.mrf.mxu0
    %v6018 = vpop.f32.mrf.mxu0
    %v6019 = vadd.f32 0.0, %v6018
    %v6020 = vpop.f32.mrf.mxu0
    %6021 = vmatprep.mubr.bf16.mxu0 0
    %6022 = vmatmul.mubr.bf16.gmra.mxu0 %v5874
    %v6023 = vpop.f32.mrf.mxu0
    %v6024 = vadd.f32 0.0, %v6023
    %v6025 = vpop.f32.mrf.mxu0
    %v6026 = vpop.f32.mrf.mxu0
    %v6027 = vadd.f32 0.0, %v6026
    %v6028 = vpop.f32.mrf.mxu0
    %6029 = vmatprep.mubr.bf16.mxu0 0
    %6030 = vmatmul.mubr.bf16.gmra.mxu0 %v5875
    %v6031 = vpop.f32.mrf.mxu0
    %v6032 = vadd.f32 0.0, %v6031
    %v6033 = vpop.f32.mrf.mxu0
    %v6034 = vpop.f32.mrf.mxu0
    %v6035 = vadd.f32 0.0, %v6034
    %v6036 = vpop.f32.mrf.mxu0
    %6037 = vmatprep.mubr.bf16.mxu0 0
    %6038 = vmatmul.mubr.bf16.gmra.mxu0 %v5876
    %v6039 = vpop.f32.mrf.mxu0
    %v6040 = vadd.f32 0.0, %v6039
    %v6041 = vpop.f32.mrf.mxu0
    %v6042 = vpop.f32.mrf.mxu0
    %v6043 = vadd.f32 0.0, %v6042
    %v6044 = vpop.f32.mrf.mxu0
    %6045 = vmatprep.mubr.bf16.mxu0 0
    %6046 = vmatmul.mubr.bf16.gmra.mxu0 %v5877
    %v6047 = vpop.f32.mrf.mxu0
    %v6048 = vadd.f32 0.0, %v6047
    %v6049 = vpop.f32.mrf.mxu0
    %v6050 = vpop.f32.mrf.mxu0
    %v6051 = vadd.f32 0.0, %v6050
    %v6052 = vpop.f32.mrf.mxu0
    %6053 = vmatprep.mubr.bf16.mxu0 0
    %6054 = vmatmul.mubr.bf16.gmra.mxu0 %v5878
    %v6055 = vpop.f32.mrf.mxu0
    %v6056 = vadd.f32 0.0, %v6055
    %v6057 = vpop.f32.mrf.mxu0
    %v6058 = vpop.f32.mrf.mxu0
    %v6059 = vadd.f32 0.0, %v6058
    %v6060 = vpop.f32.mrf.mxu0
    %6061 = vmatprep.mubr.bf16.mxu0 0
    %6062 = vmatmul.mubr.bf16.gmra.mxu0 %v5879
    %v6063 = vpop.f32.mrf.mxu0
    %v6064 = vadd.f32 0.0, %v6063
    %v6065 = vpop.f32.mrf.mxu0
    %v6066 = vpop.f32.mrf.mxu0
    %v6067 = vadd.f32 0.0, %v6066
    %v6068 = vpop.f32.mrf.mxu0
    %6069 = vmatprep.mubr.bf16.mxu0 0
    %6070 = vmatmul.mubr.bf16.gmra.mxu0 %v5880
    %v6071 = vpop.f32.mrf.mxu0
    %v6072 = vadd.f32 0.0, %v6071
    %v6073 = vpop.f32.mrf.mxu0
    %v6074 = vpop.f32.mrf.mxu0
    %v6075 = vadd.f32 0.0, %v6074
    %v6076 = vpop.f32.mrf.mxu0
    %6077 = vmatprep.mubr.bf16.mxu0 0
    %6078 = vmatmul.mubr.bf16.gmra.mxu0 %v5881
    %v6079 = vpop.f32.mrf.mxu0
    %v6080 = vadd.f32 0.0, %v6079
    %v6081 = vpop.f32.mrf.mxu0
    %v6082 = vpop.f32.mrf.mxu0
    %v6083 = vadd.f32 0.0, %v6082
    %v6084 = vpop.f32.mrf.mxu0
    %6085 = vmatprep.mubr.bf16.mxu0 0
    %6086 = vmatmul.mubr.bf16.gmra.mxu0 %v5882
    %v6087 = vpop.f32.mrf.mxu0
    %v6088 = vadd.f32 0.0, %v6087
    %v6089 = vpop.f32.mrf.mxu0
    %v6090 = vpop.f32.mrf.mxu0
    %v6091 = vadd.f32 0.0, %v6090
    %v6092 = vpop.f32.mrf.mxu0
    %6093 = vmatprep.mubr.bf16.mxu0 0
    %6094 = vmatmul.mubr.bf16.gmra.mxu0 %v5883
    %v6095 = vpop.f32.mrf.mxu0
    %v6096 = vadd.f32 0.0, %v6095
    %v6097 = vpop.f32.mrf.mxu0
    %v6098 = vpop.f32.mrf.mxu0
    %v6099 = vadd.f32 0.0, %v6098
    %v6100 = vpop.f32.mrf.mxu0
    %6101 = vmatprep.mubr.bf16.mxu0 0
    %6102 = vmatmul.mubr.bf16.gmra.mxu0 %v5884
    %v6103 = vpop.f32.mrf.mxu0
    %v6104 = vadd.f32 0.0, %v6103
    %v6105 = vpop.f32.mrf.mxu0
    %v6106 = vpop.f32.mrf.mxu0
    %v6107 = vadd.f32 0.0, %v6106
    %v6108 = vpop.f32.mrf.mxu0
    %6109 = vdwg.mxu0
    %v6112 = vunpack.c.l.b16 %v5738
    %v6113 = vunpack.c.l.b16 %v5739
    %v6114 = vpack.c.b16 %v6113, %v6112
    %v6132 = vunpack.c.l.b16 %v5770
    %v6133 = vunpack.c.l.b16 %v5771
    %v6134 = vunpack.c.l.b16 %v5772
    %v6135 = vunpack.c.l.b16 %v5773
    %v6136 = vunpack.c.l.b16 %v5774
    %v6137 = vunpack.c.l.b16 %v5775
    %v6138 = vunpack.c.l.b16 %v5776
    %v6139 = vunpack.c.l.b16 %v5777
    %v6140 = vunpack.c.l.b16 %v5778
    %v6141 = vunpack.c.l.b16 %v5779
    %v6142 = vunpack.c.l.b16 %v5780
    %v6143 = vunpack.c.l.b16 %v5781
    %v6144 = vunpack.c.l.b16 %v5782
    %v6145 = vunpack.c.l.b16 %v5783
    %v6146 = vunpack.c.l.b16 %v5784
    %v6147 = vunpack.c.l.b16 %v5785
    %v6148 = vpack.c.b16 %v6133, %v6132
    %v6149 = vpack.c.b16 %v6135, %v6134
    %v6150 = vpack.c.b16 %v6137, %v6136
    %v6151 = vpack.c.b16 %v6139, %v6138
    %v6152 = vpack.c.b16 %v6141, %v6140
    %v6153 = vpack.c.b16 %v6143, %v6142
    %v6154 = vpack.c.b16 %v6145, %v6144
    %v6155 = vpack.c.b16 %v6147, %v6146
    %6164 = vmatprep.subr.bf16.mxu0 0
    %6165 = vmatpush1.bf16.msra.mxu0 %v6155
    %6166 = vmatprep.subr.bf16.mxu0 0
    %6167 = vmatpush1.bf16.msra.mxu0 %v6154
    %6168 = vmatprep.subr.bf16.mxu0 0
    %6169 = vmatpush1.bf16.msra.mxu0 %v6153
    %6170 = vmatprep.subr.bf16.mxu0 0
    %6171 = vmatpush1.bf16.msra.mxu0 %v6152
    %6172 = vmatprep.subr.bf16.mxu0 0
    %6173 = vmatpush1.bf16.msra.mxu0 %v6151
    %6174 = vmatprep.subr.bf16.mxu0 0
    %6175 = vmatpush1.bf16.msra.mxu0 %v6150
    %6176 = vmatprep.subr.bf16.mxu0 0
    %6177 = vmatpush1.bf16.msra.mxu0 %v6149
    %6178 = vmatprep.subr.bf16.mxu0 0
    %6179 = vmatpush1.bf16.msra.mxu0 %v6148
    %6180 = vmatprep.subr.bf16.mxu0 0
    %6181 = vmatpush2.bf16.msra.mxu0 0
    %6182 = vmatprep.subr.bf16.mxu0 0
    %6183 = vmatpush2.bf16.msra.mxu0 0
    %6184 = vmatprep.subr.bf16.mxu0 0
    %6185 = vmatpush2.bf16.msra.mxu0 0
    %6186 = vmatprep.subr.bf16.mxu0 0
    %6187 = vmatpush2.bf16.msra.mxu0 0
    %6188 = vmatprep.subr.bf16.mxu0 0
    %6189 = vmatpush2.bf16.msra.mxu0 0
    %6190 = vmatprep.subr.bf16.mxu0 0
    %6191 = vmatpush2.bf16.msra.mxu0 0
    %6192 = vmatprep.subr.bf16.mxu0 0
    %6193 = vmatpush2.bf16.msra.mxu0 0
    %6194 = vmatprep.subr.bf16.mxu0 0
    %6195 = vmatpush2.bf16.msra.mxu0 0
    %6196 = vmatprep.mubr.bf16.mxu0 0
    %6197 = vmatmul.mubr.bf16.gmra.mxu0 %v6114
    %v6198 = vpop.f32.mrf.mxu0
    %v6199 = vadd.f32 %v5984, %v6198
    %v6200 = vpop.f32.mrf.mxu0
    %v6201 = vpop.f32.mrf.mxu0
    %v6202 = vadd.f32 %v5987, %v6201
    %v6203 = vpop.f32.mrf.mxu0
    %6204 = vmatprep.mubr.bf16.mxu0 0
    %6205 = vmatmul.mubr.bf16.gmra.mxu0 %v5869
    %v6206 = vpop.f32.mrf.mxu0
    %v6207 = vadd.f32 %v5992, %v6206
    %v6208 = vpop.f32.mrf.mxu0
    %v6209 = vpop.f32.mrf.mxu0
    %v6210 = vadd.f32 %v5995, %v6209
    %v6211 = vpop.f32.mrf.mxu0
    %6212 = vmatprep.mubr.bf16.mxu0 0
    %6213 = vmatmul.mubr.bf16.gmra.mxu0 %v5870
    %v6214 = vpop.f32.mrf.mxu0
    %v6215 = vadd.f32 %v6000, %v6214
    %v6216 = vpop.f32.mrf.mxu0
    %v6217 = vpop.f32.mrf.mxu0
    %v6218 = vadd.f32 %v6003, %v6217
    %v6219 = vpop.f32.mrf.mxu0
    %6220 = vmatprep.mubr.bf16.mxu0 0
    %6221 = vmatmul.mubr.bf16.gmra.mxu0 %v5871
    %v6222 = vpop.f32.mrf.mxu0
    %v6223 = vadd.f32 %v6008, %v6222
    %v6224 = vpop.f32.mrf.mxu0
    %v6225 = vpop.f32.mrf.mxu0
    %v6226 = vadd.f32 %v6011, %v6225
    %v6227 = vpop.f32.mrf.mxu0
    %6228 = vmatprep.mubr.bf16.mxu0 0
    %6229 = vmatmul.mubr.bf16.gmra.mxu0 %v5872
    %v6230 = vpop.f32.mrf.mxu0
    %v6231 = vadd.f32 %v6016, %v6230
    %v6232 = vpop.f32.mrf.mxu0
    %v6233 = vpop.f32.mrf.mxu0
    %v6234 = vadd.f32 %v6019, %v6233
    %v6235 = vpop.f32.mrf.mxu0
    %6236 = vmatprep.mubr.bf16.mxu0 0
    %6237 = vmatmul.mubr.bf16.gmra.mxu0 %v5873
    %v6238 = vpop.f32.mrf.mxu0
    %v6239 = vadd.f32 %v6024, %v6238
    %v6240 = vpop.f32.mrf.mxu0
    %v6241 = vpop.f32.mrf.mxu0
    %v6242 = vadd.f32 %v6027, %v6241
    %v6243 = vpop.f32.mrf.mxu0
    %6244 = vmatprep.mubr.bf16.mxu0 0
    %6245 = vmatmul.mubr.bf16.gmra.mxu0 %v5874
    %v6246 = vpop.f32.mrf.mxu0
    %v6247 = vadd.f32 %v6032, %v6246
    %v6248 = vpop.f32.mrf.mxu0
    %v6249 = vpop.f32.mrf.mxu0
    %v6250 = vadd.f32 %v6035, %v6249
    %v6251 = vpop.f32.mrf.mxu0
    %6252 = vmatprep.mubr.bf16.mxu0 0
    %6253 = vmatmul.mubr.bf16.gmra.mxu0 %v5875
    %v6254 = vpop.f32.mrf.mxu0
    %v6255 = vadd.f32 %v6040, %v6254
    %v6256 = vpop.f32.mrf.mxu0
    %v6257 = vpop.f32.mrf.mxu0
    %v6258 = vadd.f32 %v6043, %v6257
    %v6259 = vpop.f32.mrf.mxu0
    %6260 = vmatprep.mubr.bf16.mxu0 0
    %6261 = vmatmul.mubr.bf16.gmra.mxu0 %v5876
    %v6262 = vpop.f32.mrf.mxu0
    %v6263 = vadd.f32 %v6048, %v6262
    %v6264 = vpop.f32.mrf.mxu0
    %v6265 = vpop.f32.mrf.mxu0
    %v6266 = vadd.f32 %v6051, %v6265
    %v6267 = vpop.f32.mrf.mxu0
    %6268 = vmatprep.mubr.bf16.mxu0 0
    %6269 = vmatmul.mubr.bf16.gmra.mxu0 %v5877
    %v6270 = vpop.f32.mrf.mxu0
    %v6271 = vadd.f32 %v6056, %v6270
    %v6272 = vpop.f32.mrf.mxu0
    %v6273 = vpop.f32.mrf.mxu0
    %v6274 = vadd.f32 %v6059, %v6273
    %v6275 = vpop.f32.mrf.mxu0
    %6276 = vmatprep.mubr.bf16.mxu0 0
    %6277 = vmatmul.mubr.bf16.gmra.mxu0 %v5878
    %v6278 = vpop.f32.mrf.mxu0
    %v6279 = vadd.f32 %v6064, %v6278
    %v6280 = vpop.f32.mrf.mxu0
    %v6281 = vpop.f32.mrf.mxu0
    %v6282 = vadd.f32 %v6067, %v6281
    %v6283 = vpop.f32.mrf.mxu0
    %6284 = vmatprep.mubr.bf16.mxu0 0
    %6285 = vmatmul.mubr.bf16.gmra.mxu0 %v5879
    %v6286 = vpop.f32.mrf.mxu0
    %v6287 = vadd.f32 %v6072, %v6286
    %v6288 = vpop.f32.mrf.mxu0
    %v6289 = vpop.f32.mrf.mxu0
    %v6290 = vadd.f32 %v6075, %v6289
    %v6291 = vpop.f32.mrf.mxu0
    %6292 = vmatprep.mubr.bf16.mxu0 0
    %6293 = vmatmul.mubr.bf16.gmra.mxu0 %v5880
    %v6294 = vpop.f32.mrf.mxu0
    %v6295 = vadd.f32 %v6080, %v6294
    %v6296 = vpop.f32.mrf.mxu0
    %v6297 = vpop.f32.mrf.mxu0
    %v6298 = vadd.f32 %v6083, %v6297
    %v6299 = vpop.f32.mrf.mxu0
    %6300 = vmatprep.mubr.bf16.mxu0 0
    %6301 = vmatmul.mubr.bf16.gmra.mxu0 %v5881
    %v6302 = vpop.f32.mrf.mxu0
    %v6303 = vadd.f32 %v6088, %v6302
    %v6304 = vpop.f32.mrf.mxu0
    %v6305 = vpop.f32.mrf.mxu0
    %v6306 = vadd.f32 %v6091, %v6305
    %v6307 = vpop.f32.mrf.mxu0
    %6308 = vmatprep.mubr.bf16.mxu0 0
    %6309 = vmatmul.mubr.bf16.gmra.mxu0 %v5882
    %v6310 = vpop.f32.mrf.mxu0
    %v6311 = vadd.f32 %v6096, %v6310
    %v6312 = vpop.f32.mrf.mxu0
    %v6313 = vpop.f32.mrf.mxu0
    %v6314 = vadd.f32 %v6099, %v6313
    %v6315 = vpop.f32.mrf.mxu0
    %6316 = vmatprep.mubr.bf16.mxu0 0
    %6317 = vmatmul.mubr.bf16.gmra.mxu0 %v5883
    %v6318 = vpop.f32.mrf.mxu0
    %v6319 = vadd.f32 %v6104, %v6318
    %v6320 = vpop.f32.mrf.mxu0
    %v6321 = vpop.f32.mrf.mxu0
    %v6322 = vadd.f32 %v6107, %v6321
    %v6323 = vpop.f32.mrf.mxu0
    %6324 = vdwg.mxu0
    %v6325 = vld [vmem:[#allocation2 + $0x10] sm:$0xf]
    %v6326 = vld [vmem:[#allocation2 + $0x14] sm:$0xf]
    %v6327 = vld [vmem:[#allocation2 + $0x18] sm:$0xf]
    %v6328 = vld [vmem:[#allocation2 + $0x1c] sm:$0xf]
    %v6329 = vld [vmem:[#allocation2 + $0x20] sm:$0xf]
    %v6330 = vld [vmem:[#allocation2 + $0x24] sm:$0xf]
    %v6331 = vld [vmem:[#allocation2 + $0x28] sm:$0xf]
    %v6332 = vld [vmem:[#allocation2 + $0x2c] sm:$0xf]
    %v6333 = vld [vmem:[#allocation2 + $0x30] sm:$0xf]
    %v6334 = vld [vmem:[#allocation2 + $0x34] sm:$0xf]
    %v6335 = vld [vmem:[#allocation2 + $0x38] sm:$0xf]
    %v6336 = vld [vmem:[#allocation2 + $0x3c] sm:$0xf]
    %v6337 = vld [vmem:[#allocation2 + $0x40] sm:$0xf]
    %v6338 = vld [vmem:[#allocation2 + $0x44] sm:$0xf]
    %v6339 = vld [vmem:[#allocation2 + $0x48] sm:$0xf]
    %v6340 = vld [vmem:[#allocation2 + $0x4c] sm:$0xf]
    %v6341 = vld [vmem:[#allocation2 + $0x50] sm:$0xf]
    %v6342 = vld [vmem:[#allocation2 + $0x54] sm:$0xf]
    %v6343 = vld [vmem:[#allocation2 + $0x58] sm:$0xf]
    %v6344 = vld [vmem:[#allocation2 + $0x5c] sm:$0xf]
    %v6345 = vld [vmem:[#allocation2 + $0x60] sm:$0xf]
    %v6346 = vld [vmem:[#allocation2 + $0x64] sm:$0xf]
    %v6347 = vld [vmem:[#allocation2 + $0x68] sm:$0xf]
    %v6348 = vld [vmem:[#allocation2 + $0x6c] sm:$0xf]
    %v6349 = vld [vmem:[#allocation2 + $0x70] sm:$0xf]
    %v6350 = vld [vmem:[#allocation2 + $0x74] sm:$0xf]
    %v6351 = vld [vmem:[#allocation2 + $0x78] sm:$0xf]
    %v6352 = vld [vmem:[#allocation2 + $0x7c] sm:$0xf]
    %v6353 = vld [vmem:[#allocation2 + $0x80] sm:$0xf]
    %v6354 = vld [vmem:[#allocation2 + $0x84] sm:$0xf]
    %v6355 = vld [vmem:[#allocation2 + $0x88] sm:$0xf]
    %v6356 = vld [vmem:[#allocation2 + $0x8c] sm:$0xf]
    %s6357 = scalar_lea.vmem [#allocation8], 128
    %v6358 = vld [vmem:[%s6357] sm:$0xf]
    %v6359 = vld [vmem:[%s6357 + $0x4] sm:$0xf]
    %v6360 = vld [vmem:[%s6357 + $0x8] sm:$0xf]
    %v6361 = vld [vmem:[%s6357 + $0xc] sm:$0xf]
    %v6362 = vld [vmem:[%s6357 + $0x10] sm:$0xf]
    %v6363 = vld [vmem:[%s6357 + $0x14] sm:$0xf]
    %v6364 = vld [vmem:[%s6357 + $0x18] sm:$0xf]
    %v6365 = vld [vmem:[%s6357 + $0x1c] sm:$0xf]
    %v6366 = vld [vmem:[%s6357 + $0x20] sm:$0xf]
    %v6367 = vld [vmem:[%s6357 + $0x24] sm:$0xf]
    %v6368 = vld [vmem:[%s6357 + $0x28] sm:$0xf]
    %v6369 = vld [vmem:[%s6357 + $0x2c] sm:$0xf]
    %v6370 = vld [vmem:[%s6357 + $0x30] sm:$0xf]
    %v6371 = vld [vmem:[%s6357 + $0x34] sm:$0xf]
    %v6372 = vld [vmem:[%s6357 + $0x38] sm:$0xf]
    %v6373 = vld [vmem:[%s6357 + $0x3c] sm:$0xf]
    %v6406 = vunpack.c.l.b16 %v6325
    %v6407 = vunpack.c.l.b16 %v6326
    %v6408 = vunpack.c.l.b16 %v6327
    %v6409 = vunpack.c.l.b16 %v6328
    %v6410 = vunpack.c.l.b16 %v6329
    %v6411 = vunpack.c.l.b16 %v6330
    %v6412 = vunpack.c.l.b16 %v6331
    %v6413 = vunpack.c.l.b16 %v6332
    %v6414 = vunpack.c.l.b16 %v6333
    %v6415 = vunpack.c.l.b16 %v6334
    %v6416 = vunpack.c.l.b16 %v6335
    %v6417 = vunpack.c.l.b16 %v6336
    %v6418 = vunpack.c.l.b16 %v6337
    %v6419 = vunpack.c.l.b16 %v6338
    %v6420 = vunpack.c.l.b16 %v6339
    %v6421 = vunpack.c.l.b16 %v6340
    %v6422 = vunpack.c.l.b16 %v6341
    %v6423 = vunpack.c.l.b16 %v6342
    %v6424 = vunpack.c.l.b16 %v6343
    %v6425 = vunpack.c.l.b16 %v6344
    %v6426 = vunpack.c.l.b16 %v6345
    %v6427 = vunpack.c.l.b16 %v6346
    %v6428 = vunpack.c.l.b16 %v6347
    %v6429 = vunpack.c.l.b16 %v6348
    %v6430 = vunpack.c.l.b16 %v6349
    %v6431 = vunpack.c.l.b16 %v6350
    %v6432 = vunpack.c.l.b16 %v6351
    %v6433 = vunpack.c.l.b16 %v6352
    %v6434 = vunpack.c.l.b16 %v6353
    %v6435 = vunpack.c.l.b16 %v6354
    %v6436 = vunpack.c.l.b16 %v6355
    %v6437 = vunpack.c.l.b16 %v6356
    %v6438 = vpack.c.b16 %v6407, %v6406
    %v6439 = vpack.c.b16 %v6409, %v6408
    %v6440 = vpack.c.b16 %v6411, %v6410
    %v6441 = vpack.c.b16 %v6413, %v6412
    %v6442 = vpack.c.b16 %v6415, %v6414
    %v6443 = vpack.c.b16 %v6417, %v6416
    %v6444 = vpack.c.b16 %v6419, %v6418
    %v6445 = vpack.c.b16 %v6421, %v6420
    %v6446 = vpack.c.b16 %v6423, %v6422
    %v6447 = vpack.c.b16 %v6425, %v6424
    %v6448 = vpack.c.b16 %v6427, %v6426
    %v6449 = vpack.c.b16 %v6429, %v6428
    %v6450 = vpack.c.b16 %v6431, %v6430
    %v6451 = vpack.c.b16 %v6433, %v6432
    %v6452 = vpack.c.b16 %v6435, %v6434
    %v6453 = vpack.c.b16 %v6437, %v6436
    %v6486 = vunpack.c.l.b16 %v6358
    %v6487 = vunpack.c.l.b16 %v6359
    %v6488 = vunpack.c.l.b16 %v6360
    %v6489 = vunpack.c.l.b16 %v6361
    %v6490 = vunpack.c.l.b16 %v6362
    %v6491 = vunpack.c.l.b16 %v6363
    %v6492 = vunpack.c.l.b16 %v6364
    %v6493 = vunpack.c.l.b16 %v6365
    %v6494 = vunpack.c.l.b16 %v6366
    %v6495 = vunpack.c.l.b16 %v6367
    %v6496 = vunpack.c.l.b16 %v6368
    %v6497 = vunpack.c.l.b16 %v6369
    %v6498 = vunpack.c.l.b16 %v6370
    %v6499 = vunpack.c.l.b16 %v6371
    %v6500 = vunpack.c.l.b16 %v6372
    %v6501 = vunpack.c.l.b16 %v6373
    %v6502 = vpack.c.b16 %v6487, %v6486
    %v6503 = vpack.c.b16 %v6489, %v6488
    %v6504 = vpack.c.b16 %v6491, %v6490
    %v6505 = vpack.c.b16 %v6493, %v6492
    %v6506 = vpack.c.b16 %v6495, %v6494
    %v6507 = vpack.c.b16 %v6497, %v6496
    %v6508 = vpack.c.b16 %v6499, %v6498
    %v6509 = vpack.c.b16 %v6501, %v6500
    %6518 = vmatprep.subr.bf16.mxu0 0
    %6519 = vmatpush1.bf16.msra.mxu0 %v6509
    %6520 = vmatprep.subr.bf16.mxu0 0
    %6521 = vmatpush1.bf16.msra.mxu0 %v6508
    %6522 = vmatprep.subr.bf16.mxu0 0
    %6523 = vmatpush1.bf16.msra.mxu0 %v6507
    %6524 = vmatprep.subr.bf16.mxu0 0
    %6525 = vmatpush1.bf16.msra.mxu0 %v6506
    %6526 = vmatprep.subr.bf16.mxu0 0
    %6527 = vmatpush1.bf16.msra.mxu0 %v6505
    %6528 = vmatprep.subr.bf16.mxu0 0
    %6529 = vmatpush1.bf16.msra.mxu0 %v6504
    %6530 = vmatprep.subr.bf16.mxu0 0
    %6531 = vmatpush1.bf16.msra.mxu0 %v6503
    %6532 = vmatprep.subr.bf16.mxu0 0
    %6533 = vmatpush1.bf16.msra.mxu0 %v6502
    %6534 = vmatprep.subr.bf16.mxu0 0
    %6535 = vmatpush2.bf16.msra.mxu0 0
    %6536 = vmatprep.subr.bf16.mxu0 0
    %6537 = vmatpush2.bf16.msra.mxu0 0
    %6538 = vmatprep.subr.bf16.mxu0 0
    %6539 = vmatpush2.bf16.msra.mxu0 0
    %6540 = vmatprep.subr.bf16.mxu0 0
    %6541 = vmatpush2.bf16.msra.mxu0 0
    %6542 = vmatprep.subr.bf16.mxu0 0
    %6543 = vmatpush2.bf16.msra.mxu0 0
    %6544 = vmatprep.subr.bf16.mxu0 0
    %6545 = vmatpush2.bf16.msra.mxu0 0
    %6546 = vmatprep.subr.bf16.mxu0 0
    %6547 = vmatpush2.bf16.msra.mxu0 0
    %6548 = vmatprep.subr.bf16.mxu0 0
    %6549 = vmatpush2.bf16.msra.mxu0 0
    %6550 = vmatprep.mubr.bf16.mxu0 0
    %6551 = vmatmul.mubr.bf16.gmra.mxu0 %v6438
    %v6552 = vpop.f32.mrf.mxu0
    %v6553 = vadd.f32 0.0, %v6552
    %v6554 = vpop.f32.mrf.mxu0
    %v6555 = vpop.f32.mrf.mxu0
    %v6556 = vadd.f32 0.0, %v6555
    %v6557 = vpop.f32.mrf.mxu0
    %6558 = vmatprep.mubr.bf16.mxu0 0
    %6559 = vmatmul.mubr.bf16.gmra.mxu0 %v6439
    %v6560 = vpop.f32.mrf.mxu0
    %v6561 = vadd.f32 0.0, %v6560
    %v6562 = vpop.f32.mrf.mxu0
    %v6563 = vpop.f32.mrf.mxu0
    %v6564 = vadd.f32 0.0, %v6563
    %v6565 = vpop.f32.mrf.mxu0
    %6566 = vmatprep.mubr.bf16.mxu0 0
    %6567 = vmatmul.mubr.bf16.gmra.mxu0 %v6440
    %v6568 = vpop.f32.mrf.mxu0
    %v6569 = vadd.f32 0.0, %v6568
    %v6570 = vpop.f32.mrf.mxu0
    %v6571 = vpop.f32.mrf.mxu0
    %v6572 = vadd.f32 0.0, %v6571
    %v6573 = vpop.f32.mrf.mxu0
    %6574 = vmatprep.mubr.bf16.mxu0 0
    %6575 = vmatmul.mubr.bf16.gmra.mxu0 %v6441
    %v6576 = vpop.f32.mrf.mxu0
    %v6577 = vadd.f32 0.0, %v6576
    %v6578 = vpop.f32.mrf.mxu0
    %v6579 = vpop.f32.mrf.mxu0
    %v6580 = vadd.f32 0.0, %v6579
    %v6581 = vpop.f32.mrf.mxu0
    %6582 = vmatprep.mubr.bf16.mxu0 0
    %6583 = vmatmul.mubr.bf16.gmra.mxu0 %v6442
    %v6584 = vpop.f32.mrf.mxu0
    %v6585 = vadd.f32 0.0, %v6584
    %v6586 = vpop.f32.mrf.mxu0
    %v6587 = vpop.f32.mrf.mxu0
    %v6588 = vadd.f32 0.0, %v6587
    %v6589 = vpop.f32.mrf.mxu0
    %6590 = vmatprep.mubr.bf16.mxu0 0
    %6591 = vmatmul.mubr.bf16.gmra.mxu0 %v6443
    %v6592 = vpop.f32.mrf.mxu0
    %v6593 = vadd.f32 0.0, %v6592
    %v6594 = vpop.f32.mrf.mxu0
    %v6595 = vpop.f32.mrf.mxu0
    %v6596 = vadd.f32 0.0, %v6595
    %v6597 = vpop.f32.mrf.mxu0
    %6598 = vmatprep.mubr.bf16.mxu0 0
    %6599 = vmatmul.mubr.bf16.gmra.mxu0 %v6444
    %v6600 = vpop.f32.mrf.mxu0
    %v6601 = vadd.f32 0.0, %v6600
    %v6602 = vpop.f32.mrf.mxu0
    %v6603 = vpop.f32.mrf.mxu0
    %v6604 = vadd.f32 0.0, %v6603
    %v6605 = vpop.f32.mrf.mxu0
    %6606 = vmatprep.mubr.bf16.mxu0 0
    %6607 = vmatmul.mubr.bf16.gmra.mxu0 %v6445
    %v6608 = vpop.f32.mrf.mxu0
    %v6609 = vadd.f32 0.0, %v6608
    %v6610 = vpop.f32.mrf.mxu0
    %v6611 = vpop.f32.mrf.mxu0
    %v6612 = vadd.f32 0.0, %v6611
    %v6613 = vpop.f32.mrf.mxu0
    %6614 = vmatprep.mubr.bf16.mxu0 0
    %6615 = vmatmul.mubr.bf16.gmra.mxu0 %v6446
    %v6616 = vpop.f32.mrf.mxu0
    %v6617 = vadd.f32 0.0, %v6616
    %v6618 = vpop.f32.mrf.mxu0
    %v6619 = vpop.f32.mrf.mxu0
    %v6620 = vadd.f32 0.0, %v6619
    %v6621 = vpop.f32.mrf.mxu0
    %6622 = vmatprep.mubr.bf16.mxu0 0
    %6623 = vmatmul.mubr.bf16.gmra.mxu0 %v6447
    %v6624 = vpop.f32.mrf.mxu0
    %v6625 = vadd.f32 0.0, %v6624
    %v6626 = vpop.f32.mrf.mxu0
    %v6627 = vpop.f32.mrf.mxu0
    %v6628 = vadd.f32 0.0, %v6627
    %v6629 = vpop.f32.mrf.mxu0
    %6630 = vmatprep.mubr.bf16.mxu0 0
    %6631 = vmatmul.mubr.bf16.gmra.mxu0 %v6448
    %v6632 = vpop.f32.mrf.mxu0
    %v6633 = vadd.f32 0.0, %v6632
    %v6634 = vpop.f32.mrf.mxu0
    %v6635 = vpop.f32.mrf.mxu0
    %v6636 = vadd.f32 0.0, %v6635
    %v6637 = vpop.f32.mrf.mxu0
    %6638 = vmatprep.mubr.bf16.mxu0 0
    %6639 = vmatmul.mubr.bf16.gmra.mxu0 %v6449
    %v6640 = vpop.f32.mrf.mxu0
    %v6641 = vadd.f32 0.0, %v6640
    %v6642 = vpop.f32.mrf.mxu0
    %v6643 = vpop.f32.mrf.mxu0
    %v6644 = vadd.f32 0.0, %v6643
    %v6645 = vpop.f32.mrf.mxu0
    %6646 = vmatprep.mubr.bf16.mxu0 0
    %6647 = vmatmul.mubr.bf16.gmra.mxu0 %v6450
    %v6648 = vpop.f32.mrf.mxu0
    %v6649 = vadd.f32 0.0, %v6648
    %v6650 = vpop.f32.mrf.mxu0
    %v6651 = vpop.f32.mrf.mxu0
    %v6652 = vadd.f32 0.0, %v6651
    %v6653 = vpop.f32.mrf.mxu0
    %6654 = vmatprep.mubr.bf16.mxu0 0
    %6655 = vmatmul.mubr.bf16.gmra.mxu0 %v6451
    %v6656 = vpop.f32.mrf.mxu0
    %v6657 = vadd.f32 0.0, %v6656
    %v6658 = vpop.f32.mrf.mxu0
    %v6659 = vpop.f32.mrf.mxu0
    %v6660 = vadd.f32 0.0, %v6659
    %v6661 = vpop.f32.mrf.mxu0
    %6662 = vmatprep.mubr.bf16.mxu0 0
    %6663 = vmatmul.mubr.bf16.gmra.mxu0 %v6452
    %v6664 = vpop.f32.mrf.mxu0
    %v6665 = vadd.f32 0.0, %v6664
    %v6666 = vpop.f32.mrf.mxu0
    %v6667 = vpop.f32.mrf.mxu0
    %v6668 = vadd.f32 0.0, %v6667
    %v6669 = vpop.f32.mrf.mxu0
    %6670 = vmatprep.mubr.bf16.mxu0 0
    %6671 = vmatmul.mubr.bf16.gmra.mxu0 %v6453
    %v6672 = vpop.f32.mrf.mxu0
    %v6673 = vadd.f32 0.0, %v6672
    %v6674 = vpop.f32.mrf.mxu0
    %v6675 = vpop.f32.mrf.mxu0
    %v6676 = vadd.f32 0.0, %v6675
    %v6677 = vpop.f32.mrf.mxu0
    %6678 = vdwg.mxu0
    %v6679 = vadd.f32 %v6199, %v6553
    %v6680 = vadd.f32 %v6202, %v6556
    %v6681 = vadd.f32 %v6207, %v6561
    %v6682 = vadd.f32 %v6210, %v6564
    %v6683 = vadd.f32 %v6215, %v6569
    %v6684 = vadd.f32 %v6218, %v6572
    %v6685 = vadd.f32 %v6223, %v6577
    %v6686 = vadd.f32 %v6226, %v6580
    %v6687 = vadd.f32 %v6231, %v6585
    %v6688 = vadd.f32 %v6234, %v6588
    %v6689 = vadd.f32 %v6239, %v6593
    %v6690 = vadd.f32 %v6242, %v6596
    %v6691 = vadd.f32 %v6247, %v6601
    %v6692 = vadd.f32 %v6250, %v6604
    %v6693 = vadd.f32 %v6255, %v6609
    %v6694 = vadd.f32 %v6258, %v6612
    %v6695 = vadd.f32 %v6263, %v6617
    %v6696 = vadd.f32 %v6266, %v6620
    %v6697 = vadd.f32 %v6271, %v6625
    %v6698 = vadd.f32 %v6274, %v6628
    %v6699 = vadd.f32 %v6279, %v6633
    %v6700 = vadd.f32 %v6282, %v6636
    %v6701 = vadd.f32 %v6287, %v6641
    %v6702 = vadd.f32 %v6290, %v6644
    %v6703 = vadd.f32 %v6295, %v6649
    %v6704 = vadd.f32 %v6298, %v6652
    %v6705 = vadd.f32 %v6303, %v6657
    %v6706 = vadd.f32 %v6306, %v6660
    %v6707 = vadd.f32 %v6311, %v6665
    %v6708 = vadd.f32 %v6314, %v6668
    %v6709 = vadd.f32 %v6319, %v6673
    %v6710 = vadd.f32 %v6322, %v6676
    %v6711 = vld [vmem:[%s3] sm:$0x1]
    %v6713 = vlaneseq
    %v6714 = vshrl.u32 %v6713, 7
    %v6715 = vsub.s32 0, %v6714
    %v6716 = vrot.slane %v6711, %v6715
    %v6718 = vadd.f32 %v6679, %v6716
    %v6719 = vadd.f32 %v6680, %v6716
    %v6720 = vadd.f32 %v6681, %v6716
    %v6721 = vadd.f32 %v6682, %v6716
    %v6722 = vadd.f32 %v6683, %v6716
    %v6723 = vadd.f32 %v6684, %v6716
    %v6724 = vadd.f32 %v6685, %v6716
    %v6725 = vadd.f32 %v6686, %v6716
    %v6726 = vadd.f32 %v6687, %v6716
    %v6727 = vadd.f32 %v6688, %v6716
    %v6728 = vadd.f32 %v6689, %v6716
    %v6729 = vadd.f32 %v6690, %v6716
    %v6730 = vadd.f32 %v6691, %v6716
    %v6731 = vadd.f32 %v6692, %v6716
    %v6732 = vadd.f32 %v6693, %v6716
    %v6733 = vadd.f32 %v6694, %v6716
    %v6734 = vadd.f32 %v6695, %v6716
    %v6735 = vadd.f32 %v6696, %v6716
    %v6736 = vadd.f32 %v6697, %v6716
    %v6737 = vadd.f32 %v6698, %v6716
    %v6738 = vadd.f32 %v6699, %v6716
    %v6739 = vadd.f32 %v6700, %v6716
    %v6740 = vadd.f32 %v6701, %v6716
    %v6741 = vadd.f32 %v6702, %v6716
    %v6742 = vadd.f32 %v6703, %v6716
    %v6743 = vadd.f32 %v6704, %v6716
    %v6744 = vadd.f32 %v6705, %v6716
    %v6745 = vadd.f32 %v6706, %v6716
    %v6746 = vadd.f32 %v6707, %v6716
    %v6747 = vadd.f32 %v6708, %v6716
    %v6748 = vadd.f32 %v6709, %v6716
    %v6749 = vadd.f32 %v6710, %v6716
    %v6750 = vadd.f32 %v6718, %v705
    %v6751 = vadd.f32 %v6719, %v706
    %v6752 = vadd.f32 %v6720, %v707
    %v6753 = vadd.f32 %v6721, %v708
    %v6754 = vadd.f32 %v6722, %v709
    %v6755 = vadd.f32 %v6723, %v710
    %v6756 = vadd.f32 %v6724, %v711
    %v6757 = vadd.f32 %v6725, %v712
    %v6758 = vadd.f32 %v6726, %v713
    %v6759 = vadd.f32 %v6727, %v714
    %v6760 = vadd.f32 %v6728, %v715
    %v6761 = vadd.f32 %v6729, %v716
    %v6762 = vadd.f32 %v6730, %v717
    %v6763 = vadd.f32 %v6731, %v718
    %v6764 = vadd.f32 %v6732, %v719
    %v6765 = vadd.f32 %v6733, %v720
    %v6766 = vadd.f32 %v6734, %v721
    %v6767 = vadd.f32 %v6735, %v722
    %v6768 = vadd.f32 %v6736, %v723
    %v6769 = vadd.f32 %v6737, %v724
    %v6770 = vadd.f32 %v6738, %v725
    %v6771 = vadd.f32 %v6739, %v726
    %v6772 = vadd.f32 %v6740, %v727
    %v6773 = vadd.f32 %v6741, %v728
    %v6774 = vadd.f32 %v6742, %v729
    %v6775 = vadd.f32 %v6743, %v730
    %v6776 = vadd.f32 %v6744, %v731
    %v6777 = vadd.f32 %v6745, %v732
    %v6778 = vadd.f32 %v6746, %v733
    %v6779 = vadd.f32 %v6747, %v734
    %v6780 = vadd.f32 %v6748, %v735
    %v6781 = vadd.f32 %v6749, %v736
    %v6782 = vmul.f32 %v6750, 0.01
    %v6783 = vmul.f32 %v6751, 0.01
    %v6784 = vmul.f32 %v6752, 0.01
    %v6785 = vmul.f32 %v6753, 0.01
    %v6786 = vmul.f32 %v6754, 0.01
    %v6787 = vmul.f32 %v6755, 0.01
    %v6788 = vmul.f32 %v6756, 0.01
    %v6789 = vmul.f32 %v6757, 0.01
    %v6790 = vmul.f32 %v6758, 0.01
    %v6791 = vmul.f32 %v6759, 0.01
    %v6792 = vmul.f32 %v6760, 0.01
    %v6793 = vmul.f32 %v6761, 0.01
    %v6794 = vmul.f32 %v6762, 0.01
    %v6795 = vmul.f32 %v6763, 0.01
    %v6796 = vmul.f32 %v6764, 0.01
    %v6797 = vmul.f32 %v6765, 0.01
    %v6798 = vmul.f32 %v6766, 0.01
    %v6799 = vmul.f32 %v6767, 0.01
    %v6800 = vmul.f32 %v6768, 0.01
    %v6801 = vmul.f32 %v6769, 0.01
    %v6802 = vmul.f32 %v6770, 0.01
    %v6803 = vmul.f32 %v6771, 0.01
    %v6804 = vmul.f32 %v6772, 0.01
    %v6805 = vmul.f32 %v6773, 0.01
    %v6806 = vmul.f32 %v6774, 0.01
    %v6807 = vmul.f32 %v6775, 0.01
    %v6808 = vmul.f32 %v6776, 0.01
    %v6809 = vmul.f32 %v6777, 0.01
    %v6810 = vmul.f32 %v6778, 0.01
    %v6811 = vmul.f32 %v6779, 0.01
    %v6812 = vmul.f32 %v6780, 0.01
    %v6813 = vmul.f32 %v6781, 0.01
    %v6814 = vmax.f32 %v6750, %v6782
    %v6815 = vmax.f32 %v6751, %v6783
    %v6816 = vmax.f32 %v6752, %v6784
    %v6817 = vmax.f32 %v6753, %v6785
    %v6818 = vmax.f32 %v6754, %v6786
    %v6819 = vmax.f32 %v6755, %v6787
    %v6820 = vmax.f32 %v6756, %v6788
    %v6821 = vmax.f32 %v6757, %v6789
    %v6822 = vmax.f32 %v6758, %v6790
    %v6823 = vmax.f32 %v6759, %v6791
    %v6824 = vmax.f32 %v6760, %v6792
    %v6825 = vmax.f32 %v6761, %v6793
    %v6826 = vmax.f32 %v6762, %v6794
    %v6827 = vmax.f32 %v6763, %v6795
    %v6828 = vmax.f32 %v6764, %v6796
    %v6829 = vmax.f32 %v6765, %v6797
    %v6830 = vmax.f32 %v6766, %v6798
    %v6831 = vmax.f32 %v6767, %v6799
    %v6832 = vmax.f32 %v6768, %v6800
    %v6833 = vmax.f32 %v6769, %v6801
    %v6834 = vmax.f32 %v6770, %v6802
    %v6835 = vmax.f32 %v6771, %v6803
    %v6836 = vmax.f32 %v6772, %v6804
    %v6837 = vmax.f32 %v6773, %v6805
    %v6838 = vmax.f32 %v6774, %v6806
    %v6839 = vmax.f32 %v6775, %v6807
    %v6840 = vmax.f32 %v6776, %v6808
    %v6841 = vmax.f32 %v6777, %v6809
    %v6842 = vmax.f32 %v6778, %v6810
    %v6843 = vmax.f32 %v6779, %v6811
    %v6844 = vmax.f32 %v6780, %v6812
    %v6845 = vmax.f32 %v6781, %v6813
    %6846 = vst [vmem:[#allocation9] sm:$0xff] %v6814
    %6847 = vst [vmem:[#allocation9 + $0x8] sm:$0xff] %v6815
    %6848 = vst [vmem:[#allocation9 + $0x10] sm:$0xff] %v6816
    %6849 = vst [vmem:[#allocation9 + $0x18] sm:$0xff] %v6817
    %6850 = vst [vmem:[#allocation9 + $0x20] sm:$0xff] %v6818
    %6851 = vst [vmem:[#allocation9 + $0x28] sm:$0xff] %v6819
    %6852 = vst [vmem:[#allocation9 + $0x30] sm:$0xff] %v6820
    %6853 = vst [vmem:[#allocation9 + $0x38] sm:$0xff] %v6821
    %6854 = vst [vmem:[#allocation9 + $0x40] sm:$0xff] %v6822
    %6855 = vst [vmem:[#allocation9 + $0x48] sm:$0xff] %v6823
    %6856 = vst [vmem:[#allocation9 + $0x50] sm:$0xff] %v6824
    %6857 = vst [vmem:[#allocation9 + $0x58] sm:$0xff] %v6825
    %6858 = vst [vmem:[#allocation9 + $0x60] sm:$0xff] %v6826
    %6859 = vst [vmem:[#allocation9 + $0x68] sm:$0xff] %v6827
    %6860 = vst [vmem:[#allocation9 + $0x70] sm:$0xff] %v6828
    %6861 = vst [vmem:[#allocation9 + $0x78] sm:$0xff] %v6829
    %6862 = vst [vmem:[#allocation9 + $0x80] sm:$0xff] %v6830
    %6863 = vst [vmem:[#allocation9 + $0x88] sm:$0xff] %v6831
    %6864 = vst [vmem:[#allocation9 + $0x90] sm:$0xff] %v6832
    %6865 = vst [vmem:[#allocation9 + $0x98] sm:$0xff] %v6833
    %6866 = vst [vmem:[#allocation9 + $0xa0] sm:$0xff] %v6834
    %6867 = vst [vmem:[#allocation9 + $0xa8] sm:$0xff] %v6835
    %6868 = vst [vmem:[#allocation9 + $0xb0] sm:$0xff] %v6836
    %6869 = vst [vmem:[#allocation9 + $0xb8] sm:$0xff] %v6837
    %6870 = vst [vmem:[#allocation9 + $0xc0] sm:$0xff] %v6838
    %6871 = vst [vmem:[#allocation9 + $0xc8] sm:$0xff] %v6839
    %6872 = vst [vmem:[#allocation9 + $0xd0] sm:$0xff] %v6840
    %6873 = vst [vmem:[#allocation9 + $0xd8] sm:$0xff] %v6841
    %6874 = vst [vmem:[#allocation9 + $0xe0] sm:$0xff] %v6842
    %6875 = vst [vmem:[#allocation9 + $0xe8] sm:$0xff] %v6843
    %6876 = vst [vmem:[#allocation9 + $0xf0] sm:$0xff] %v6844
    %6877 = vst [vmem:[#allocation9 + $0xf8] sm:$0xff] %v6845
    // Predicated region
    $region30: #{tpu_custom_call.1} parent=1 // pred_check
      _
    $region31: #{tpu_custom_call.1} parent=1 // pred_check_branch
      %6879 = sbr.rel (0) target = $region33
    $region32: #{tpu_custom_call.1} parent=1 // pred_region
      %s6881 = ssub.s32 4096, 4096
      %6882 = vsyncadd [#allocation5], %s6881
      %s6883 = sshll.u32 [#allocation9], 4
      %s6884 = int_to_ptr.vmem [resolvable:$true] %s6883
      %6889 = dma.vmem_to_hbm [thread:$0]  %s6884, 4096, %s4, [#allocation5], 128, 128, 8
    $region33: #{tpu_custom_call.1} parent=1 // pred_fallthru
      _
    // Predicated region
    $region34: #{tpu_custom_call.1} parent=1 // pred_check
      _
    $region35: #{tpu_custom_call.1} parent=1 // pred_check_branch
      %6891 = sbr.rel (0) target = $region37
    $region36: #{tpu_custom_call.1} parent=1 // pred_region
      %6892 = dma.done [#allocation5], 4096
    $region37: #{tpu_custom_call.1} parent=1 // pred_fallthru
      _
    %6893 = vsyncpa [#allocation4], 1
    %6894 = vsyncpa [#allocation7], 1
    %6895 = vsyncpa [#allocation5], 1

</llo_original>
